<compile_context>
chip_gen: v7x
topology: tpu7x:2x2x1
jax: 0.10.0
libtpu: 0.0.40
codegen_flags: <defaults>
</compile_context>

<pallas_src>
import functools

import jax
import jax.numpy as jnp
from jax.experimental import pallas as pl
from jax.experimental.pallas import tpu as pltpu


def trunk_kernel(x_ref, w1_ref, b1_ref, w2_ref, b2_ref, w3_ref, b3_ref, o_ref):
    # Fused 3-layer MLP on one tile of rows: Linear -> ReLU -> Linear -> ReLU -> Linear
    x = x_ref[...]                         # (tm, 2)   f32
    w1 = w1_ref[...]                       # (2, 256)  f32

    # Layer 1: K=2 contraction -> VPU broadcast-FMA (avoids a wasted MXU pass
    # with a lane-sparse (tm, 2) operand).
    h1 = x[:, 0:1] * w1[0:1, :] + x[:, 1:2] * w1[1:2, :] + b1_ref[...]
    h1 = jnp.maximum(h1, 0.0)

    # Layer 2: bf16 operands, f32 accumulation on the MXU.
    h2 = jnp.dot(h1.astype(jnp.bfloat16), w2_ref[...],
                 preferred_element_type=jnp.float32) + b2_ref[...]
    h2 = jnp.maximum(h2, 0.0)

    # Layer 3: bf16 operands, f32 accumulation on the MXU.
    y = jnp.dot(h2.astype(jnp.bfloat16), w3_ref[...],
                preferred_element_type=jnp.float32) + b3_ref[...]

    o_ref[...] = y.astype(o_ref.dtype)


def _round_up(x, m):
    return ((x + m - 1) // m) * m


@functools.partial(jax.jit, static_argnames=("tm",))
def trunk_net(coords, params, *, tm=2048):
    """coords: [N, 2] float32; params: dict of transposed weights/biases.

    tm is the row tile (static).  Default 2048 suits v6e/v7x (even multi-step
    'parallel' grids feed both v7x TensorCores once N >= 2*tm); 1024-2048 is
    also the right range for v5e.  For small N the tile auto-shrinks to the
    8-row-rounded batch so no compute/bandwidth is wasted on padding.
    """
    w1, b1 = params["w1"], params["b1"]            # [2,256],   [1,256]  f32
    w2, b2 = params["w2"], params["b2"]            # [256,512], [1,512]
    w3, b3 = params["w3"], params["b3"]            # [512,p],   [1,p]

    # Cast the big weight matrices to bf16 once, outside the kernel, so the
    # resident weight blocks are not re-cast on every grid iteration.
    w2 = w2.astype(jnp.bfloat16)
    w3 = w3.astype(jnp.bfloat16)

    n, d_in = coords.shape
    p = w3.shape[1]

    # Adaptive tiling: small batches become a single exact tile (rounded to
    # the 8-row sublane multiple); large batches use the full tm tile.
    n8 = _round_up(n, 8)
    if n8 <= tm:
        tm_eff = n8
        n_pad = n8
    else:
        tm_eff = tm
        n_pad = _round_up(n, tm_eff)
    if n_pad != n:
        coords = jnp.pad(coords, ((0, n_pad - n), (0, 0)))

    full = lambda shape: pl.BlockSpec(shape, lambda i: (0, 0))

    flops = 2 * n_pad * (2 * 256 + 256 * 512 + 512 * p)
    bytes_accessed = (
        n_pad * d_in * 4                           # coords in
        + n_pad * p * 4                            # output
        + (2 * 256 + 256) * 4                      # w1, b1 (f32)
        + (256 * 512 + 512 * p) * 2                # w2, w3 (bf16)
        + (512 + p) * 4                            # b2, b3 (f32)
    )

    # ~18 MB footprint at tm=2048; request 32 MiB scoped VMEM (covers v5e's
    # 16 MiB default).  Larger tiles (v6e only) get 64 MiB.
    vmem_limit = (32 << 20) if tm_eff <= 2048 else (64 << 20)

    out = pl.pallas_call(
        trunk_kernel,
        out_shape=jax.ShapeDtypeStruct((n_pad, p), coords.dtype),
        grid_spec=pltpu.PrefetchScalarGridSpec(
            num_scalar_prefetch=0,
            grid=(n_pad // tm_eff,),
            in_specs=[
                pl.BlockSpec((tm_eff, d_in), lambda i: (i, 0)),   # coords row-tile
                full(w1.shape), full(b1.shape),
                full(w2.shape), full(b2.shape),
                full(w3.shape), full(b3.shape),
            ],
            out_specs=pl.BlockSpec((tm_eff, p), lambda i: (i, 0)),
        ),
        compiler_params=pltpu.CompilerParams(
            dimension_semantics=("parallel",),
            vmem_limit_bytes=vmem_limit,
        ),
        cost_estimate=pl.CostEstimate(
            flops=flops, transcendentals=0, bytes_accessed=bytes_accessed),
    )(coords, w1, b1, w2, b2, w3, b3)

    # Only slice (an extra HBM pass) when padding was actually needed.
    return out if n_pad == n else out[:n]


def init_params(key, p=256):
    """Deterministic init mimicking PyTorch Linear default (uniform +/- 1/sqrt(fan_in)).
    Weights stored as [in, out] (already transposed for x @ W)."""
    dims = [(2, 256), (256, 512), (512, p)]
    params = {}
    for idx, (fan_in, fan_out) in enumerate(dims, start=1):
        key, kw, kb = jax.random.split(key, 3)
        bound = 1.0 / (fan_in ** 0.5)
        params[f"w{idx}"] = jax.random.uniform(
            kw, (fan_in, fan_out), jnp.float32, -bound, bound)
        params[f"b{idx}"] = jax.random.uniform(
            kb, (1, fan_out), jnp.float32, -bound, bound)
    return params


def trunk_net_ref(coords, params):
    """Pure-JAX reference mirroring the kernel's MXU precision
    (bf16 operands, f32 accumulate on layers 2/3)."""
    h = jnp.maximum(coords @ params["w1"] + params["b1"], 0.0)
    h = jnp.dot(h.astype(jnp.bfloat16), params["w2"].astype(jnp.bfloat16),
                preferred_element_type=jnp.float32) + params["b2"]
    h = jnp.maximum(h, 0.0)
    return jnp.dot(h.astype(jnp.bfloat16), params["w3"].astype(jnp.bfloat16),
                   preferred_element_type=jnp.float32) + params["b3"]


if __name__ == "__main__":
    key = jax.random.PRNGKey(0)
    kp, kx = jax.random.split(key)

    p = 256
    params = init_params(kp, p=p)

    # Small coordinate batch: 600 (x,y) points in [0,1]^2.  With adaptive
    # tiling this maps to a single exact 600-row tile (no padding, no slice).
    coords = jax.random.uniform(kx, (600, 2), jnp.float32)

    out = jax.block_until_ready(trunk_net(coords, params))

    # Compare against a reference using the same bf16-operand / f32-accumulate
    # matmul precision as the kernel (the meaningful check per review).
    ref = trunk_net_ref(coords, params)

    assert out.shape == (600, p), out.shape
    assert jnp.allclose(out, ref, atol=1e-2, rtol=1e-2), \
        "mismatch vs bf16-precision reference"

    print("KERNEL_OK")
</pallas_src>

<mosaic_0001>
module attributes {stable_mosaic.version = 11 : i64} {
  func.func @trunk_kernel(%arg0: i32, %arg1: memref<600x2xf32, #tpu.memory_space<vmem>>, %arg2: memref<2x256xf32, #tpu.memory_space<vmem>>, %arg3: memref<1x256xf32, #tpu.memory_space<vmem>>, %arg4: memref<256x512xbf16, #tpu.memory_space<vmem>>, %arg5: memref<1x512xf32, #tpu.memory_space<vmem>>, %arg6: memref<512x256xbf16, #tpu.memory_space<vmem>>, %arg7: memref<1x256xf32, #tpu.memory_space<vmem>>, %arg8: memref<600x256xf32, #tpu.memory_space<vmem>>) attributes {dimension_semantics = [#tpu.dimension_semantics<parallel>], iteration_bounds = array<i64: 1>, scalar_prefetch = 0 : i64, scratch_operands = 0 : i64, tpu.core_type = #tpu.core_type<tc>, window_params = [{transform_indices = @transform_0, window_bounds = array<i64: 600, 2>}, {pipeline_mode = #tpu.pipeline_mode<synchronous>, transform_indices = @transform_1, window_bounds = array<i64: 2, 256>}, {pipeline_mode = #tpu.pipeline_mode<synchronous>, transform_indices = @transform_2, window_bounds = array<i64: 1, 256>}, {pipeline_mode = #tpu.pipeline_mode<synchronous>, transform_indices = @transform_3, window_bounds = array<i64: 256, 512>}, {pipeline_mode = #tpu.pipeline_mode<synchronous>, transform_indices = @transform_4, window_bounds = array<i64: 1, 512>}, {pipeline_mode = #tpu.pipeline_mode<synchronous>, transform_indices = @transform_5, window_bounds = array<i64: 512, 256>}, {pipeline_mode = #tpu.pipeline_mode<synchronous>, transform_indices = @transform_6, window_bounds = array<i64: 1, 256>}, {transform_indices = @transform_7, window_bounds = array<i64: 600, 256>}]} {
    %c0 = arith.constant 0 : index
    %c0_0 = arith.constant 0 : index
    %0 = vector.load %arg1[%c0, %c0_0] : memref<600x2xf32, #tpu.memory_space<vmem>>, vector<600x2xf32>
    %c0_1 = arith.constant 0 : index
    %c0_2 = arith.constant 0 : index
    %1 = vector.load %arg2[%c0_1, %c0_2] : memref<2x256xf32, #tpu.memory_space<vmem>>, vector<2x256xf32>
    %2 = vector.extract_strided_slice %0 {offsets = [0, 0], sizes = [600, 1], strides = [1, 1]} : vector<600x2xf32> to vector<600x1xf32>
    %3 = vector.extract_strided_slice %1 {offsets = [0, 0], sizes = [1, 256], strides = [1, 1]} : vector<2x256xf32> to vector<1x256xf32>
    %4 = vector.broadcast %2 : vector<600x1xf32> to vector<600x256xf32>
    %5 = vector.broadcast %3 : vector<1x256xf32> to vector<600x256xf32>
    %6 = arith.mulf %4, %5 : vector<600x256xf32>
    %7 = vector.extract_strided_slice %0 {offsets = [0, 1], sizes = [600, 1], strides = [1, 1]} : vector<600x2xf32> to vector<600x1xf32>
    %8 = vector.extract_strided_slice %1 {offsets = [1, 0], sizes = [1, 256], strides = [1, 1]} : vector<2x256xf32> to vector<1x256xf32>
    %9 = vector.broadcast %7 : vector<600x1xf32> to vector<600x256xf32>
    %10 = vector.broadcast %8 : vector<1x256xf32> to vector<600x256xf32>
    %11 = arith.mulf %9, %10 : vector<600x256xf32>
    %12 = arith.addf %6, %11 : vector<600x256xf32>
    %c0_3 = arith.constant 0 : index
    %c0_4 = arith.constant 0 : index
    %13 = vector.load %arg3[%c0_3, %c0_4] : memref<1x256xf32, #tpu.memory_space<vmem>>, vector<1x256xf32>
    %14 = vector.broadcast %13 : vector<1x256xf32> to vector<600x256xf32>
    %15 = arith.addf %12, %14 : vector<600x256xf32>
    %cst = arith.constant 0.000000e+00 : f32
    %16 = vector.broadcast %cst : f32 to vector<600x256xf32>
    %17 = arith.maximumf %15, %16 : vector<600x256xf32>
    %18 = arith.truncf %17 : vector<600x256xf32> to vector<600x256xbf16>
    %c0_5 = arith.constant 0 : index
    %c0_6 = arith.constant 0 : index
    %19 = vector.load %arg4[%c0_5, %c0_6] : memref<256x512xbf16, #tpu.memory_space<vmem>>, vector<256x512xbf16>
    %cst_7 = arith.constant dense<0.000000e+00> : vector<600x512xf32>
    %20 = tpu.matmul %18, %19, %cst_7 {dimension_numbers = #tpu.dot_dimension_numbers<[1], [0], [0], [1], [0, 0, 1, 1], [], []>} : vector<600x256xbf16>, vector<256x512xbf16>, vector<600x512xf32> -> vector<600x512xf32>
    %c0_8 = arith.constant 0 : index
    %c0_9 = arith.constant 0 : index
    %21 = vector.load %arg5[%c0_8, %c0_9] : memref<1x512xf32, #tpu.memory_space<vmem>>, vector<1x512xf32>
    %22 = vector.broadcast %21 : vector<1x512xf32> to vector<600x512xf32>
    %23 = arith.addf %20, %22 : vector<600x512xf32>
    %cst_10 = arith.constant 0.000000e+00 : f32
    %24 = vector.broadcast %cst_10 : f32 to vector<600x512xf32>
    %25 = arith.maximumf %23, %24 : vector<600x512xf32>
    %26 = arith.truncf %25 : vector<600x512xf32> to vector<600x512xbf16>
    %c0_11 = arith.constant 0 : index
    %c0_12 = arith.constant 0 : index
    %27 = vector.load %arg6[%c0_11, %c0_12] : memref<512x256xbf16, #tpu.memory_space<vmem>>, vector<512x256xbf16>
    %cst_13 = arith.constant dense<0.000000e+00> : vector<600x256xf32>
    %28 = tpu.matmul %26, %27, %cst_13 {dimension_numbers = #tpu.dot_dimension_numbers<[1], [0], [0], [1], [0, 0, 1, 1], [], []>} : vector<600x512xbf16>, vector<512x256xbf16>, vector<600x256xf32> -> vector<600x256xf32>
    %c0_14 = arith.constant 0 : index
    %c0_15 = arith.constant 0 : index
    %29 = vector.load %arg7[%c0_14, %c0_15] : memref<1x256xf32, #tpu.memory_space<vmem>>, vector<1x256xf32>
    %30 = vector.broadcast %29 : vector<1x256xf32> to vector<600x256xf32>
    %31 = arith.addf %28, %30 : vector<600x256xf32>
    %c0_16 = arith.constant 0 : index
    %c0_17 = arith.constant 0 : index
    %32 = vector.load %arg8[%c0_16, %c0_17] : memref<600x256xf32, #tpu.memory_space<vmem>>, vector<600x256xf32>
    tpu.vector_store %arg8[%c0_16, %c0_17], %31 {strides = array<i32>} : memref<600x256xf32, #tpu.memory_space<vmem>>, vector<600x256xf32>,
    return
  }
  func.func @transform_0(%arg0: i32) -> (i32, i32) {
    %c0_i32 = arith.constant 0 : i32
    %c0_i32_0 = arith.constant 0 : i32
    return %arg0, %c0_i32 : i32, i32
  }
  func.func @transform_1(%arg0: i32) -> (i32, i32) {
    %c0_i32 = arith.constant 0 : i32
    %c0_i32_0 = arith.constant 0 : i32
    %c0_i32_1 = arith.constant 0 : i32
    return %c0_i32, %c0_i32_0 : i32, i32
  }
  func.func @transform_2(%arg0: i32) -> (i32, i32) {
    %c0_i32 = arith.constant 0 : i32
    %c0_i32_0 = arith.constant 0 : i32
    %c0_i32_1 = arith.constant 0 : i32
    return %c0_i32, %c0_i32_0 : i32, i32
  }
  func.func @transform_3(%arg0: i32) -> (i32, i32) {
    %c0_i32 = arith.constant 0 : i32
    %c0_i32_0 = arith.constant 0 : i32
    %c0_i32_1 = arith.constant 0 : i32
    return %c0_i32, %c0_i32_0 : i32, i32
  }
  func.func @transform_4(%arg0: i32) -> (i32, i32) {
    %c0_i32 = arith.constant 0 : i32
    %c0_i32_0 = arith.constant 0 : i32
    %c0_i32_1 = arith.constant 0 : i32
    return %c0_i32, %c0_i32_0 : i32, i32
  }
  func.func @transform_5(%arg0: i32) -> (i32, i32) {
    %c0_i32 = arith.constant 0 : i32
    %c0_i32_0 = arith.constant 0 : i32
    %c0_i32_1 = arith.constant 0 : i32
    return %c0_i32, %c0_i32_0 : i32, i32
  }
  func.func @transform_6(%arg0: i32) -> (i32, i32) {
    %c0_i32 = arith.constant 0 : i32
    %c0_i32_0 = arith.constant 0 : i32
    %c0_i32_1 = arith.constant 0 : i32
    return %c0_i32, %c0_i32_0 : i32, i32
  }
  func.func @transform_7(%arg0: i32) -> (i32, i32) {
    %c0_i32 = arith.constant 0 : i32
    %c0_i32_0 = arith.constant 0 : i32
    return %arg0, %c0_i32 : i32, i32
  }
}

</mosaic_0001>

<llo_original>
// kernel: trunk_net.1
$region0: #{trunk_net.1}
  #allocation0 [shape = 'u32[]', space=smem, size = 0x4, offset = 0x4, fixed_abs, tag = 'smem constant byte address 0x4 - core index']
  #allocation1 [shape = 'u32[144,128]{1,0:T(1,128)}', space=vmem, size = 0x12000, scoped, tag = 'internal scratch']
  %s0 = inlined_call_operand.vmem [shape: f32[600,2], index: 0, kind: input, shape index: {}]
  %s1 = inlined_call_operand.vmem [shape: f32[2,256], index: 1, kind: input, shape index: {}]
  %s2 = inlined_call_operand.vmem [shape: f32[1,256], index: 2, kind: input, shape index: {}]
  %s3 = inlined_call_operand.vmem [shape: bf16[256,512], index: 3, kind: input, shape index: {}]
  %s4 = inlined_call_operand.vmem [shape: f32[1,512], index: 4, kind: input, shape index: {}]
  %s5 = inlined_call_operand.vmem [shape: bf16[512,256], index: 5, kind: input, shape index: {}]
  %s6 = inlined_call_operand.vmem [shape: f32[1,256], index: 6, kind: input, shape index: {}]
  %s7 = inlined_call_operand.hbm [shape: f32[600,256], index: 7, kind: output, shape index: {}]
  %s8 = sld [smem:[#allocation0]]
  $region38: #{trunk_net.1} parent=0
    _
  %s10 = ssub.s32 1, %s8
  %s11 = scalar_select 0, %s10, %s8
  $region1: #{trunk_net.1} parent=0
    #allocation2 [shape = 'u8[614400]{0}', space=vmem, size = 0x96000, scoped, tag = 'output window, operand 0, single buffered']
    #allocation3 [shape = 's32[1]{0}', space=sflag, size = 0x4, scoped, tag = 'scoped memory for trunk_net.1']
    %12 = vsyncpa [#allocation3], 0
    // Predicated region
    $region2: #{trunk_net.1} parent=1 // pred_check
      _
    $region3: #{trunk_net.1} parent=1 // pred_check_branch
      %14 = sbr.rel (0) target = $region5
    $region4: #{trunk_net.1} parent=1 // pred_region
      _
    $region5: #{trunk_net.1} parent=1 // pred_fallthru
      _
    // Predicated region
    $region6: #{trunk_net.1} parent=1 // pred_check
      _
    $region7: #{trunk_net.1} parent=1 // pred_check_branch
      %16 = sbr.rel (0) target = $region9
    $region8: #{trunk_net.1} parent=1 // pred_region
      _
    $region9: #{trunk_net.1} parent=1 // pred_fallthru
      _
    // Predicated region
    $region10: #{trunk_net.1} parent=1 // pred_check
      _
    $region11: #{trunk_net.1} parent=1 // pred_check_branch
      %18 = sbr.rel (0) target = $region13
    $region12: #{trunk_net.1} parent=1 // pred_region
      _
    $region13: #{trunk_net.1} parent=1 // pred_fallthru
      _
    // Predicated region
    $region14: #{trunk_net.1} parent=1 // pred_check
      _
    $region15: #{trunk_net.1} parent=1 // pred_check_branch
      %20 = sbr.rel (0) target = $region17
    $region16: #{trunk_net.1} parent=1 // pred_region
      _
    $region17: #{trunk_net.1} parent=1 // pred_fallthru
      _
    // Predicated region
    $region18: #{trunk_net.1} parent=1 // pred_check
      _
    $region19: #{trunk_net.1} parent=1 // pred_check_branch
      %22 = sbr.rel (0) target = $region21
    $region20: #{trunk_net.1} parent=1 // pred_region
      _
    $region21: #{trunk_net.1} parent=1 // pred_fallthru
      _
    // Predicated region
    $region22: #{trunk_net.1} parent=1 // pred_check
      _
    $region23: #{trunk_net.1} parent=1 // pred_check_branch
      %24 = sbr.rel (0) target = $region25
    $region24: #{trunk_net.1} parent=1 // pred_region
      _
    $region25: #{trunk_net.1} parent=1 // pred_fallthru
      _
    // Predicated region
    $region26: #{trunk_net.1} parent=1 // pred_check
      _
    $region27: #{trunk_net.1} parent=1 // pred_check_branch
      %26 = sbr.rel (0) target = $region29
    $region28: #{trunk_net.1} parent=1 // pred_region
      _
    $region29: #{trunk_net.1} parent=1 // pred_fallthru
      _
    %v27 = vld [vmem:[%s0] sm:$0xff]
    %v28 = vld [vmem:[%s0 + $0x8] sm:$0xff]
    %v29 = vld [vmem:[%s0 + $0x10] sm:$0xff]
    %v30 = vld [vmem:[%s0 + $0x18] sm:$0xff]
    %v31 = vld [vmem:[%s0 + $0x20] sm:$0xff]
    %v32 = vld [vmem:[%s0 + $0x28] sm:$0xff]
    %v33 = vld [vmem:[%s0 + $0x30] sm:$0xff]
    %v34 = vld [vmem:[%s0 + $0x38] sm:$0xff]
    %v35 = vld [vmem:[%s0 + $0x40] sm:$0xff]
    %v36 = vld [vmem:[%s0 + $0x48] sm:$0xff]
    %v37 = vld [vmem:[%s0 + $0x50] sm:$0xff]
    %v38 = vld [vmem:[%s0 + $0x58] sm:$0xff]
    %v39 = vld [vmem:[%s0 + $0x60] sm:$0xff]
    %v40 = vld [vmem:[%s0 + $0x68] sm:$0xff]
    %v41 = vld [vmem:[%s0 + $0x70] sm:$0xff]
    %v42 = vld [vmem:[%s0 + $0x78] sm:$0xff]
    %v43 = vld [vmem:[%s0 + $0x80] sm:$0xff]
    %v44 = vld [vmem:[%s0 + $0x88] sm:$0xff]
    %v45 = vld [vmem:[%s0 + $0x90] sm:$0xff]
    %v46 = vld [vmem:[%s0 + $0x98] sm:$0xff]
    %v47 = vld [vmem:[%s0 + $0xa0] sm:$0xff]
    %v48 = vld [vmem:[%s0 + $0xa8] sm:$0xff]
    %v49 = vld [vmem:[%s0 + $0xb0] sm:$0xff]
    %v50 = vld [vmem:[%s0 + $0xb8] sm:$0xff]
    %v51 = vld [vmem:[%s0 + $0xc0] sm:$0xff]
    %v52 = vld [vmem:[%s0 + $0xc8] sm:$0xff]
    %v53 = vld [vmem:[%s0 + $0xd0] sm:$0xff]
    %v54 = vld [vmem:[%s0 + $0xd8] sm:$0xff]
    %v55 = vld [vmem:[%s0 + $0xe0] sm:$0xff]
    %v56 = vld [vmem:[%s0 + $0xe8] sm:$0xff]
    %v57 = vld [vmem:[%s0 + $0xf0] sm:$0xff]
    %v58 = vld [vmem:[%s0 + $0xf8] sm:$0xff]
    %v59 = vld [vmem:[%s0 + $0x100] sm:$0xff]
    %v60 = vld [vmem:[%s0 + $0x108] sm:$0xff]
    %v61 = vld [vmem:[%s0 + $0x110] sm:$0xff]
    %v62 = vld [vmem:[%s0 + $0x118] sm:$0xff]
    %v63 = vld [vmem:[%s0 + $0x120] sm:$0xff]
    %v64 = vld [vmem:[%s0 + $0x128] sm:$0xff]
    %v65 = vld [vmem:[%s0 + $0x130] sm:$0xff]
    %v66 = vld [vmem:[%s0 + $0x138] sm:$0xff]
    %v67 = vld [vmem:[%s0 + $0x140] sm:$0xff]
    %v68 = vld [vmem:[%s0 + $0x148] sm:$0xff]
    %v69 = vld [vmem:[%s0 + $0x150] sm:$0xff]
    %v70 = vld [vmem:[%s0 + $0x158] sm:$0xff]
    %v71 = vld [vmem:[%s0 + $0x160] sm:$0xff]
    %v72 = vld [vmem:[%s0 + $0x168] sm:$0xff]
    %v73 = vld [vmem:[%s0 + $0x170] sm:$0xff]
    %v74 = vld [vmem:[%s0 + $0x178] sm:$0xff]
    %v75 = vld [vmem:[%s0 + $0x180] sm:$0xff]
    %v76 = vld [vmem:[%s0 + $0x188] sm:$0xff]
    %v77 = vld [vmem:[%s0 + $0x190] sm:$0xff]
    %v78 = vld [vmem:[%s0 + $0x198] sm:$0xff]
    %v79 = vld [vmem:[%s0 + $0x1a0] sm:$0xff]
    %v80 = vld [vmem:[%s0 + $0x1a8] sm:$0xff]
    %v81 = vld [vmem:[%s0 + $0x1b0] sm:$0xff]
    %v82 = vld [vmem:[%s0 + $0x1b8] sm:$0xff]
    %v83 = vld [vmem:[%s0 + $0x1c0] sm:$0xff]
    %v84 = vld [vmem:[%s0 + $0x1c8] sm:$0xff]
    %v85 = vld [vmem:[%s0 + $0x1d0] sm:$0xff]
    %v86 = vld [vmem:[%s0 + $0x1d8] sm:$0xff]
    %v87 = vld [vmem:[%s0 + $0x1e0] sm:$0xff]
    %v88 = vld [vmem:[%s0 + $0x1e8] sm:$0xff]
    %v89 = vld [vmem:[%s0 + $0x1f0] sm:$0xff]
    %v90 = vld [vmem:[%s0 + $0x1f8] sm:$0xff]
    %v91 = vld [vmem:[%s0 + $0x200] sm:$0xff]
    %v92 = vld [vmem:[%s0 + $0x208] sm:$0xff]
    %v93 = vld [vmem:[%s0 + $0x210] sm:$0xff]
    %v94 = vld [vmem:[%s0 + $0x218] sm:$0xff]
    %v95 = vld [vmem:[%s0 + $0x220] sm:$0xff]
    %v96 = vld [vmem:[%s0 + $0x228] sm:$0xff]
    %v97 = vld [vmem:[%s0 + $0x230] sm:$0xff]
    %v98 = vld [vmem:[%s0 + $0x238] sm:$0xff]
    %v99 = vld [vmem:[%s0 + $0x240] sm:$0xff]
    %v100 = vld [vmem:[%s0 + $0x248] sm:$0xff]
    %v101 = vld [vmem:[%s0 + $0x250] sm:$0xff]
    %v102 = vld [vmem:[%s1] sm:$0xf]
    %104 = vset.pattern.permute.xlu0 0
    %105 = vperm.xlu0 %104, %v27
    %v106 = vpop.permute.xlu0 %105
    %109 = vset.pattern.permute.xlu0 0
    %110 = vperm.xlu0 %109, %v28
    %v111 = vpop.permute.xlu0 %110
    %114 = vset.pattern.permute.xlu0 0
    %115 = vperm.xlu0 %114, %v29
    %v116 = vpop.permute.xlu0 %115
    %119 = vset.pattern.permute.xlu0 0
    %120 = vperm.xlu0 %119, %v30
    %v121 = vpop.permute.xlu0 %120
    %124 = vset.pattern.permute.xlu0 0
    %125 = vperm.xlu0 %124, %v31
    %v126 = vpop.permute.xlu0 %125
    %129 = vset.pattern.permute.xlu0 0
    %130 = vperm.xlu0 %129, %v32
    %v131 = vpop.permute.xlu0 %130
    %134 = vset.pattern.permute.xlu0 0
    %135 = vperm.xlu0 %134, %v33
    %v136 = vpop.permute.xlu0 %135
    %139 = vset.pattern.permute.xlu0 0
    %140 = vperm.xlu0 %139, %v34
    %v141 = vpop.permute.xlu0 %140
    %144 = vset.pattern.permute.xlu0 0
    %145 = vperm.xlu0 %144, %v35
    %v146 = vpop.permute.xlu0 %145
    %149 = vset.pattern.permute.xlu0 0
    %150 = vperm.xlu0 %149, %v36
    %v151 = vpop.permute.xlu0 %150
    %154 = vset.pattern.permute.xlu0 0
    %155 = vperm.xlu0 %154, %v37
    %v156 = vpop.permute.xlu0 %155
    %159 = vset.pattern.permute.xlu0 0
    %160 = vperm.xlu0 %159, %v38
    %v161 = vpop.permute.xlu0 %160
    %164 = vset.pattern.permute.xlu0 0
    %165 = vperm.xlu0 %164, %v39
    %v166 = vpop.permute.xlu0 %165
    %169 = vset.pattern.permute.xlu0 0
    %170 = vperm.xlu0 %169, %v40
    %v171 = vpop.permute.xlu0 %170
    %174 = vset.pattern.permute.xlu0 0
    %175 = vperm.xlu0 %174, %v41
    %v176 = vpop.permute.xlu0 %175
    %179 = vset.pattern.permute.xlu0 0
    %180 = vperm.xlu0 %179, %v42
    %v181 = vpop.permute.xlu0 %180
    %184 = vset.pattern.permute.xlu0 0
    %185 = vperm.xlu0 %184, %v43
    %v186 = vpop.permute.xlu0 %185
    %189 = vset.pattern.permute.xlu0 0
    %190 = vperm.xlu0 %189, %v44
    %v191 = vpop.permute.xlu0 %190
    %194 = vset.pattern.permute.xlu0 0
    %195 = vperm.xlu0 %194, %v45
    %v196 = vpop.permute.xlu0 %195
    %199 = vset.pattern.permute.xlu0 0
    %200 = vperm.xlu0 %199, %v46
    %v201 = vpop.permute.xlu0 %200
    %204 = vset.pattern.permute.xlu0 0
    %205 = vperm.xlu0 %204, %v47
    %v206 = vpop.permute.xlu0 %205
    %209 = vset.pattern.permute.xlu0 0
    %210 = vperm.xlu0 %209, %v48
    %v211 = vpop.permute.xlu0 %210
    %214 = vset.pattern.permute.xlu0 0
    %215 = vperm.xlu0 %214, %v49
    %v216 = vpop.permute.xlu0 %215
    %219 = vset.pattern.permute.xlu0 0
    %220 = vperm.xlu0 %219, %v50
    %v221 = vpop.permute.xlu0 %220
    %224 = vset.pattern.permute.xlu0 0
    %225 = vperm.xlu0 %224, %v51
    %v226 = vpop.permute.xlu0 %225
    %229 = vset.pattern.permute.xlu0 0
    %230 = vperm.xlu0 %229, %v52
    %v231 = vpop.permute.xlu0 %230
    %234 = vset.pattern.permute.xlu0 0
    %235 = vperm.xlu0 %234, %v53
    %v236 = vpop.permute.xlu0 %235
    %239 = vset.pattern.permute.xlu0 0
    %240 = vperm.xlu0 %239, %v54
    %v241 = vpop.permute.xlu0 %240
    %244 = vset.pattern.permute.xlu0 0
    %245 = vperm.xlu0 %244, %v55
    %v246 = vpop.permute.xlu0 %245
    %249 = vset.pattern.permute.xlu0 0
    %250 = vperm.xlu0 %249, %v56
    %v251 = vpop.permute.xlu0 %250
    %254 = vset.pattern.permute.xlu0 0
    %255 = vperm.xlu0 %254, %v57
    %v256 = vpop.permute.xlu0 %255
    %259 = vset.pattern.permute.xlu0 0
    %260 = vperm.xlu0 %259, %v58
    %v261 = vpop.permute.xlu0 %260
    %264 = vset.pattern.permute.xlu0 0
    %265 = vperm.xlu0 %264, %v59
    %v266 = vpop.permute.xlu0 %265
    %269 = vset.pattern.permute.xlu0 0
    %270 = vperm.xlu0 %269, %v60
    %v271 = vpop.permute.xlu0 %270
    %274 = vset.pattern.permute.xlu0 0
    %275 = vperm.xlu0 %274, %v61
    %v276 = vpop.permute.xlu0 %275
    %279 = vset.pattern.permute.xlu0 0
    %280 = vperm.xlu0 %279, %v62
    %v281 = vpop.permute.xlu0 %280
    %284 = vset.pattern.permute.xlu0 0
    %285 = vperm.xlu0 %284, %v63
    %v286 = vpop.permute.xlu0 %285
    %289 = vset.pattern.permute.xlu0 0
    %290 = vperm.xlu0 %289, %v64
    %v291 = vpop.permute.xlu0 %290
    %294 = vset.pattern.permute.xlu0 0
    %295 = vperm.xlu0 %294, %v65
    %v296 = vpop.permute.xlu0 %295
    %299 = vset.pattern.permute.xlu0 0
    %300 = vperm.xlu0 %299, %v66
    %v301 = vpop.permute.xlu0 %300
    %304 = vset.pattern.permute.xlu0 0
    %305 = vperm.xlu0 %304, %v67
    %v306 = vpop.permute.xlu0 %305
    %309 = vset.pattern.permute.xlu0 0
    %310 = vperm.xlu0 %309, %v68
    %v311 = vpop.permute.xlu0 %310
    %314 = vset.pattern.permute.xlu0 0
    %315 = vperm.xlu0 %314, %v69
    %v316 = vpop.permute.xlu0 %315
    %319 = vset.pattern.permute.xlu0 0
    %320 = vperm.xlu0 %319, %v70
    %v321 = vpop.permute.xlu0 %320
    %324 = vset.pattern.permute.xlu0 0
    %325 = vperm.xlu0 %324, %v71
    %v326 = vpop.permute.xlu0 %325
    %329 = vset.pattern.permute.xlu0 0
    %330 = vperm.xlu0 %329, %v72
    %v331 = vpop.permute.xlu0 %330
    %334 = vset.pattern.permute.xlu0 0
    %335 = vperm.xlu0 %334, %v73
    %v336 = vpop.permute.xlu0 %335
    %339 = vset.pattern.permute.xlu0 0
    %340 = vperm.xlu0 %339, %v74
    %v341 = vpop.permute.xlu0 %340
    %344 = vset.pattern.permute.xlu0 0
    %345 = vperm.xlu0 %344, %v75
    %v346 = vpop.permute.xlu0 %345
    %349 = vset.pattern.permute.xlu0 0
    %350 = vperm.xlu0 %349, %v76
    %v351 = vpop.permute.xlu0 %350
    %354 = vset.pattern.permute.xlu0 0
    %355 = vperm.xlu0 %354, %v77
    %v356 = vpop.permute.xlu0 %355
    %359 = vset.pattern.permute.xlu0 0
    %360 = vperm.xlu0 %359, %v78
    %v361 = vpop.permute.xlu0 %360
    %364 = vset.pattern.permute.xlu0 0
    %365 = vperm.xlu0 %364, %v79
    %v366 = vpop.permute.xlu0 %365
    %369 = vset.pattern.permute.xlu0 0
    %370 = vperm.xlu0 %369, %v80
    %v371 = vpop.permute.xlu0 %370
    %374 = vset.pattern.permute.xlu0 0
    %375 = vperm.xlu0 %374, %v81
    %v376 = vpop.permute.xlu0 %375
    %379 = vset.pattern.permute.xlu0 0
    %380 = vperm.xlu0 %379, %v82
    %v381 = vpop.permute.xlu0 %380
    %384 = vset.pattern.permute.xlu0 0
    %385 = vperm.xlu0 %384, %v83
    %v386 = vpop.permute.xlu0 %385
    %389 = vset.pattern.permute.xlu0 0
    %390 = vperm.xlu0 %389, %v84
    %v391 = vpop.permute.xlu0 %390
    %394 = vset.pattern.permute.xlu0 0
    %395 = vperm.xlu0 %394, %v85
    %v396 = vpop.permute.xlu0 %395
    %399 = vset.pattern.permute.xlu0 0
    %400 = vperm.xlu0 %399, %v86
    %v401 = vpop.permute.xlu0 %400
    %404 = vset.pattern.permute.xlu0 0
    %405 = vperm.xlu0 %404, %v87
    %v406 = vpop.permute.xlu0 %405
    %409 = vset.pattern.permute.xlu0 0
    %410 = vperm.xlu0 %409, %v88
    %v411 = vpop.permute.xlu0 %410
    %414 = vset.pattern.permute.xlu0 0
    %415 = vperm.xlu0 %414, %v89
    %v416 = vpop.permute.xlu0 %415
    %419 = vset.pattern.permute.xlu0 0
    %420 = vperm.xlu0 %419, %v90
    %v421 = vpop.permute.xlu0 %420
    %424 = vset.pattern.permute.xlu0 0
    %425 = vperm.xlu0 %424, %v91
    %v426 = vpop.permute.xlu0 %425
    %429 = vset.pattern.permute.xlu0 0
    %430 = vperm.xlu0 %429, %v92
    %v431 = vpop.permute.xlu0 %430
    %434 = vset.pattern.permute.xlu0 0
    %435 = vperm.xlu0 %434, %v93
    %v436 = vpop.permute.xlu0 %435
    %439 = vset.pattern.permute.xlu0 0
    %440 = vperm.xlu0 %439, %v94
    %v441 = vpop.permute.xlu0 %440
    %444 = vset.pattern.permute.xlu0 0
    %445 = vperm.xlu0 %444, %v95
    %v446 = vpop.permute.xlu0 %445
    %449 = vset.pattern.permute.xlu0 0
    %450 = vperm.xlu0 %449, %v96
    %v451 = vpop.permute.xlu0 %450
    %454 = vset.pattern.permute.xlu0 0
    %455 = vperm.xlu0 %454, %v97
    %v456 = vpop.permute.xlu0 %455
    %459 = vset.pattern.permute.xlu0 0
    %460 = vperm.xlu0 %459, %v98
    %v461 = vpop.permute.xlu0 %460
    %464 = vset.pattern.permute.xlu0 0
    %465 = vperm.xlu0 %464, %v99
    %v466 = vpop.permute.xlu0 %465
    %469 = vset.pattern.permute.xlu0 0
    %470 = vperm.xlu0 %469, %v100
    %v471 = vpop.permute.xlu0 %470
    %474 = vset.pattern.permute.xlu0 0
    %475 = vperm.xlu0 %474, %v101
    %v476 = vpop.permute.xlu0 %475
    %v479 = vlaneseq
    %v480 = vshrl.u32 %v479, 7
    %v481 = vsub.s32 0, %v480
    %v482 = vrot.slane %v102, %v481
    %v483 = vlaneseq
    %v484 = vshrl.u32 %v483, 7
    %v485 = vsub.s32 2, %v484
    %v486 = vrot.slane %v102, %v485
    %v489 = vlaneseq
    %v490 = vshrl.u32 %v489, 7
    %v491 = vsub.s32 0, %v490
    %v492 = vrot.slane %v482, %v491
    %v493 = vlaneseq
    %v494 = vshrl.u32 %v493, 7
    %v495 = vsub.s32 0, %v494
    %v496 = vrot.slane %v486, %v495
    %v497 = vmul.f32 %v106, %v492
    %v498 = vmul.f32 %v106, %v496
    %v499 = vmul.f32 %v111, %v492
    %v500 = vmul.f32 %v111, %v496
    %v501 = vmul.f32 %v116, %v492
    %v502 = vmul.f32 %v116, %v496
    %v503 = vmul.f32 %v121, %v492
    %v504 = vmul.f32 %v121, %v496
    %v505 = vmul.f32 %v126, %v492
    %v506 = vmul.f32 %v126, %v496
    %v507 = vmul.f32 %v131, %v492
    %v508 = vmul.f32 %v131, %v496
    %v509 = vmul.f32 %v136, %v492
    %v510 = vmul.f32 %v136, %v496
    %v511 = vmul.f32 %v141, %v492
    %v512 = vmul.f32 %v141, %v496
    %v513 = vmul.f32 %v146, %v492
    %v514 = vmul.f32 %v146, %v496
    %v515 = vmul.f32 %v151, %v492
    %v516 = vmul.f32 %v151, %v496
    %v517 = vmul.f32 %v156, %v492
    %v518 = vmul.f32 %v156, %v496
    %v519 = vmul.f32 %v161, %v492
    %v520 = vmul.f32 %v161, %v496
    %v521 = vmul.f32 %v166, %v492
    %v522 = vmul.f32 %v166, %v496
    %v523 = vmul.f32 %v171, %v492
    %v524 = vmul.f32 %v171, %v496
    %v525 = vmul.f32 %v176, %v492
    %v526 = vmul.f32 %v176, %v496
    %v527 = vmul.f32 %v181, %v492
    %v528 = vmul.f32 %v181, %v496
    %v529 = vmul.f32 %v186, %v492
    %v530 = vmul.f32 %v186, %v496
    %v531 = vmul.f32 %v191, %v492
    %v532 = vmul.f32 %v191, %v496
    %v533 = vmul.f32 %v196, %v492
    %v534 = vmul.f32 %v196, %v496
    %v535 = vmul.f32 %v201, %v492
    %v536 = vmul.f32 %v201, %v496
    %v537 = vmul.f32 %v206, %v492
    %v538 = vmul.f32 %v206, %v496
    %v539 = vmul.f32 %v211, %v492
    %v540 = vmul.f32 %v211, %v496
    %v541 = vmul.f32 %v216, %v492
    %v542 = vmul.f32 %v216, %v496
    %v543 = vmul.f32 %v221, %v492
    %v544 = vmul.f32 %v221, %v496
    %v545 = vmul.f32 %v226, %v492
    %v546 = vmul.f32 %v226, %v496
    %v547 = vmul.f32 %v231, %v492
    %v548 = vmul.f32 %v231, %v496
    %v549 = vmul.f32 %v236, %v492
    %v550 = vmul.f32 %v236, %v496
    %v551 = vmul.f32 %v241, %v492
    %v552 = vmul.f32 %v241, %v496
    %v553 = vmul.f32 %v246, %v492
    %v554 = vmul.f32 %v246, %v496
    %v555 = vmul.f32 %v251, %v492
    %v556 = vmul.f32 %v251, %v496
    %v557 = vmul.f32 %v256, %v492
    %v558 = vmul.f32 %v256, %v496
    %v559 = vmul.f32 %v261, %v492
    %v560 = vmul.f32 %v261, %v496
    %v561 = vmul.f32 %v266, %v492
    %v562 = vmul.f32 %v266, %v496
    %v563 = vmul.f32 %v271, %v492
    %v564 = vmul.f32 %v271, %v496
    %v565 = vmul.f32 %v276, %v492
    %v566 = vmul.f32 %v276, %v496
    %v567 = vmul.f32 %v281, %v492
    %v568 = vmul.f32 %v281, %v496
    %v569 = vmul.f32 %v286, %v492
    %v570 = vmul.f32 %v286, %v496
    %v571 = vmul.f32 %v291, %v492
    %v572 = vmul.f32 %v291, %v496
    %v573 = vmul.f32 %v296, %v492
    %v574 = vmul.f32 %v296, %v496
    %v575 = vmul.f32 %v301, %v492
    %v576 = vmul.f32 %v301, %v496
    %v577 = vmul.f32 %v306, %v492
    %v578 = vmul.f32 %v306, %v496
    %v579 = vmul.f32 %v311, %v492
    %v580 = vmul.f32 %v311, %v496
    %v581 = vmul.f32 %v316, %v492
    %v582 = vmul.f32 %v316, %v496
    %v583 = vmul.f32 %v321, %v492
    %v584 = vmul.f32 %v321, %v496
    %v585 = vmul.f32 %v326, %v492
    %v586 = vmul.f32 %v326, %v496
    %v587 = vmul.f32 %v331, %v492
    %v588 = vmul.f32 %v331, %v496
    %v589 = vmul.f32 %v336, %v492
    %v590 = vmul.f32 %v336, %v496
    %v591 = vmul.f32 %v341, %v492
    %v592 = vmul.f32 %v341, %v496
    %v593 = vmul.f32 %v346, %v492
    %v594 = vmul.f32 %v346, %v496
    %v595 = vmul.f32 %v351, %v492
    %v596 = vmul.f32 %v351, %v496
    %v597 = vmul.f32 %v356, %v492
    %v598 = vmul.f32 %v356, %v496
    %v599 = vmul.f32 %v361, %v492
    %v600 = vmul.f32 %v361, %v496
    %v601 = vmul.f32 %v366, %v492
    %v602 = vmul.f32 %v366, %v496
    %v603 = vmul.f32 %v371, %v492
    %v604 = vmul.f32 %v371, %v496
    %v605 = vmul.f32 %v376, %v492
    %v606 = vmul.f32 %v376, %v496
    %v607 = vmul.f32 %v381, %v492
    %v608 = vmul.f32 %v381, %v496
    %v609 = vmul.f32 %v386, %v492
    %v610 = vmul.f32 %v386, %v496
    %v611 = vmul.f32 %v391, %v492
    %v612 = vmul.f32 %v391, %v496
    %v613 = vmul.f32 %v396, %v492
    %v614 = vmul.f32 %v396, %v496
    %v615 = vmul.f32 %v401, %v492
    %v616 = vmul.f32 %v401, %v496
    %v617 = vmul.f32 %v406, %v492
    %v618 = vmul.f32 %v406, %v496
    %v619 = vmul.f32 %v411, %v492
    %v620 = vmul.f32 %v411, %v496
    %v621 = vmul.f32 %v416, %v492
    %v622 = vmul.f32 %v416, %v496
    %v623 = vmul.f32 %v421, %v492
    %v624 = vmul.f32 %v421, %v496
    %v625 = vmul.f32 %v426, %v492
    %v626 = vmul.f32 %v426, %v496
    %v627 = vmul.f32 %v431, %v492
    %v628 = vmul.f32 %v431, %v496
    %v629 = vmul.f32 %v436, %v492
    %v630 = vmul.f32 %v436, %v496
    %v631 = vmul.f32 %v441, %v492
    %v632 = vmul.f32 %v441, %v496
    %v633 = vmul.f32 %v446, %v492
    %v634 = vmul.f32 %v446, %v496
    %v635 = vmul.f32 %v451, %v492
    %v636 = vmul.f32 %v451, %v496
    %v637 = vmul.f32 %v456, %v492
    %v638 = vmul.f32 %v456, %v496
    %v639 = vmul.f32 %v461, %v492
    %v640 = vmul.f32 %v461, %v496
    %v641 = vmul.f32 %v466, %v492
    %v642 = vmul.f32 %v466, %v496
    %v643 = vmul.f32 %v471, %v492
    %v644 = vmul.f32 %v471, %v496
    %v645 = vmul.f32 %v476, %v492
    %v646 = vmul.f32 %v476, %v496
    %647 = vset.pattern.permute.xlu0 1
    %648 = vperm.xlu0 %647, %v27
    %v649 = vpop.permute.xlu0 %648
    %651 = vset.pattern.permute.xlu0 1
    %652 = vperm.xlu0 %651, %v28
    %v653 = vpop.permute.xlu0 %652
    %655 = vset.pattern.permute.xlu0 1
    %656 = vperm.xlu0 %655, %v29
    %v657 = vpop.permute.xlu0 %656
    %659 = vset.pattern.permute.xlu0 1
    %660 = vperm.xlu0 %659, %v30
    %v661 = vpop.permute.xlu0 %660
    %663 = vset.pattern.permute.xlu0 1
    %664 = vperm.xlu0 %663, %v31
    %v665 = vpop.permute.xlu0 %664
    %667 = vset.pattern.permute.xlu0 1
    %668 = vperm.xlu0 %667, %v32
    %v669 = vpop.permute.xlu0 %668
    %671 = vset.pattern.permute.xlu0 1
    %672 = vperm.xlu0 %671, %v33
    %v673 = vpop.permute.xlu0 %672
    %675 = vset.pattern.permute.xlu0 1
    %676 = vperm.xlu0 %675, %v34
    %v677 = vpop.permute.xlu0 %676
    %679 = vset.pattern.permute.xlu0 1
    %680 = vperm.xlu0 %679, %v35
    %v681 = vpop.permute.xlu0 %680
    %683 = vset.pattern.permute.xlu0 1
    %684 = vperm.xlu0 %683, %v36
    %v685 = vpop.permute.xlu0 %684
    %687 = vset.pattern.permute.xlu0 1
    %688 = vperm.xlu0 %687, %v37
    %v689 = vpop.permute.xlu0 %688
    %691 = vset.pattern.permute.xlu0 1
    %692 = vperm.xlu0 %691, %v38
    %v693 = vpop.permute.xlu0 %692
    %695 = vset.pattern.permute.xlu0 1
    %696 = vperm.xlu0 %695, %v39
    %v697 = vpop.permute.xlu0 %696
    %699 = vset.pattern.permute.xlu0 1
    %700 = vperm.xlu0 %699, %v40
    %v701 = vpop.permute.xlu0 %700
    %703 = vset.pattern.permute.xlu0 1
    %704 = vperm.xlu0 %703, %v41
    %v705 = vpop.permute.xlu0 %704
    %707 = vset.pattern.permute.xlu0 1
    %708 = vperm.xlu0 %707, %v42
    %v709 = vpop.permute.xlu0 %708
    %711 = vset.pattern.permute.xlu0 1
    %712 = vperm.xlu0 %711, %v43
    %v713 = vpop.permute.xlu0 %712
    %715 = vset.pattern.permute.xlu0 1
    %716 = vperm.xlu0 %715, %v44
    %v717 = vpop.permute.xlu0 %716
    %719 = vset.pattern.permute.xlu0 1
    %720 = vperm.xlu0 %719, %v45
    %v721 = vpop.permute.xlu0 %720
    %723 = vset.pattern.permute.xlu0 1
    %724 = vperm.xlu0 %723, %v46
    %v725 = vpop.permute.xlu0 %724
    %727 = vset.pattern.permute.xlu0 1
    %728 = vperm.xlu0 %727, %v47
    %v729 = vpop.permute.xlu0 %728
    %731 = vset.pattern.permute.xlu0 1
    %732 = vperm.xlu0 %731, %v48
    %v733 = vpop.permute.xlu0 %732
    %735 = vset.pattern.permute.xlu0 1
    %736 = vperm.xlu0 %735, %v49
    %v737 = vpop.permute.xlu0 %736
    %739 = vset.pattern.permute.xlu0 1
    %740 = vperm.xlu0 %739, %v50
    %v741 = vpop.permute.xlu0 %740
    %743 = vset.pattern.permute.xlu0 1
    %744 = vperm.xlu0 %743, %v51
    %v745 = vpop.permute.xlu0 %744
    %747 = vset.pattern.permute.xlu0 1
    %748 = vperm.xlu0 %747, %v52
    %v749 = vpop.permute.xlu0 %748
    %751 = vset.pattern.permute.xlu0 1
    %752 = vperm.xlu0 %751, %v53
    %v753 = vpop.permute.xlu0 %752
    %755 = vset.pattern.permute.xlu0 1
    %756 = vperm.xlu0 %755, %v54
    %v757 = vpop.permute.xlu0 %756
    %759 = vset.pattern.permute.xlu0 1
    %760 = vperm.xlu0 %759, %v55
    %v761 = vpop.permute.xlu0 %760
    %763 = vset.pattern.permute.xlu0 1
    %764 = vperm.xlu0 %763, %v56
    %v765 = vpop.permute.xlu0 %764
    %767 = vset.pattern.permute.xlu0 1
    %768 = vperm.xlu0 %767, %v57
    %v769 = vpop.permute.xlu0 %768
    %771 = vset.pattern.permute.xlu0 1
    %772 = vperm.xlu0 %771, %v58
    %v773 = vpop.permute.xlu0 %772
    %775 = vset.pattern.permute.xlu0 1
    %776 = vperm.xlu0 %775, %v59
    %v777 = vpop.permute.xlu0 %776
    %779 = vset.pattern.permute.xlu0 1
    %780 = vperm.xlu0 %779, %v60
    %v781 = vpop.permute.xlu0 %780
    %783 = vset.pattern.permute.xlu0 1
    %784 = vperm.xlu0 %783, %v61
    %v785 = vpop.permute.xlu0 %784
    %787 = vset.pattern.permute.xlu0 1
    %788 = vperm.xlu0 %787, %v62
    %v789 = vpop.permute.xlu0 %788
    %791 = vset.pattern.permute.xlu0 1
    %792 = vperm.xlu0 %791, %v63
    %v793 = vpop.permute.xlu0 %792
    %795 = vset.pattern.permute.xlu0 1
    %796 = vperm.xlu0 %795, %v64
    %v797 = vpop.permute.xlu0 %796
    %799 = vset.pattern.permute.xlu0 1
    %800 = vperm.xlu0 %799, %v65
    %v801 = vpop.permute.xlu0 %800
    %803 = vset.pattern.permute.xlu0 1
    %804 = vperm.xlu0 %803, %v66
    %v805 = vpop.permute.xlu0 %804
    %807 = vset.pattern.permute.xlu0 1
    %808 = vperm.xlu0 %807, %v67
    %v809 = vpop.permute.xlu0 %808
    %811 = vset.pattern.permute.xlu0 1
    %812 = vperm.xlu0 %811, %v68
    %v813 = vpop.permute.xlu0 %812
    %815 = vset.pattern.permute.xlu0 1
    %816 = vperm.xlu0 %815, %v69
    %v817 = vpop.permute.xlu0 %816
    %819 = vset.pattern.permute.xlu0 1
    %820 = vperm.xlu0 %819, %v70
    %v821 = vpop.permute.xlu0 %820
    %823 = vset.pattern.permute.xlu0 1
    %824 = vperm.xlu0 %823, %v71
    %v825 = vpop.permute.xlu0 %824
    %827 = vset.pattern.permute.xlu0 1
    %828 = vperm.xlu0 %827, %v72
    %v829 = vpop.permute.xlu0 %828
    %831 = vset.pattern.permute.xlu0 1
    %832 = vperm.xlu0 %831, %v73
    %v833 = vpop.permute.xlu0 %832
    %835 = vset.pattern.permute.xlu0 1
    %836 = vperm.xlu0 %835, %v74
    %v837 = vpop.permute.xlu0 %836
    %839 = vset.pattern.permute.xlu0 1
    %840 = vperm.xlu0 %839, %v75
    %v841 = vpop.permute.xlu0 %840
    %843 = vset.pattern.permute.xlu0 1
    %844 = vperm.xlu0 %843, %v76
    %v845 = vpop.permute.xlu0 %844
    %847 = vset.pattern.permute.xlu0 1
    %848 = vperm.xlu0 %847, %v77
    %v849 = vpop.permute.xlu0 %848
    %851 = vset.pattern.permute.xlu0 1
    %852 = vperm.xlu0 %851, %v78
    %v853 = vpop.permute.xlu0 %852
    %855 = vset.pattern.permute.xlu0 1
    %856 = vperm.xlu0 %855, %v79
    %v857 = vpop.permute.xlu0 %856
    %859 = vset.pattern.permute.xlu0 1
    %860 = vperm.xlu0 %859, %v80
    %v861 = vpop.permute.xlu0 %860
    %863 = vset.pattern.permute.xlu0 1
    %864 = vperm.xlu0 %863, %v81
    %v865 = vpop.permute.xlu0 %864
    %867 = vset.pattern.permute.xlu0 1
    %868 = vperm.xlu0 %867, %v82
    %v869 = vpop.permute.xlu0 %868
    %871 = vset.pattern.permute.xlu0 1
    %872 = vperm.xlu0 %871, %v83
    %v873 = vpop.permute.xlu0 %872
    %875 = vset.pattern.permute.xlu0 1
    %876 = vperm.xlu0 %875, %v84
    %v877 = vpop.permute.xlu0 %876
    %879 = vset.pattern.permute.xlu0 1
    %880 = vperm.xlu0 %879, %v85
    %v881 = vpop.permute.xlu0 %880
    %883 = vset.pattern.permute.xlu0 1
    %884 = vperm.xlu0 %883, %v86
    %v885 = vpop.permute.xlu0 %884
    %887 = vset.pattern.permute.xlu0 1
    %888 = vperm.xlu0 %887, %v87
    %v889 = vpop.permute.xlu0 %888
    %891 = vset.pattern.permute.xlu0 1
    %892 = vperm.xlu0 %891, %v88
    %v893 = vpop.permute.xlu0 %892
    %895 = vset.pattern.permute.xlu0 1
    %896 = vperm.xlu0 %895, %v89
    %v897 = vpop.permute.xlu0 %896
    %899 = vset.pattern.permute.xlu0 1
    %900 = vperm.xlu0 %899, %v90
    %v901 = vpop.permute.xlu0 %900
    %903 = vset.pattern.permute.xlu0 1
    %904 = vperm.xlu0 %903, %v91
    %v905 = vpop.permute.xlu0 %904
    %907 = vset.pattern.permute.xlu0 1
    %908 = vperm.xlu0 %907, %v92
    %v909 = vpop.permute.xlu0 %908
    %911 = vset.pattern.permute.xlu0 1
    %912 = vperm.xlu0 %911, %v93
    %v913 = vpop.permute.xlu0 %912
    %915 = vset.pattern.permute.xlu0 1
    %916 = vperm.xlu0 %915, %v94
    %v917 = vpop.permute.xlu0 %916
    %919 = vset.pattern.permute.xlu0 1
    %920 = vperm.xlu0 %919, %v95
    %v921 = vpop.permute.xlu0 %920
    %923 = vset.pattern.permute.xlu0 1
    %924 = vperm.xlu0 %923, %v96
    %v925 = vpop.permute.xlu0 %924
    %927 = vset.pattern.permute.xlu0 1
    %928 = vperm.xlu0 %927, %v97
    %v929 = vpop.permute.xlu0 %928
    %931 = vset.pattern.permute.xlu0 1
    %932 = vperm.xlu0 %931, %v98
    %v933 = vpop.permute.xlu0 %932
    %935 = vset.pattern.permute.xlu0 1
    %936 = vperm.xlu0 %935, %v99
    %v937 = vpop.permute.xlu0 %936
    %939 = vset.pattern.permute.xlu0 1
    %940 = vperm.xlu0 %939, %v100
    %v941 = vpop.permute.xlu0 %940
    %943 = vset.pattern.permute.xlu0 1
    %944 = vperm.xlu0 %943, %v101
    %v945 = vpop.permute.xlu0 %944
    %v947 = vlaneseq
    %v948 = vshrl.u32 %v947, 7
    %v949 = vsub.s32 1, %v948
    %v950 = vrot.slane %v102, %v949
    %v951 = vlaneseq
    %v952 = vshrl.u32 %v951, 7
    %v953 = vsub.s32 3, %v952
    %v954 = vrot.slane %v102, %v953
    %v957 = vlaneseq
    %v958 = vshrl.u32 %v957, 7
    %v959 = vsub.s32 1, %v958
    %v960 = vrot.slane %v950, %v959
    %v961 = vlaneseq
    %v962 = vshrl.u32 %v961, 7
    %v963 = vsub.s32 1, %v962
    %v964 = vrot.slane %v954, %v963
    %v965 = vmul.f32 %v649, %v960
    %v966 = vmul.f32 %v649, %v964
    %v967 = vmul.f32 %v653, %v960
    %v968 = vmul.f32 %v653, %v964
    %v969 = vmul.f32 %v657, %v960
    %v970 = vmul.f32 %v657, %v964
    %v971 = vmul.f32 %v661, %v960
    %v972 = vmul.f32 %v661, %v964
    %v973 = vmul.f32 %v665, %v960
    %v974 = vmul.f32 %v665, %v964
    %v975 = vmul.f32 %v669, %v960
    %v976 = vmul.f32 %v669, %v964
    %v977 = vmul.f32 %v673, %v960
    %v978 = vmul.f32 %v673, %v964
    %v979 = vmul.f32 %v677, %v960
    %v980 = vmul.f32 %v677, %v964
    %v981 = vmul.f32 %v681, %v960
    %v982 = vmul.f32 %v681, %v964
    %v983 = vmul.f32 %v685, %v960
    %v984 = vmul.f32 %v685, %v964
    %v985 = vmul.f32 %v689, %v960
    %v986 = vmul.f32 %v689, %v964
    %v987 = vmul.f32 %v693, %v960
    %v988 = vmul.f32 %v693, %v964
    %v989 = vmul.f32 %v697, %v960
    %v990 = vmul.f32 %v697, %v964
    %v991 = vmul.f32 %v701, %v960
    %v992 = vmul.f32 %v701, %v964
    %v993 = vmul.f32 %v705, %v960
    %v994 = vmul.f32 %v705, %v964
    %v995 = vmul.f32 %v709, %v960
    %v996 = vmul.f32 %v709, %v964
    %v997 = vmul.f32 %v713, %v960
    %v998 = vmul.f32 %v713, %v964
    %v999 = vmul.f32 %v717, %v960
    %v1000 = vmul.f32 %v717, %v964
    %v1001 = vmul.f32 %v721, %v960
    %v1002 = vmul.f32 %v721, %v964
    %v1003 = vmul.f32 %v725, %v960
    %v1004 = vmul.f32 %v725, %v964
    %v1005 = vmul.f32 %v729, %v960
    %v1006 = vmul.f32 %v729, %v964
    %v1007 = vmul.f32 %v733, %v960
    %v1008 = vmul.f32 %v733, %v964
    %v1009 = vmul.f32 %v737, %v960
    %v1010 = vmul.f32 %v737, %v964
    %v1011 = vmul.f32 %v741, %v960
    %v1012 = vmul.f32 %v741, %v964
    %v1013 = vmul.f32 %v745, %v960
    %v1014 = vmul.f32 %v745, %v964
    %v1015 = vmul.f32 %v749, %v960
    %v1016 = vmul.f32 %v749, %v964
    %v1017 = vmul.f32 %v753, %v960
    %v1018 = vmul.f32 %v753, %v964
    %v1019 = vmul.f32 %v757, %v960
    %v1020 = vmul.f32 %v757, %v964
    %v1021 = vmul.f32 %v761, %v960
    %v1022 = vmul.f32 %v761, %v964
    %v1023 = vmul.f32 %v765, %v960
    %v1024 = vmul.f32 %v765, %v964
    %v1025 = vmul.f32 %v769, %v960
    %v1026 = vmul.f32 %v769, %v964
    %v1027 = vmul.f32 %v773, %v960
    %v1028 = vmul.f32 %v773, %v964
    %v1029 = vmul.f32 %v777, %v960
    %v1030 = vmul.f32 %v777, %v964
    %v1031 = vmul.f32 %v781, %v960
    %v1032 = vmul.f32 %v781, %v964
    %v1033 = vmul.f32 %v785, %v960
    %v1034 = vmul.f32 %v785, %v964
    %v1035 = vmul.f32 %v789, %v960
    %v1036 = vmul.f32 %v789, %v964
    %v1037 = vmul.f32 %v793, %v960
    %v1038 = vmul.f32 %v793, %v964
    %v1039 = vmul.f32 %v797, %v960
    %v1040 = vmul.f32 %v797, %v964
    %v1041 = vmul.f32 %v801, %v960
    %v1042 = vmul.f32 %v801, %v964
    %v1043 = vmul.f32 %v805, %v960
    %v1044 = vmul.f32 %v805, %v964
    %v1045 = vmul.f32 %v809, %v960
    %v1046 = vmul.f32 %v809, %v964
    %v1047 = vmul.f32 %v813, %v960
    %v1048 = vmul.f32 %v813, %v964
    %v1049 = vmul.f32 %v817, %v960
    %v1050 = vmul.f32 %v817, %v964
    %v1051 = vmul.f32 %v821, %v960
    %v1052 = vmul.f32 %v821, %v964
    %v1053 = vmul.f32 %v825, %v960
    %v1054 = vmul.f32 %v825, %v964
    %v1055 = vmul.f32 %v829, %v960
    %v1056 = vmul.f32 %v829, %v964
    %v1057 = vmul.f32 %v833, %v960
    %v1058 = vmul.f32 %v833, %v964
    %v1059 = vmul.f32 %v837, %v960
    %v1060 = vmul.f32 %v837, %v964
    %v1061 = vmul.f32 %v841, %v960
    %v1062 = vmul.f32 %v841, %v964
    %v1063 = vmul.f32 %v845, %v960
    %v1064 = vmul.f32 %v845, %v964
    %v1065 = vmul.f32 %v849, %v960
    %v1066 = vmul.f32 %v849, %v964
    %v1067 = vmul.f32 %v853, %v960
    %v1068 = vmul.f32 %v853, %v964
    %v1069 = vmul.f32 %v857, %v960
    %v1070 = vmul.f32 %v857, %v964
    %v1071 = vmul.f32 %v861, %v960
    %v1072 = vmul.f32 %v861, %v964
    %v1073 = vmul.f32 %v865, %v960
    %v1074 = vmul.f32 %v865, %v964
    %v1075 = vmul.f32 %v869, %v960
    %v1076 = vmul.f32 %v869, %v964
    %v1077 = vmul.f32 %v873, %v960
    %v1078 = vmul.f32 %v873, %v964
    %v1079 = vmul.f32 %v877, %v960
    %v1080 = vmul.f32 %v877, %v964
    %v1081 = vmul.f32 %v881, %v960
    %v1082 = vmul.f32 %v881, %v964
    %v1083 = vmul.f32 %v885, %v960
    %v1084 = vmul.f32 %v885, %v964
    %v1085 = vmul.f32 %v889, %v960
    %v1086 = vmul.f32 %v889, %v964
    %v1087 = vmul.f32 %v893, %v960
    %v1088 = vmul.f32 %v893, %v964
    %v1089 = vmul.f32 %v897, %v960
    %v1090 = vmul.f32 %v897, %v964
    %v1091 = vmul.f32 %v901, %v960
    %v1092 = vmul.f32 %v901, %v964
    %v1093 = vmul.f32 %v905, %v960
    %v1094 = vmul.f32 %v905, %v964
    %v1095 = vmul.f32 %v909, %v960
    %v1096 = vmul.f32 %v909, %v964
    %v1097 = vmul.f32 %v913, %v960
    %v1098 = vmul.f32 %v913, %v964
    %v1099 = vmul.f32 %v917, %v960
    %v1100 = vmul.f32 %v917, %v964
    %v1101 = vmul.f32 %v921, %v960
    %v1102 = vmul.f32 %v921, %v964
    %v1103 = vmul.f32 %v925, %v960
    %v1104 = vmul.f32 %v925, %v964
    %v1105 = vmul.f32 %v929, %v960
    %v1106 = vmul.f32 %v929, %v964
    %v1107 = vmul.f32 %v933, %v960
    %v1108 = vmul.f32 %v933, %v964
    %v1109 = vmul.f32 %v937, %v960
    %v1110 = vmul.f32 %v937, %v964
    %v1111 = vmul.f32 %v941, %v960
    %v1112 = vmul.f32 %v941, %v964
    %v1113 = vmul.f32 %v945, %v960
    %v1114 = vmul.f32 %v945, %v964
    %v1115 = vadd.f32 %v497, %v965
    %v1116 = vadd.f32 %v498, %v966
    %v1117 = vadd.f32 %v499, %v967
    %v1118 = vadd.f32 %v500, %v968
    %v1119 = vadd.f32 %v501, %v969
    %v1120 = vadd.f32 %v502, %v970
    %v1121 = vadd.f32 %v503, %v971
    %v1122 = vadd.f32 %v504, %v972
    %v1123 = vadd.f32 %v505, %v973
    %v1124 = vadd.f32 %v506, %v974
    %v1125 = vadd.f32 %v507, %v975
    %v1126 = vadd.f32 %v508, %v976
    %v1127 = vadd.f32 %v509, %v977
    %v1128 = vadd.f32 %v510, %v978
    %v1129 = vadd.f32 %v511, %v979
    %v1130 = vadd.f32 %v512, %v980
    %v1131 = vadd.f32 %v513, %v981
    %v1132 = vadd.f32 %v514, %v982
    %v1133 = vadd.f32 %v515, %v983
    %v1134 = vadd.f32 %v516, %v984
    %v1135 = vadd.f32 %v517, %v985
    %v1136 = vadd.f32 %v518, %v986
    %v1137 = vadd.f32 %v519, %v987
    %v1138 = vadd.f32 %v520, %v988
    %v1139 = vadd.f32 %v521, %v989
    %v1140 = vadd.f32 %v522, %v990
    %v1141 = vadd.f32 %v523, %v991
    %v1142 = vadd.f32 %v524, %v992
    %v1143 = vadd.f32 %v525, %v993
    %v1144 = vadd.f32 %v526, %v994
    %v1145 = vadd.f32 %v527, %v995
    %v1146 = vadd.f32 %v528, %v996
    %v1147 = vadd.f32 %v529, %v997
    %v1148 = vadd.f32 %v530, %v998
    %v1149 = vadd.f32 %v531, %v999
    %v1150 = vadd.f32 %v532, %v1000
    %v1151 = vadd.f32 %v533, %v1001
    %v1152 = vadd.f32 %v534, %v1002
    %v1153 = vadd.f32 %v535, %v1003
    %v1154 = vadd.f32 %v536, %v1004
    %v1155 = vadd.f32 %v537, %v1005
    %v1156 = vadd.f32 %v538, %v1006
    %v1157 = vadd.f32 %v539, %v1007
    %v1158 = vadd.f32 %v540, %v1008
    %v1159 = vadd.f32 %v541, %v1009
    %v1160 = vadd.f32 %v542, %v1010
    %v1161 = vadd.f32 %v543, %v1011
    %v1162 = vadd.f32 %v544, %v1012
    %v1163 = vadd.f32 %v545, %v1013
    %v1164 = vadd.f32 %v546, %v1014
    %v1165 = vadd.f32 %v547, %v1015
    %v1166 = vadd.f32 %v548, %v1016
    %v1167 = vadd.f32 %v549, %v1017
    %v1168 = vadd.f32 %v550, %v1018
    %v1169 = vadd.f32 %v551, %v1019
    %v1170 = vadd.f32 %v552, %v1020
    %v1171 = vadd.f32 %v553, %v1021
    %v1172 = vadd.f32 %v554, %v1022
    %v1173 = vadd.f32 %v555, %v1023
    %v1174 = vadd.f32 %v556, %v1024
    %v1175 = vadd.f32 %v557, %v1025
    %v1176 = vadd.f32 %v558, %v1026
    %v1177 = vadd.f32 %v559, %v1027
    %v1178 = vadd.f32 %v560, %v1028
    %v1179 = vadd.f32 %v561, %v1029
    %v1180 = vadd.f32 %v562, %v1030
    %v1181 = vadd.f32 %v563, %v1031
    %v1182 = vadd.f32 %v564, %v1032
    %v1183 = vadd.f32 %v565, %v1033
    %v1184 = vadd.f32 %v566, %v1034
    %v1185 = vadd.f32 %v567, %v1035
    %v1186 = vadd.f32 %v568, %v1036
    %v1187 = vadd.f32 %v569, %v1037
    %v1188 = vadd.f32 %v570, %v1038
    %v1189 = vadd.f32 %v571, %v1039
    %v1190 = vadd.f32 %v572, %v1040
    %v1191 = vadd.f32 %v573, %v1041
    %v1192 = vadd.f32 %v574, %v1042
    %v1193 = vadd.f32 %v575, %v1043
    %v1194 = vadd.f32 %v576, %v1044
    %v1195 = vadd.f32 %v577, %v1045
    %v1196 = vadd.f32 %v578, %v1046
    %v1197 = vadd.f32 %v579, %v1047
    %v1198 = vadd.f32 %v580, %v1048
    %v1199 = vadd.f32 %v581, %v1049
    %v1200 = vadd.f32 %v582, %v1050
    %v1201 = vadd.f32 %v583, %v1051
    %v1202 = vadd.f32 %v584, %v1052
    %v1203 = vadd.f32 %v585, %v1053
    %v1204 = vadd.f32 %v586, %v1054
    %v1205 = vadd.f32 %v587, %v1055
    %v1206 = vadd.f32 %v588, %v1056
    %v1207 = vadd.f32 %v589, %v1057
    %v1208 = vadd.f32 %v590, %v1058
    %v1209 = vadd.f32 %v591, %v1059
    %v1210 = vadd.f32 %v592, %v1060
    %v1211 = vadd.f32 %v593, %v1061
    %v1212 = vadd.f32 %v594, %v1062
    %v1213 = vadd.f32 %v595, %v1063
    %v1214 = vadd.f32 %v596, %v1064
    %v1215 = vadd.f32 %v597, %v1065
    %v1216 = vadd.f32 %v598, %v1066
    %v1217 = vadd.f32 %v599, %v1067
    %v1218 = vadd.f32 %v600, %v1068
    %v1219 = vadd.f32 %v601, %v1069
    %v1220 = vadd.f32 %v602, %v1070
    %v1221 = vadd.f32 %v603, %v1071
    %v1222 = vadd.f32 %v604, %v1072
    %v1223 = vadd.f32 %v605, %v1073
    %v1224 = vadd.f32 %v606, %v1074
    %v1225 = vadd.f32 %v607, %v1075
    %v1226 = vadd.f32 %v608, %v1076
    %v1227 = vadd.f32 %v609, %v1077
    %v1228 = vadd.f32 %v610, %v1078
    %v1229 = vadd.f32 %v611, %v1079
    %v1230 = vadd.f32 %v612, %v1080
    %v1231 = vadd.f32 %v613, %v1081
    %v1232 = vadd.f32 %v614, %v1082
    %v1233 = vadd.f32 %v615, %v1083
    %v1234 = vadd.f32 %v616, %v1084
    %v1235 = vadd.f32 %v617, %v1085
    %v1236 = vadd.f32 %v618, %v1086
    %v1237 = vadd.f32 %v619, %v1087
    %v1238 = vadd.f32 %v620, %v1088
    %v1239 = vadd.f32 %v621, %v1089
    %v1240 = vadd.f32 %v622, %v1090
    %v1241 = vadd.f32 %v623, %v1091
    %v1242 = vadd.f32 %v624, %v1092
    %v1243 = vadd.f32 %v625, %v1093
    %v1244 = vadd.f32 %v626, %v1094
    %v1245 = vadd.f32 %v627, %v1095
    %v1246 = vadd.f32 %v628, %v1096
    %v1247 = vadd.f32 %v629, %v1097
    %v1248 = vadd.f32 %v630, %v1098
    %v1249 = vadd.f32 %v631, %v1099
    %v1250 = vadd.f32 %v632, %v1100
    %v1251 = vadd.f32 %v633, %v1101
    %v1252 = vadd.f32 %v634, %v1102
    %v1253 = vadd.f32 %v635, %v1103
    %v1254 = vadd.f32 %v636, %v1104
    %v1255 = vadd.f32 %v637, %v1105
    %v1256 = vadd.f32 %v638, %v1106
    %v1257 = vadd.f32 %v639, %v1107
    %v1258 = vadd.f32 %v640, %v1108
    %v1259 = vadd.f32 %v641, %v1109
    %v1260 = vadd.f32 %v642, %v1110
    %v1261 = vadd.f32 %v643, %v1111
    %v1262 = vadd.f32 %v644, %v1112
    %v1263 = vadd.f32 %v645, %v1113
    %v1264 = vadd.f32 %v646, %v1114
    %v1265 = vld [vmem:[%s2] sm:$0x3]
    %v1267 = vlaneseq
    %v1268 = vshrl.u32 %v1267, 7
    %v1269 = vsub.s32 0, %v1268
    %v1270 = vrot.slane %v1265, %v1269
    %v1271 = vlaneseq
    %v1272 = vshrl.u32 %v1271, 7
    %v1273 = vsub.s32 1, %v1272
    %v1274 = vrot.slane %v1265, %v1273
    %v1277 = vadd.f32 %v1115, %v1270
    %v1278 = vadd.f32 %v1116, %v1274
    %v1279 = vadd.f32 %v1117, %v1270
    %v1280 = vadd.f32 %v1118, %v1274
    %v1281 = vadd.f32 %v1119, %v1270
    %v1282 = vadd.f32 %v1120, %v1274
    %v1283 = vadd.f32 %v1121, %v1270
    %v1284 = vadd.f32 %v1122, %v1274
    %v1285 = vadd.f32 %v1123, %v1270
    %v1286 = vadd.f32 %v1124, %v1274
    %v1287 = vadd.f32 %v1125, %v1270
    %v1288 = vadd.f32 %v1126, %v1274
    %v1289 = vadd.f32 %v1127, %v1270
    %v1290 = vadd.f32 %v1128, %v1274
    %v1291 = vadd.f32 %v1129, %v1270
    %v1292 = vadd.f32 %v1130, %v1274
    %v1293 = vadd.f32 %v1131, %v1270
    %v1294 = vadd.f32 %v1132, %v1274
    %v1295 = vadd.f32 %v1133, %v1270
    %v1296 = vadd.f32 %v1134, %v1274
    %v1297 = vadd.f32 %v1135, %v1270
    %v1298 = vadd.f32 %v1136, %v1274
    %v1299 = vadd.f32 %v1137, %v1270
    %v1300 = vadd.f32 %v1138, %v1274
    %v1301 = vadd.f32 %v1139, %v1270
    %v1302 = vadd.f32 %v1140, %v1274
    %v1303 = vadd.f32 %v1141, %v1270
    %v1304 = vadd.f32 %v1142, %v1274
    %v1305 = vadd.f32 %v1143, %v1270
    %v1306 = vadd.f32 %v1144, %v1274
    %v1307 = vadd.f32 %v1145, %v1270
    %v1308 = vadd.f32 %v1146, %v1274
    %v1309 = vadd.f32 %v1147, %v1270
    %v1310 = vadd.f32 %v1148, %v1274
    %v1311 = vadd.f32 %v1149, %v1270
    %v1312 = vadd.f32 %v1150, %v1274
    %v1313 = vadd.f32 %v1151, %v1270
    %v1314 = vadd.f32 %v1152, %v1274
    %v1315 = vadd.f32 %v1153, %v1270
    %v1316 = vadd.f32 %v1154, %v1274
    %v1317 = vadd.f32 %v1155, %v1270
    %v1318 = vadd.f32 %v1156, %v1274
    %v1319 = vadd.f32 %v1157, %v1270
    %v1320 = vadd.f32 %v1158, %v1274
    %v1321 = vadd.f32 %v1159, %v1270
    %v1322 = vadd.f32 %v1160, %v1274
    %v1323 = vadd.f32 %v1161, %v1270
    %v1324 = vadd.f32 %v1162, %v1274
    %v1325 = vadd.f32 %v1163, %v1270
    %v1326 = vadd.f32 %v1164, %v1274
    %v1327 = vadd.f32 %v1165, %v1270
    %v1328 = vadd.f32 %v1166, %v1274
    %v1329 = vadd.f32 %v1167, %v1270
    %v1330 = vadd.f32 %v1168, %v1274
    %v1331 = vadd.f32 %v1169, %v1270
    %v1332 = vadd.f32 %v1170, %v1274
    %v1333 = vadd.f32 %v1171, %v1270
    %v1334 = vadd.f32 %v1172, %v1274
    %v1335 = vadd.f32 %v1173, %v1270
    %v1336 = vadd.f32 %v1174, %v1274
    %v1337 = vadd.f32 %v1175, %v1270
    %v1338 = vadd.f32 %v1176, %v1274
    %v1339 = vadd.f32 %v1177, %v1270
    %v1340 = vadd.f32 %v1178, %v1274
    %v1341 = vadd.f32 %v1179, %v1270
    %v1342 = vadd.f32 %v1180, %v1274
    %v1343 = vadd.f32 %v1181, %v1270
    %v1344 = vadd.f32 %v1182, %v1274
    %v1345 = vadd.f32 %v1183, %v1270
    %v1346 = vadd.f32 %v1184, %v1274
    %v1347 = vadd.f32 %v1185, %v1270
    %v1348 = vadd.f32 %v1186, %v1274
    %v1349 = vadd.f32 %v1187, %v1270
    %v1350 = vadd.f32 %v1188, %v1274
    %v1351 = vadd.f32 %v1189, %v1270
    %v1352 = vadd.f32 %v1190, %v1274
    %v1353 = vadd.f32 %v1191, %v1270
    %v1354 = vadd.f32 %v1192, %v1274
    %v1355 = vadd.f32 %v1193, %v1270
    %v1356 = vadd.f32 %v1194, %v1274
    %v1357 = vadd.f32 %v1195, %v1270
    %v1358 = vadd.f32 %v1196, %v1274
    %v1359 = vadd.f32 %v1197, %v1270
    %v1360 = vadd.f32 %v1198, %v1274
    %v1361 = vadd.f32 %v1199, %v1270
    %v1362 = vadd.f32 %v1200, %v1274
    %v1363 = vadd.f32 %v1201, %v1270
    %v1364 = vadd.f32 %v1202, %v1274
    %v1365 = vadd.f32 %v1203, %v1270
    %v1366 = vadd.f32 %v1204, %v1274
    %v1367 = vadd.f32 %v1205, %v1270
    %v1368 = vadd.f32 %v1206, %v1274
    %v1369 = vadd.f32 %v1207, %v1270
    %v1370 = vadd.f32 %v1208, %v1274
    %v1371 = vadd.f32 %v1209, %v1270
    %v1372 = vadd.f32 %v1210, %v1274
    %v1373 = vadd.f32 %v1211, %v1270
    %v1374 = vadd.f32 %v1212, %v1274
    %v1375 = vadd.f32 %v1213, %v1270
    %v1376 = vadd.f32 %v1214, %v1274
    %v1377 = vadd.f32 %v1215, %v1270
    %v1378 = vadd.f32 %v1216, %v1274
    %v1379 = vadd.f32 %v1217, %v1270
    %v1380 = vadd.f32 %v1218, %v1274
    %v1381 = vadd.f32 %v1219, %v1270
    %v1382 = vadd.f32 %v1220, %v1274
    %v1383 = vadd.f32 %v1221, %v1270
    %v1384 = vadd.f32 %v1222, %v1274
    %v1385 = vadd.f32 %v1223, %v1270
    %v1386 = vadd.f32 %v1224, %v1274
    %v1387 = vadd.f32 %v1225, %v1270
    %v1388 = vadd.f32 %v1226, %v1274
    %v1389 = vadd.f32 %v1227, %v1270
    %v1390 = vadd.f32 %v1228, %v1274
    %v1391 = vadd.f32 %v1229, %v1270
    %v1392 = vadd.f32 %v1230, %v1274
    %v1393 = vadd.f32 %v1231, %v1270
    %v1394 = vadd.f32 %v1232, %v1274
    %v1395 = vadd.f32 %v1233, %v1270
    %v1396 = vadd.f32 %v1234, %v1274
    %v1397 = vadd.f32 %v1235, %v1270
    %v1398 = vadd.f32 %v1236, %v1274
    %v1399 = vadd.f32 %v1237, %v1270
    %v1400 = vadd.f32 %v1238, %v1274
    %v1401 = vadd.f32 %v1239, %v1270
    %v1402 = vadd.f32 %v1240, %v1274
    %v1403 = vadd.f32 %v1241, %v1270
    %v1404 = vadd.f32 %v1242, %v1274
    %v1405 = vadd.f32 %v1243, %v1270
    %v1406 = vadd.f32 %v1244, %v1274
    %v1407 = vadd.f32 %v1245, %v1270
    %v1408 = vadd.f32 %v1246, %v1274
    %v1409 = vadd.f32 %v1247, %v1270
    %v1410 = vadd.f32 %v1248, %v1274
    %v1411 = vadd.f32 %v1249, %v1270
    %v1412 = vadd.f32 %v1250, %v1274
    %v1413 = vadd.f32 %v1251, %v1270
    %v1414 = vadd.f32 %v1252, %v1274
    %v1415 = vadd.f32 %v1253, %v1270
    %v1416 = vadd.f32 %v1254, %v1274
    %v1417 = vadd.f32 %v1255, %v1270
    %v1418 = vadd.f32 %v1256, %v1274
    %v1419 = vadd.f32 %v1257, %v1270
    %v1420 = vadd.f32 %v1258, %v1274
    %v1421 = vadd.f32 %v1259, %v1270
    %v1422 = vadd.f32 %v1260, %v1274
    %v1423 = vadd.f32 %v1261, %v1270
    %v1424 = vadd.f32 %v1262, %v1274
    %v1425 = vadd.f32 %v1263, %v1270
    %v1426 = vadd.f32 %v1264, %v1274
    %v1427 = vmax.f32 %v1277, 0.0
    %v1428 = vmax.f32 %v1278, 0.0
    %v1429 = vmax.f32 %v1279, 0.0
    %v1430 = vmax.f32 %v1280, 0.0
    %v1431 = vmax.f32 %v1281, 0.0
    %v1432 = vmax.f32 %v1282, 0.0
    %v1433 = vmax.f32 %v1283, 0.0
    %v1434 = vmax.f32 %v1284, 0.0
    %v1435 = vmax.f32 %v1285, 0.0
    %v1436 = vmax.f32 %v1286, 0.0
    %v1437 = vmax.f32 %v1287, 0.0
    %v1438 = vmax.f32 %v1288, 0.0
    %v1439 = vmax.f32 %v1289, 0.0
    %v1440 = vmax.f32 %v1290, 0.0
    %v1441 = vmax.f32 %v1291, 0.0
    %v1442 = vmax.f32 %v1292, 0.0
    %v1443 = vmax.f32 %v1293, 0.0
    %v1444 = vmax.f32 %v1294, 0.0
    %v1445 = vmax.f32 %v1295, 0.0
    %v1446 = vmax.f32 %v1296, 0.0
    %v1447 = vmax.f32 %v1297, 0.0
    %v1448 = vmax.f32 %v1298, 0.0
    %v1449 = vmax.f32 %v1299, 0.0
    %v1450 = vmax.f32 %v1300, 0.0
    %v1451 = vmax.f32 %v1301, 0.0
    %v1452 = vmax.f32 %v1302, 0.0
    %v1453 = vmax.f32 %v1303, 0.0
    %v1454 = vmax.f32 %v1304, 0.0
    %v1455 = vmax.f32 %v1305, 0.0
    %v1456 = vmax.f32 %v1306, 0.0
    %v1457 = vmax.f32 %v1307, 0.0
    %v1458 = vmax.f32 %v1308, 0.0
    %v1459 = vmax.f32 %v1309, 0.0
    %v1460 = vmax.f32 %v1310, 0.0
    %v1461 = vmax.f32 %v1311, 0.0
    %v1462 = vmax.f32 %v1312, 0.0
    %v1463 = vmax.f32 %v1313, 0.0
    %v1464 = vmax.f32 %v1314, 0.0
    %v1465 = vmax.f32 %v1315, 0.0
    %v1466 = vmax.f32 %v1316, 0.0
    %v1467 = vmax.f32 %v1317, 0.0
    %v1468 = vmax.f32 %v1318, 0.0
    %v1469 = vmax.f32 %v1319, 0.0
    %v1470 = vmax.f32 %v1320, 0.0
    %v1471 = vmax.f32 %v1321, 0.0
    %v1472 = vmax.f32 %v1322, 0.0
    %v1473 = vmax.f32 %v1323, 0.0
    %v1474 = vmax.f32 %v1324, 0.0
    %v1475 = vmax.f32 %v1325, 0.0
    %v1476 = vmax.f32 %v1326, 0.0
    %v1477 = vmax.f32 %v1327, 0.0
    %v1478 = vmax.f32 %v1328, 0.0
    %v1479 = vmax.f32 %v1329, 0.0
    %v1480 = vmax.f32 %v1330, 0.0
    %v1481 = vmax.f32 %v1331, 0.0
    %v1482 = vmax.f32 %v1332, 0.0
    %v1483 = vmax.f32 %v1333, 0.0
    %v1484 = vmax.f32 %v1334, 0.0
    %v1485 = vmax.f32 %v1335, 0.0
    %v1486 = vmax.f32 %v1336, 0.0
    %v1487 = vmax.f32 %v1337, 0.0
    %v1488 = vmax.f32 %v1338, 0.0
    %v1489 = vmax.f32 %v1339, 0.0
    %v1490 = vmax.f32 %v1340, 0.0
    %v1491 = vmax.f32 %v1341, 0.0
    %v1492 = vmax.f32 %v1342, 0.0
    %v1493 = vmax.f32 %v1343, 0.0
    %v1494 = vmax.f32 %v1344, 0.0
    %v1495 = vmax.f32 %v1345, 0.0
    %v1496 = vmax.f32 %v1346, 0.0
    %v1497 = vmax.f32 %v1347, 0.0
    %v1498 = vmax.f32 %v1348, 0.0
    %v1499 = vmax.f32 %v1349, 0.0
    %v1500 = vmax.f32 %v1350, 0.0
    %v1501 = vmax.f32 %v1351, 0.0
    %v1502 = vmax.f32 %v1352, 0.0
    %v1503 = vmax.f32 %v1353, 0.0
    %v1504 = vmax.f32 %v1354, 0.0
    %v1505 = vmax.f32 %v1355, 0.0
    %v1506 = vmax.f32 %v1356, 0.0
    %v1507 = vmax.f32 %v1357, 0.0
    %v1508 = vmax.f32 %v1358, 0.0
    %v1509 = vmax.f32 %v1359, 0.0
    %v1510 = vmax.f32 %v1360, 0.0
    %v1511 = vmax.f32 %v1361, 0.0
    %v1512 = vmax.f32 %v1362, 0.0
    %v1513 = vmax.f32 %v1363, 0.0
    %v1514 = vmax.f32 %v1364, 0.0
    %v1515 = vmax.f32 %v1365, 0.0
    %v1516 = vmax.f32 %v1366, 0.0
    %v1517 = vmax.f32 %v1367, 0.0
    %v1518 = vmax.f32 %v1368, 0.0
    %v1519 = vmax.f32 %v1369, 0.0
    %v1520 = vmax.f32 %v1370, 0.0
    %v1521 = vmax.f32 %v1371, 0.0
    %v1522 = vmax.f32 %v1372, 0.0
    %v1523 = vmax.f32 %v1373, 0.0
    %v1524 = vmax.f32 %v1374, 0.0
    %v1525 = vmax.f32 %v1375, 0.0
    %v1526 = vmax.f32 %v1376, 0.0
    %v1527 = vmax.f32 %v1377, 0.0
    %v1528 = vmax.f32 %v1378, 0.0
    %v1529 = vmax.f32 %v1379, 0.0
    %v1530 = vmax.f32 %v1380, 0.0
    %v1531 = vmax.f32 %v1381, 0.0
    %v1532 = vmax.f32 %v1382, 0.0
    %v1533 = vmax.f32 %v1383, 0.0
    %v1534 = vmax.f32 %v1384, 0.0
    %v1535 = vmax.f32 %v1385, 0.0
    %v1536 = vmax.f32 %v1386, 0.0
    %v1537 = vmax.f32 %v1387, 0.0
    %v1538 = vmax.f32 %v1388, 0.0
    %v1539 = vmax.f32 %v1389, 0.0
    %v1540 = vmax.f32 %v1390, 0.0
    %v1541 = vmax.f32 %v1391, 0.0
    %v1542 = vmax.f32 %v1392, 0.0
    %v1543 = vmax.f32 %v1393, 0.0
    %v1544 = vmax.f32 %v1394, 0.0
    %v1545 = vmax.f32 %v1395, 0.0
    %v1546 = vmax.f32 %v1396, 0.0
    %v1547 = vmax.f32 %v1397, 0.0
    %v1548 = vmax.f32 %v1398, 0.0
    %v1549 = vmax.f32 %v1399, 0.0
    %v1550 = vmax.f32 %v1400, 0.0
    %v1551 = vmax.f32 %v1401, 0.0
    %v1552 = vmax.f32 %v1402, 0.0
    %v1553 = vmax.f32 %v1403, 0.0
    %v1554 = vmax.f32 %v1404, 0.0
    %v1555 = vmax.f32 %v1405, 0.0
    %v1556 = vmax.f32 %v1406, 0.0
    %v1557 = vmax.f32 %v1407, 0.0
    %v1558 = vmax.f32 %v1408, 0.0
    %v1559 = vmax.f32 %v1409, 0.0
    %v1560 = vmax.f32 %v1410, 0.0
    %v1561 = vmax.f32 %v1411, 0.0
    %v1562 = vmax.f32 %v1412, 0.0
    %v1563 = vmax.f32 %v1413, 0.0
    %v1564 = vmax.f32 %v1414, 0.0
    %v1565 = vmax.f32 %v1415, 0.0
    %v1566 = vmax.f32 %v1416, 0.0
    %v1567 = vmax.f32 %v1417, 0.0
    %v1568 = vmax.f32 %v1418, 0.0
    %v1569 = vmax.f32 %v1419, 0.0
    %v1570 = vmax.f32 %v1420, 0.0
    %v1571 = vmax.f32 %v1421, 0.0
    %v1572 = vmax.f32 %v1422, 0.0
    %v1573 = vmax.f32 %v1423, 0.0
    %v1574 = vmax.f32 %v1424, 0.0
    %v1575 = vmax.f32 %v1425, 0.0
    %v1576 = vmax.f32 %v1426, 0.0
    %v1577 = vpack.c.bf16 %v1429, %v1427
    %v1578 = vpack.c.bf16 %v1430, %v1428
    %v1579 = vpack.c.bf16 %v1433, %v1431
    %v1580 = vpack.c.bf16 %v1434, %v1432
    %v1581 = vpack.c.bf16 %v1437, %v1435
    %v1582 = vpack.c.bf16 %v1438, %v1436
    %v1583 = vpack.c.bf16 %v1441, %v1439
    %v1584 = vpack.c.bf16 %v1442, %v1440
    %v1585 = vpack.c.bf16 %v1445, %v1443
    %v1586 = vpack.c.bf16 %v1446, %v1444
    %v1587 = vpack.c.bf16 %v1449, %v1447
    %v1588 = vpack.c.bf16 %v1450, %v1448
    %v1589 = vpack.c.bf16 %v1453, %v1451
    %v1590 = vpack.c.bf16 %v1454, %v1452
    %v1591 = vpack.c.bf16 %v1457, %v1455
    %v1592 = vpack.c.bf16 %v1458, %v1456
    %v1593 = vpack.c.bf16 %v1461, %v1459
    %v1594 = vpack.c.bf16 %v1462, %v1460
    %v1595 = vpack.c.bf16 %v1465, %v1463
    %v1596 = vpack.c.bf16 %v1466, %v1464
    %v1597 = vpack.c.bf16 %v1469, %v1467
    %v1598 = vpack.c.bf16 %v1470, %v1468
    %v1599 = vpack.c.bf16 %v1473, %v1471
    %v1600 = vpack.c.bf16 %v1474, %v1472
    %v1601 = vpack.c.bf16 %v1477, %v1475
    %v1602 = vpack.c.bf16 %v1478, %v1476
    %v1603 = vpack.c.bf16 %v1481, %v1479
    %v1604 = vpack.c.bf16 %v1482, %v1480
    %v1605 = vpack.c.bf16 %v1485, %v1483
    %v1606 = vpack.c.bf16 %v1486, %v1484
    %v1607 = vpack.c.bf16 %v1489, %v1487
    %v1608 = vpack.c.bf16 %v1490, %v1488
    %v1609 = vpack.c.bf16 %v1493, %v1491
    %v1610 = vpack.c.bf16 %v1494, %v1492
    %v1611 = vpack.c.bf16 %v1497, %v1495
    %v1612 = vpack.c.bf16 %v1498, %v1496
    %v1613 = vpack.c.bf16 %v1501, %v1499
    %v1614 = vpack.c.bf16 %v1502, %v1500
    %v1615 = vpack.c.bf16 %v1505, %v1503
    %v1616 = vpack.c.bf16 %v1506, %v1504
    %v1617 = vpack.c.bf16 %v1509, %v1507
    %v1618 = vpack.c.bf16 %v1510, %v1508
    %v1619 = vpack.c.bf16 %v1513, %v1511
    %v1620 = vpack.c.bf16 %v1514, %v1512
    %v1621 = vpack.c.bf16 %v1517, %v1515
    %v1622 = vpack.c.bf16 %v1518, %v1516
    %v1623 = vpack.c.bf16 %v1521, %v1519
    %v1624 = vpack.c.bf16 %v1522, %v1520
    %v1625 = vpack.c.bf16 %v1525, %v1523
    %v1626 = vpack.c.bf16 %v1526, %v1524
    %v1627 = vpack.c.bf16 %v1529, %v1527
    %v1628 = vpack.c.bf16 %v1530, %v1528
    %v1629 = vpack.c.bf16 %v1533, %v1531
    %v1630 = vpack.c.bf16 %v1534, %v1532
    %v1631 = vpack.c.bf16 %v1537, %v1535
    %v1632 = vpack.c.bf16 %v1538, %v1536
    %v1633 = vpack.c.bf16 %v1541, %v1539
    %v1634 = vpack.c.bf16 %v1542, %v1540
    %v1635 = vpack.c.bf16 %v1545, %v1543
    %v1636 = vpack.c.bf16 %v1546, %v1544
    %v1637 = vpack.c.bf16 %v1549, %v1547
    %v1638 = vpack.c.bf16 %v1550, %v1548
    %v1639 = vpack.c.bf16 %v1553, %v1551
    %v1640 = vpack.c.bf16 %v1554, %v1552
    %v1641 = vpack.c.bf16 %v1557, %v1555
    %v1642 = vpack.c.bf16 %v1558, %v1556
    %v1643 = vpack.c.bf16 %v1561, %v1559
    %v1644 = vpack.c.bf16 %v1562, %v1560
    %v1645 = vpack.c.bf16 %v1565, %v1563
    %v1646 = vpack.c.bf16 %v1566, %v1564
    %v1647 = vpack.c.bf16 %v1569, %v1567
    %v1648 = vpack.c.bf16 %v1570, %v1568
    %v1649 = vpack.c.bf16 %v1573, %v1571
    %v1650 = vpack.c.bf16 %v1574, %v1572
    %v1651 = vpack.c.bf16 %v1575, %v1575
    %v1652 = vpack.c.bf16 %v1576, %v1576
    %v1653 = vld [vmem:[%s3] sm:$0xff]
    %v1654 = vld [vmem:[%s3 + $0x8] sm:$0xff]
    %v1655 = vld [vmem:[%s3 + $0x10] sm:$0xff]
    %v1656 = vld [vmem:[%s3 + $0x18] sm:$0xff]
    %v1657 = vld [vmem:[%s3 + $0x20] sm:$0xff]
    %v1658 = vld [vmem:[%s3 + $0x28] sm:$0xff]
    %v1659 = vld [vmem:[%s3 + $0x30] sm:$0xff]
    %v1660 = vld [vmem:[%s3 + $0x38] sm:$0xff]
    %v1661 = vld [vmem:[%s3 + $0x40] sm:$0xff]
    %v1662 = vld [vmem:[%s3 + $0x48] sm:$0xff]
    %v1663 = vld [vmem:[%s3 + $0x50] sm:$0xff]
    %v1664 = vld [vmem:[%s3 + $0x58] sm:$0xff]
    %v1665 = vld [vmem:[%s3 + $0x60] sm:$0xff]
    %v1666 = vld [vmem:[%s3 + $0x68] sm:$0xff]
    %v1667 = vld [vmem:[%s3 + $0x70] sm:$0xff]
    %v1668 = vld [vmem:[%s3 + $0x78] sm:$0xff]
    %v1669 = vld [vmem:[%s3 + $0x80] sm:$0xff]
    %v1670 = vld [vmem:[%s3 + $0x88] sm:$0xff]
    %v1671 = vld [vmem:[%s3 + $0x90] sm:$0xff]
    %v1672 = vld [vmem:[%s3 + $0x98] sm:$0xff]
    %v1673 = vld [vmem:[%s3 + $0xa0] sm:$0xff]
    %v1674 = vld [vmem:[%s3 + $0xa8] sm:$0xff]
    %v1675 = vld [vmem:[%s3 + $0xb0] sm:$0xff]
    %v1676 = vld [vmem:[%s3 + $0xb8] sm:$0xff]
    %v1677 = vld [vmem:[%s3 + $0xc0] sm:$0xff]
    %v1678 = vld [vmem:[%s3 + $0xc8] sm:$0xff]
    %v1679 = vld [vmem:[%s3 + $0xd0] sm:$0xff]
    %v1680 = vld [vmem:[%s3 + $0xd8] sm:$0xff]
    %v1681 = vld [vmem:[%s3 + $0xe0] sm:$0xff]
    %v1682 = vld [vmem:[%s3 + $0xe8] sm:$0xff]
    %v1683 = vld [vmem:[%s3 + $0xf0] sm:$0xff]
    %v1684 = vld [vmem:[%s3 + $0xf8] sm:$0xff]
    %v1685 = vld [vmem:[%s3 + $0x100] sm:$0xff]
    %v1686 = vld [vmem:[%s3 + $0x108] sm:$0xff]
    %v1687 = vld [vmem:[%s3 + $0x110] sm:$0xff]
    %v1688 = vld [vmem:[%s3 + $0x118] sm:$0xff]
    %v1689 = vld [vmem:[%s3 + $0x120] sm:$0xff]
    %v1690 = vld [vmem:[%s3 + $0x128] sm:$0xff]
    %v1691 = vld [vmem:[%s3 + $0x130] sm:$0xff]
    %v1692 = vld [vmem:[%s3 + $0x138] sm:$0xff]
    %v1693 = vld [vmem:[%s3 + $0x140] sm:$0xff]
    %v1694 = vld [vmem:[%s3 + $0x148] sm:$0xff]
    %v1695 = vld [vmem:[%s3 + $0x150] sm:$0xff]
    %v1696 = vld [vmem:[%s3 + $0x158] sm:$0xff]
    %v1697 = vld [vmem:[%s3 + $0x160] sm:$0xff]
    %v1698 = vld [vmem:[%s3 + $0x168] sm:$0xff]
    %v1699 = vld [vmem:[%s3 + $0x170] sm:$0xff]
    %v1700 = vld [vmem:[%s3 + $0x178] sm:$0xff]
    %v1701 = vld [vmem:[%s3 + $0x180] sm:$0xff]
    %v1702 = vld [vmem:[%s3 + $0x188] sm:$0xff]
    %v1703 = vld [vmem:[%s3 + $0x190] sm:$0xff]
    %v1704 = vld [vmem:[%s3 + $0x198] sm:$0xff]
    %v1705 = vld [vmem:[%s3 + $0x1a0] sm:$0xff]
    %v1706 = vld [vmem:[%s3 + $0x1a8] sm:$0xff]
    %v1707 = vld [vmem:[%s3 + $0x1b0] sm:$0xff]
    %v1708 = vld [vmem:[%s3 + $0x1b8] sm:$0xff]
    %v1709 = vld [vmem:[%s3 + $0x1c0] sm:$0xff]
    %v1710 = vld [vmem:[%s3 + $0x1c8] sm:$0xff]
    %v1711 = vld [vmem:[%s3 + $0x1d0] sm:$0xff]
    %v1712 = vld [vmem:[%s3 + $0x1d8] sm:$0xff]
    %v1713 = vld [vmem:[%s3 + $0x1e0] sm:$0xff]
    %v1714 = vld [vmem:[%s3 + $0x1e8] sm:$0xff]
    %v1715 = vld [vmem:[%s3 + $0x1f0] sm:$0xff]
    %v1716 = vld [vmem:[%s3 + $0x1f8] sm:$0xff]
    %v1717 = vld [vmem:[%s4] sm:$0xf]
    %v1719 = vlaneseq
    %v1720 = vshrl.u32 %v1719, 7
    %v1721 = vsub.s32 0, %v1720
    %v1722 = vrot.slane %v1717, %v1721
    %v1723 = vlaneseq
    %v1724 = vshrl.u32 %v1723, 7
    %v1725 = vsub.s32 1, %v1724
    %v1726 = vrot.slane %v1717, %v1725
    %v1727 = vlaneseq
    %v1728 = vshrl.u32 %v1727, 7
    %v1729 = vsub.s32 2, %v1728
    %v1730 = vrot.slane %v1717, %v1729
    %v1731 = vlaneseq
    %v1732 = vshrl.u32 %v1731, 7
    %v1733 = vsub.s32 3, %v1732
    %v1734 = vrot.slane %v1717, %v1733
    %v1803 = vunpack.c.l.b16 %v1653
    %v1804 = vunpack.c.h.b16 %v1653
    %v1805 = vunpack.c.l.b16 %v1654
    %v1806 = vunpack.c.h.b16 %v1654
    %v1807 = vunpack.c.l.b16 %v1655
    %v1808 = vunpack.c.h.b16 %v1655
    %v1809 = vunpack.c.l.b16 %v1656
    %v1810 = vunpack.c.h.b16 %v1656
    %v1811 = vunpack.c.l.b16 %v1657
    %v1812 = vunpack.c.h.b16 %v1657
    %v1813 = vunpack.c.l.b16 %v1658
    %v1814 = vunpack.c.h.b16 %v1658
    %v1815 = vunpack.c.l.b16 %v1659
    %v1816 = vunpack.c.h.b16 %v1659
    %v1817 = vunpack.c.l.b16 %v1660
    %v1818 = vunpack.c.h.b16 %v1660
    %v1819 = vunpack.c.l.b16 %v1661
    %v1820 = vunpack.c.h.b16 %v1661
    %v1821 = vunpack.c.l.b16 %v1662
    %v1822 = vunpack.c.h.b16 %v1662
    %v1823 = vunpack.c.l.b16 %v1663
    %v1824 = vunpack.c.h.b16 %v1663
    %v1825 = vunpack.c.l.b16 %v1664
    %v1826 = vunpack.c.h.b16 %v1664
    %v1827 = vunpack.c.l.b16 %v1665
    %v1828 = vunpack.c.h.b16 %v1665
    %v1829 = vunpack.c.l.b16 %v1666
    %v1830 = vunpack.c.h.b16 %v1666
    %v1831 = vunpack.c.l.b16 %v1667
    %v1832 = vunpack.c.h.b16 %v1667
    %v1833 = vunpack.c.l.b16 %v1668
    %v1834 = vunpack.c.h.b16 %v1668
    %v1835 = vunpack.c.l.b16 %v1669
    %v1836 = vunpack.c.h.b16 %v1669
    %v1837 = vunpack.c.l.b16 %v1670
    %v1838 = vunpack.c.h.b16 %v1670
    %v1839 = vunpack.c.l.b16 %v1671
    %v1840 = vunpack.c.h.b16 %v1671
    %v1841 = vunpack.c.l.b16 %v1672
    %v1842 = vunpack.c.h.b16 %v1672
    %v1843 = vunpack.c.l.b16 %v1673
    %v1844 = vunpack.c.h.b16 %v1673
    %v1845 = vunpack.c.l.b16 %v1674
    %v1846 = vunpack.c.h.b16 %v1674
    %v1847 = vunpack.c.l.b16 %v1675
    %v1848 = vunpack.c.h.b16 %v1675
    %v1849 = vunpack.c.l.b16 %v1676
    %v1850 = vunpack.c.h.b16 %v1676
    %v1851 = vunpack.c.l.b16 %v1677
    %v1852 = vunpack.c.h.b16 %v1677
    %v1853 = vunpack.c.l.b16 %v1678
    %v1854 = vunpack.c.h.b16 %v1678
    %v1855 = vunpack.c.l.b16 %v1679
    %v1856 = vunpack.c.h.b16 %v1679
    %v1857 = vunpack.c.l.b16 %v1680
    %v1858 = vunpack.c.h.b16 %v1680
    %v1859 = vunpack.c.l.b16 %v1681
    %v1860 = vunpack.c.h.b16 %v1681
    %v1861 = vunpack.c.l.b16 %v1682
    %v1862 = vunpack.c.h.b16 %v1682
    %v1863 = vunpack.c.l.b16 %v1683
    %v1864 = vunpack.c.h.b16 %v1683
    %v1865 = vunpack.c.l.b16 %v1684
    %v1866 = vunpack.c.h.b16 %v1684
    %v1867 = vunpack.c.l.b16 %v1685
    %v1868 = vunpack.c.h.b16 %v1685
    %v1869 = vunpack.c.l.b16 %v1686
    %v1870 = vunpack.c.h.b16 %v1686
    %v1871 = vunpack.c.l.b16 %v1687
    %v1872 = vunpack.c.h.b16 %v1687
    %v1873 = vunpack.c.l.b16 %v1688
    %v1874 = vunpack.c.h.b16 %v1688
    %v1875 = vunpack.c.l.b16 %v1689
    %v1876 = vunpack.c.h.b16 %v1689
    %v1877 = vunpack.c.l.b16 %v1690
    %v1878 = vunpack.c.h.b16 %v1690
    %v1879 = vunpack.c.l.b16 %v1691
    %v1880 = vunpack.c.h.b16 %v1691
    %v1881 = vunpack.c.l.b16 %v1692
    %v1882 = vunpack.c.h.b16 %v1692
    %v1883 = vunpack.c.l.b16 %v1693
    %v1884 = vunpack.c.h.b16 %v1693
    %v1885 = vunpack.c.l.b16 %v1694
    %v1886 = vunpack.c.h.b16 %v1694
    %v1887 = vunpack.c.l.b16 %v1695
    %v1888 = vunpack.c.h.b16 %v1695
    %v1889 = vunpack.c.l.b16 %v1696
    %v1890 = vunpack.c.h.b16 %v1696
    %v1891 = vunpack.c.l.b16 %v1697
    %v1892 = vunpack.c.h.b16 %v1697
    %v1893 = vunpack.c.l.b16 %v1698
    %v1894 = vunpack.c.h.b16 %v1698
    %v1895 = vunpack.c.l.b16 %v1699
    %v1896 = vunpack.c.h.b16 %v1699
    %v1897 = vunpack.c.l.b16 %v1700
    %v1898 = vunpack.c.h.b16 %v1700
    %v1899 = vunpack.c.l.b16 %v1701
    %v1900 = vunpack.c.h.b16 %v1701
    %v1901 = vunpack.c.l.b16 %v1702
    %v1902 = vunpack.c.h.b16 %v1702
    %v1903 = vunpack.c.l.b16 %v1703
    %v1904 = vunpack.c.h.b16 %v1703
    %v1905 = vunpack.c.l.b16 %v1704
    %v1906 = vunpack.c.h.b16 %v1704
    %v1907 = vunpack.c.l.b16 %v1705
    %v1908 = vunpack.c.h.b16 %v1705
    %v1909 = vunpack.c.l.b16 %v1706
    %v1910 = vunpack.c.h.b16 %v1706
    %v1911 = vunpack.c.l.b16 %v1707
    %v1912 = vunpack.c.h.b16 %v1707
    %v1913 = vunpack.c.l.b16 %v1708
    %v1914 = vunpack.c.h.b16 %v1708
    %v1915 = vunpack.c.l.b16 %v1709
    %v1916 = vunpack.c.h.b16 %v1709
    %v1917 = vunpack.c.l.b16 %v1710
    %v1918 = vunpack.c.h.b16 %v1710
    %v1919 = vunpack.c.l.b16 %v1711
    %v1920 = vunpack.c.h.b16 %v1711
    %v1921 = vunpack.c.l.b16 %v1712
    %v1922 = vunpack.c.h.b16 %v1712
    %v1923 = vunpack.c.l.b16 %v1713
    %v1924 = vunpack.c.h.b16 %v1713
    %v1925 = vunpack.c.l.b16 %v1714
    %v1926 = vunpack.c.h.b16 %v1714
    %v1927 = vunpack.c.l.b16 %v1715
    %v1928 = vunpack.c.h.b16 %v1715
    %v1929 = vunpack.c.l.b16 %v1716
    %v1930 = vunpack.c.h.b16 %v1716
    %v1931 = vpack.c.b16 %v1807, %v1803
    %v1932 = vpack.c.b16 %v1808, %v1804
    %v1933 = vpack.c.b16 %v1809, %v1805
    %v1934 = vpack.c.b16 %v1810, %v1806
    %v1935 = vpack.c.b16 %v1815, %v1811
    %v1936 = vpack.c.b16 %v1816, %v1812
    %v1937 = vpack.c.b16 %v1817, %v1813
    %v1938 = vpack.c.b16 %v1818, %v1814
    %v1939 = vpack.c.b16 %v1823, %v1819
    %v1940 = vpack.c.b16 %v1824, %v1820
    %v1941 = vpack.c.b16 %v1825, %v1821
    %v1942 = vpack.c.b16 %v1826, %v1822
    %v1943 = vpack.c.b16 %v1831, %v1827
    %v1944 = vpack.c.b16 %v1832, %v1828
    %v1945 = vpack.c.b16 %v1833, %v1829
    %v1946 = vpack.c.b16 %v1834, %v1830
    %v1947 = vpack.c.b16 %v1839, %v1835
    %v1948 = vpack.c.b16 %v1840, %v1836
    %v1949 = vpack.c.b16 %v1841, %v1837
    %v1950 = vpack.c.b16 %v1842, %v1838
    %v1951 = vpack.c.b16 %v1847, %v1843
    %v1952 = vpack.c.b16 %v1848, %v1844
    %v1953 = vpack.c.b16 %v1849, %v1845
    %v1954 = vpack.c.b16 %v1850, %v1846
    %v1955 = vpack.c.b16 %v1855, %v1851
    %v1956 = vpack.c.b16 %v1856, %v1852
    %v1957 = vpack.c.b16 %v1857, %v1853
    %v1958 = vpack.c.b16 %v1858, %v1854
    %v1959 = vpack.c.b16 %v1863, %v1859
    %v1960 = vpack.c.b16 %v1864, %v1860
    %v1961 = vpack.c.b16 %v1865, %v1861
    %v1962 = vpack.c.b16 %v1866, %v1862
    %v1963 = vpack.c.b16 %v1871, %v1867
    %v1964 = vpack.c.b16 %v1872, %v1868
    %v1965 = vpack.c.b16 %v1873, %v1869
    %v1966 = vpack.c.b16 %v1874, %v1870
    %v1967 = vpack.c.b16 %v1879, %v1875
    %v1968 = vpack.c.b16 %v1880, %v1876
    %v1969 = vpack.c.b16 %v1881, %v1877
    %v1970 = vpack.c.b16 %v1882, %v1878
    %v1971 = vpack.c.b16 %v1887, %v1883
    %v1972 = vpack.c.b16 %v1888, %v1884
    %v1973 = vpack.c.b16 %v1889, %v1885
    %v1974 = vpack.c.b16 %v1890, %v1886
    %v1975 = vpack.c.b16 %v1895, %v1891
    %v1976 = vpack.c.b16 %v1896, %v1892
    %v1977 = vpack.c.b16 %v1897, %v1893
    %v1978 = vpack.c.b16 %v1898, %v1894
    %v1979 = vpack.c.b16 %v1903, %v1899
    %v1980 = vpack.c.b16 %v1904, %v1900
    %v1981 = vpack.c.b16 %v1905, %v1901
    %v1982 = vpack.c.b16 %v1906, %v1902
    %v1983 = vpack.c.b16 %v1911, %v1907
    %v1984 = vpack.c.b16 %v1912, %v1908
    %v1985 = vpack.c.b16 %v1913, %v1909
    %v1986 = vpack.c.b16 %v1914, %v1910
    %v1987 = vpack.c.b16 %v1919, %v1915
    %v1988 = vpack.c.b16 %v1920, %v1916
    %v1989 = vpack.c.b16 %v1921, %v1917
    %v1990 = vpack.c.b16 %v1922, %v1918
    %v1991 = vpack.c.b16 %v1927, %v1923
    %v1992 = vpack.c.b16 %v1928, %v1924
    %v1993 = vpack.c.b16 %v1929, %v1925
    %v1994 = vpack.c.b16 %v1930, %v1926
    %2059 = vmatprep.subr.bf16.mxu0 %v1932
    %2060 = vmatpush1.bf16.msra.mxu0 %v1931
    %2061 = vmatprep.subr.bf16.mxu0 %v1936
    %2062 = vmatpush1.bf16.msra.mxu0 %v1935
    %2063 = vmatprep.subr.bf16.mxu0 %v1940
    %2064 = vmatpush1.bf16.msra.mxu0 %v1939
    %2065 = vmatprep.subr.bf16.mxu0 %v1944
    %2066 = vmatpush1.bf16.msra.mxu0 %v1943
    %2067 = vmatprep.subr.bf16.mxu0 %v1948
    %2068 = vmatpush1.bf16.msra.mxu0 %v1947
    %2069 = vmatprep.subr.bf16.mxu0 %v1952
    %2070 = vmatpush1.bf16.msra.mxu0 %v1951
    %2071 = vmatprep.subr.bf16.mxu0 %v1956
    %2072 = vmatpush1.bf16.msra.mxu0 %v1955
    %2073 = vmatprep.subr.bf16.mxu0 %v1960
    %2074 = vmatpush1.bf16.msra.mxu0 %v1959
    %2075 = vmatprep.subr.bf16.mxu0 %v1964
    %2076 = vmatpush1.bf16.msra.mxu0 %v1963
    %2077 = vmatprep.subr.bf16.mxu0 %v1968
    %2078 = vmatpush1.bf16.msra.mxu0 %v1967
    %2079 = vmatprep.subr.bf16.mxu0 %v1972
    %2080 = vmatpush1.bf16.msra.mxu0 %v1971
    %2081 = vmatprep.subr.bf16.mxu0 %v1976
    %2082 = vmatpush1.bf16.msra.mxu0 %v1975
    %2083 = vmatprep.subr.bf16.mxu0 %v1980
    %2084 = vmatpush1.bf16.msra.mxu0 %v1979
    %2085 = vmatprep.subr.bf16.mxu0 %v1984
    %2086 = vmatpush1.bf16.msra.mxu0 %v1983
    %2087 = vmatprep.subr.bf16.mxu0 %v1988
    %2088 = vmatpush1.bf16.msra.mxu0 %v1987
    %2089 = vmatprep.subr.bf16.mxu0 %v1992
    %2090 = vmatpush1.bf16.msra.mxu0 %v1991
    %2091 = vmatprep.mubr.bf16.mxu0 %v1578
    %2092 = vmatmul.mubr.bf16.gmra.mrb[0].mxu0 %v1577
    %v2093 = vpop.f32.mrb[0].mxu0
    %v2094 = vadd.f32 %v1722, %v2093
    %v2095 = vpop.f32.mrb[0].mxu0
    %v2096 = vadd.f32 %v1726, %v2095
    %v2097 = vpop.f32.mrb[0].mxu0
    %v2098 = vadd.f32 %v1722, %v2097
    %v2099 = vpop.f32.mrb[0].mxu0
    %v2100 = vadd.f32 %v1726, %v2099
    %2101 = vmatprep.mubr.bf16.mxu0 %v1580
    %2102 = vmatmul.mubr.bf16.gmra.mrb[0].mxu0 %v1579
    %v2103 = vpop.f32.mrb[0].mxu0
    %v2104 = vadd.f32 %v1722, %v2103
    %v2105 = vpop.f32.mrb[0].mxu0
    %v2106 = vadd.f32 %v1726, %v2105
    %v2107 = vpop.f32.mrb[0].mxu0
    %v2108 = vadd.f32 %v1722, %v2107
    %v2109 = vpop.f32.mrb[0].mxu0
    %v2110 = vadd.f32 %v1726, %v2109
    %2111 = vmatprep.mubr.bf16.mxu0 %v1582
    %2112 = vmatmul.mubr.bf16.gmra.mrb[0].mxu0 %v1581
    %v2113 = vpop.f32.mrb[0].mxu0
    %v2114 = vadd.f32 %v1722, %v2113
    %v2115 = vpop.f32.mrb[0].mxu0
    %v2116 = vadd.f32 %v1726, %v2115
    %v2117 = vpop.f32.mrb[0].mxu0
    %v2118 = vadd.f32 %v1722, %v2117
    %v2119 = vpop.f32.mrb[0].mxu0
    %v2120 = vadd.f32 %v1726, %v2119
    %2121 = vmatprep.mubr.bf16.mxu0 %v1584
    %2122 = vmatmul.mubr.bf16.gmra.mrb[0].mxu0 %v1583
    %v2123 = vpop.f32.mrb[0].mxu0
    %v2124 = vadd.f32 %v1722, %v2123
    %v2125 = vpop.f32.mrb[0].mxu0
    %v2126 = vadd.f32 %v1726, %v2125
    %v2127 = vpop.f32.mrb[0].mxu0
    %v2128 = vadd.f32 %v1722, %v2127
    %v2129 = vpop.f32.mrb[0].mxu0
    %v2130 = vadd.f32 %v1726, %v2129
    %2131 = vmatprep.mubr.bf16.mxu0 %v1586
    %2132 = vmatmul.mubr.bf16.gmra.mrb[0].mxu0 %v1585
    %v2133 = vpop.f32.mrb[0].mxu0
    %v2134 = vadd.f32 %v1722, %v2133
    %v2135 = vpop.f32.mrb[0].mxu0
    %v2136 = vadd.f32 %v1726, %v2135
    %v2137 = vpop.f32.mrb[0].mxu0
    %v2138 = vadd.f32 %v1722, %v2137
    %v2139 = vpop.f32.mrb[0].mxu0
    %v2140 = vadd.f32 %v1726, %v2139
    %2141 = vmatprep.mubr.bf16.mxu0 %v1588
    %2142 = vmatmul.mubr.bf16.gmra.mrb[0].mxu0 %v1587
    %v2143 = vpop.f32.mrb[0].mxu0
    %v2144 = vadd.f32 %v1722, %v2143
    %v2145 = vpop.f32.mrb[0].mxu0
    %v2146 = vadd.f32 %v1726, %v2145
    %v2147 = vpop.f32.mrb[0].mxu0
    %v2148 = vadd.f32 %v1722, %v2147
    %v2149 = vpop.f32.mrb[0].mxu0
    %v2150 = vadd.f32 %v1726, %v2149
    %2151 = vmatprep.mubr.bf16.mxu0 %v1590
    %2152 = vmatmul.mubr.bf16.gmra.mrb[0].mxu0 %v1589
    %v2153 = vpop.f32.mrb[0].mxu0
    %v2154 = vadd.f32 %v1722, %v2153
    %v2155 = vpop.f32.mrb[0].mxu0
    %v2156 = vadd.f32 %v1726, %v2155
    %v2157 = vpop.f32.mrb[0].mxu0
    %v2158 = vadd.f32 %v1722, %v2157
    %v2159 = vpop.f32.mrb[0].mxu0
    %v2160 = vadd.f32 %v1726, %v2159
    %2161 = vmatprep.mubr.bf16.mxu0 %v1592
    %2162 = vmatmul.mubr.bf16.gmra.mrb[0].mxu0 %v1591
    %v2163 = vpop.f32.mrb[0].mxu0
    %v2164 = vadd.f32 %v1722, %v2163
    %v2165 = vpop.f32.mrb[0].mxu0
    %v2166 = vadd.f32 %v1726, %v2165
    %v2167 = vpop.f32.mrb[0].mxu0
    %v2168 = vadd.f32 %v1722, %v2167
    %v2169 = vpop.f32.mrb[0].mxu0
    %v2170 = vadd.f32 %v1726, %v2169
    %2171 = vmatprep.mubr.bf16.mxu0 %v1594
    %2172 = vmatmul.mubr.bf16.gmra.mrb[0].mxu0 %v1593
    %v2173 = vpop.f32.mrb[0].mxu0
    %v2174 = vadd.f32 %v1722, %v2173
    %v2175 = vpop.f32.mrb[0].mxu0
    %v2176 = vadd.f32 %v1726, %v2175
    %v2177 = vpop.f32.mrb[0].mxu0
    %v2178 = vadd.f32 %v1722, %v2177
    %v2179 = vpop.f32.mrb[0].mxu0
    %v2180 = vadd.f32 %v1726, %v2179
    %2181 = vmatprep.mubr.bf16.mxu0 %v1596
    %2182 = vmatmul.mubr.bf16.gmra.mrb[0].mxu0 %v1595
    %v2183 = vpop.f32.mrb[0].mxu0
    %v2184 = vadd.f32 %v1722, %v2183
    %v2185 = vpop.f32.mrb[0].mxu0
    %v2186 = vadd.f32 %v1726, %v2185
    %v2187 = vpop.f32.mrb[0].mxu0
    %v2188 = vadd.f32 %v1722, %v2187
    %v2189 = vpop.f32.mrb[0].mxu0
    %v2190 = vadd.f32 %v1726, %v2189
    %2191 = vmatprep.mubr.bf16.mxu0 %v1598
    %2192 = vmatmul.mubr.bf16.gmra.mrb[0].mxu0 %v1597
    %v2193 = vpop.f32.mrb[0].mxu0
    %v2194 = vadd.f32 %v1722, %v2193
    %v2195 = vpop.f32.mrb[0].mxu0
    %v2196 = vadd.f32 %v1726, %v2195
    %v2197 = vpop.f32.mrb[0].mxu0
    %v2198 = vadd.f32 %v1722, %v2197
    %v2199 = vpop.f32.mrb[0].mxu0
    %v2200 = vadd.f32 %v1726, %v2199
    %2201 = vmatprep.mubr.bf16.mxu0 %v1600
    %2202 = vmatmul.mubr.bf16.gmra.mrb[0].mxu0 %v1599
    %v2203 = vpop.f32.mrb[0].mxu0
    %v2204 = vadd.f32 %v1722, %v2203
    %v2205 = vpop.f32.mrb[0].mxu0
    %v2206 = vadd.f32 %v1726, %v2205
    %v2207 = vpop.f32.mrb[0].mxu0
    %v2208 = vadd.f32 %v1722, %v2207
    %v2209 = vpop.f32.mrb[0].mxu0
    %v2210 = vadd.f32 %v1726, %v2209
    %2211 = vmatprep.mubr.bf16.mxu0 %v1602
    %2212 = vmatmul.mubr.bf16.gmra.mrb[0].mxu0 %v1601
    %v2213 = vpop.f32.mrb[0].mxu0
    %v2214 = vadd.f32 %v1722, %v2213
    %v2215 = vpop.f32.mrb[0].mxu0
    %v2216 = vadd.f32 %v1726, %v2215
    %v2217 = vpop.f32.mrb[0].mxu0
    %v2218 = vadd.f32 %v1722, %v2217
    %v2219 = vpop.f32.mrb[0].mxu0
    %v2220 = vadd.f32 %v1726, %v2219
    %2221 = vmatprep.mubr.bf16.mxu0 %v1604
    %2222 = vmatmul.mubr.bf16.gmra.mrb[0].mxu0 %v1603
    %v2223 = vpop.f32.mrb[0].mxu0
    %v2224 = vadd.f32 %v1722, %v2223
    %v2225 = vpop.f32.mrb[0].mxu0
    %v2226 = vadd.f32 %v1726, %v2225
    %v2227 = vpop.f32.mrb[0].mxu0
    %v2228 = vadd.f32 %v1722, %v2227
    %v2229 = vpop.f32.mrb[0].mxu0
    %v2230 = vadd.f32 %v1726, %v2229
    %2231 = vmatprep.mubr.bf16.mxu0 %v1606
    %2232 = vmatmul.mubr.bf16.gmra.mrb[0].mxu0 %v1605
    %v2233 = vpop.f32.mrb[0].mxu0
    %v2234 = vadd.f32 %v1722, %v2233
    %v2235 = vpop.f32.mrb[0].mxu0
    %v2236 = vadd.f32 %v1726, %v2235
    %v2237 = vpop.f32.mrb[0].mxu0
    %v2238 = vadd.f32 %v1722, %v2237
    %v2239 = vpop.f32.mrb[0].mxu0
    %v2240 = vadd.f32 %v1726, %v2239
    %2241 = vmatprep.mubr.bf16.mxu0 %v1608
    %2242 = vmatmul.mubr.bf16.gmra.mrb[0].mxu0 %v1607
    %v2243 = vpop.f32.mrb[0].mxu0
    %v2244 = vadd.f32 %v1722, %v2243
    %v2245 = vpop.f32.mrb[0].mxu0
    %v2246 = vadd.f32 %v1726, %v2245
    %v2247 = vpop.f32.mrb[0].mxu0
    %v2248 = vadd.f32 %v1722, %v2247
    %v2249 = vpop.f32.mrb[0].mxu0
    %v2250 = vadd.f32 %v1726, %v2249
    %2251 = vmatprep.mubr.bf16.mxu0 %v1610
    %2252 = vmatmul.mubr.bf16.gmra.mrb[0].mxu0 %v1609
    %v2253 = vpop.f32.mrb[0].mxu0
    %v2254 = vadd.f32 %v1722, %v2253
    %v2255 = vpop.f32.mrb[0].mxu0
    %v2256 = vadd.f32 %v1726, %v2255
    %v2257 = vpop.f32.mrb[0].mxu0
    %v2258 = vadd.f32 %v1722, %v2257
    %v2259 = vpop.f32.mrb[0].mxu0
    %v2260 = vadd.f32 %v1726, %v2259
    %2261 = vmatprep.mubr.bf16.mxu0 %v1612
    %2262 = vmatmul.mubr.bf16.gmra.mrb[0].mxu0 %v1611
    %v2263 = vpop.f32.mrb[0].mxu0
    %v2264 = vadd.f32 %v1722, %v2263
    %v2265 = vpop.f32.mrb[0].mxu0
    %v2266 = vadd.f32 %v1726, %v2265
    %v2267 = vpop.f32.mrb[0].mxu0
    %v2268 = vadd.f32 %v1722, %v2267
    %v2269 = vpop.f32.mrb[0].mxu0
    %v2270 = vadd.f32 %v1726, %v2269
    %2271 = vmatprep.mubr.bf16.mxu0 %v1614
    %2272 = vmatmul.mubr.bf16.gmra.mrb[0].mxu0 %v1613
    %v2273 = vpop.f32.mrb[0].mxu0
    %v2274 = vadd.f32 %v1722, %v2273
    %v2275 = vpop.f32.mrb[0].mxu0
    %v2276 = vadd.f32 %v1726, %v2275
    %v2277 = vpop.f32.mrb[0].mxu0
    %v2278 = vadd.f32 %v1722, %v2277
    %v2279 = vpop.f32.mrb[0].mxu0
    %v2280 = vadd.f32 %v1726, %v2279
    %2281 = vmatprep.mubr.bf16.mxu0 %v1616
    %2282 = vmatmul.mubr.bf16.gmra.mrb[0].mxu0 %v1615
    %v2283 = vpop.f32.mrb[0].mxu0
    %v2284 = vadd.f32 %v1722, %v2283
    %v2285 = vpop.f32.mrb[0].mxu0
    %v2286 = vadd.f32 %v1726, %v2285
    %v2287 = vpop.f32.mrb[0].mxu0
    %v2288 = vadd.f32 %v1722, %v2287
    %v2289 = vpop.f32.mrb[0].mxu0
    %v2290 = vadd.f32 %v1726, %v2289
    %2291 = vmatprep.mubr.bf16.mxu0 %v1618
    %2292 = vmatmul.mubr.bf16.gmra.mrb[0].mxu0 %v1617
    %v2293 = vpop.f32.mrb[0].mxu0
    %v2294 = vadd.f32 %v1722, %v2293
    %v2295 = vpop.f32.mrb[0].mxu0
    %v2296 = vadd.f32 %v1726, %v2295
    %v2297 = vpop.f32.mrb[0].mxu0
    %v2298 = vadd.f32 %v1722, %v2297
    %v2299 = vpop.f32.mrb[0].mxu0
    %v2300 = vadd.f32 %v1726, %v2299
    %2301 = vmatprep.mubr.bf16.mxu0 %v1620
    %2302 = vmatmul.mubr.bf16.gmra.mrb[0].mxu0 %v1619
    %v2303 = vpop.f32.mrb[0].mxu0
    %v2304 = vadd.f32 %v1722, %v2303
    %v2305 = vpop.f32.mrb[0].mxu0
    %v2306 = vadd.f32 %v1726, %v2305
    %v2307 = vpop.f32.mrb[0].mxu0
    %v2308 = vadd.f32 %v1722, %v2307
    %v2309 = vpop.f32.mrb[0].mxu0
    %v2310 = vadd.f32 %v1726, %v2309
    %2311 = vmatprep.mubr.bf16.mxu0 %v1622
    %2312 = vmatmul.mubr.bf16.gmra.mrb[0].mxu0 %v1621
    %v2313 = vpop.f32.mrb[0].mxu0
    %v2314 = vadd.f32 %v1722, %v2313
    %v2315 = vpop.f32.mrb[0].mxu0
    %v2316 = vadd.f32 %v1726, %v2315
    %v2317 = vpop.f32.mrb[0].mxu0
    %v2318 = vadd.f32 %v1722, %v2317
    %v2319 = vpop.f32.mrb[0].mxu0
    %v2320 = vadd.f32 %v1726, %v2319
    %2321 = vmatprep.mubr.bf16.mxu0 %v1624
    %2322 = vmatmul.mubr.bf16.gmra.mrb[0].mxu0 %v1623
    %v2323 = vpop.f32.mrb[0].mxu0
    %v2324 = vadd.f32 %v1722, %v2323
    %v2325 = vpop.f32.mrb[0].mxu0
    %v2326 = vadd.f32 %v1726, %v2325
    %v2327 = vpop.f32.mrb[0].mxu0
    %v2328 = vadd.f32 %v1722, %v2327
    %v2329 = vpop.f32.mrb[0].mxu0
    %v2330 = vadd.f32 %v1726, %v2329
    %2331 = vmatprep.mubr.bf16.mxu0 %v1626
    %2332 = vmatmul.mubr.bf16.gmra.mrb[0].mxu0 %v1625
    %v2333 = vpop.f32.mrb[0].mxu0
    %v2334 = vadd.f32 %v1722, %v2333
    %v2335 = vpop.f32.mrb[0].mxu0
    %v2336 = vadd.f32 %v1726, %v2335
    %v2337 = vpop.f32.mrb[0].mxu0
    %v2338 = vadd.f32 %v1722, %v2337
    %v2339 = vpop.f32.mrb[0].mxu0
    %v2340 = vadd.f32 %v1726, %v2339
    %2341 = vmatprep.mubr.bf16.mxu0 %v1628
    %2342 = vmatmul.mubr.bf16.gmra.mrb[0].mxu0 %v1627
    %v2343 = vpop.f32.mrb[0].mxu0
    %v2344 = vadd.f32 %v1722, %v2343
    %v2345 = vpop.f32.mrb[0].mxu0
    %v2346 = vadd.f32 %v1726, %v2345
    %v2347 = vpop.f32.mrb[0].mxu0
    %v2348 = vadd.f32 %v1722, %v2347
    %v2349 = vpop.f32.mrb[0].mxu0
    %v2350 = vadd.f32 %v1726, %v2349
    %2351 = vmatprep.mubr.bf16.mxu0 %v1630
    %2352 = vmatmul.mubr.bf16.gmra.mrb[0].mxu0 %v1629
    %v2353 = vpop.f32.mrb[0].mxu0
    %v2354 = vadd.f32 %v1722, %v2353
    %v2355 = vpop.f32.mrb[0].mxu0
    %v2356 = vadd.f32 %v1726, %v2355
    %v2357 = vpop.f32.mrb[0].mxu0
    %v2358 = vadd.f32 %v1722, %v2357
    %v2359 = vpop.f32.mrb[0].mxu0
    %v2360 = vadd.f32 %v1726, %v2359
    %2361 = vmatprep.mubr.bf16.mxu0 %v1632
    %2362 = vmatmul.mubr.bf16.gmra.mrb[0].mxu0 %v1631
    %v2363 = vpop.f32.mrb[0].mxu0
    %v2364 = vadd.f32 %v1722, %v2363
    %v2365 = vpop.f32.mrb[0].mxu0
    %v2366 = vadd.f32 %v1726, %v2365
    %v2367 = vpop.f32.mrb[0].mxu0
    %v2368 = vadd.f32 %v1722, %v2367
    %v2369 = vpop.f32.mrb[0].mxu0
    %v2370 = vadd.f32 %v1726, %v2369
    %2371 = vmatprep.mubr.bf16.mxu0 %v1634
    %2372 = vmatmul.mubr.bf16.gmra.mrb[0].mxu0 %v1633
    %v2373 = vpop.f32.mrb[0].mxu0
    %v2374 = vadd.f32 %v1722, %v2373
    %v2375 = vpop.f32.mrb[0].mxu0
    %v2376 = vadd.f32 %v1726, %v2375
    %v2377 = vpop.f32.mrb[0].mxu0
    %v2378 = vadd.f32 %v1722, %v2377
    %v2379 = vpop.f32.mrb[0].mxu0
    %v2380 = vadd.f32 %v1726, %v2379
    %2381 = vmatprep.mubr.bf16.mxu0 %v1636
    %2382 = vmatmul.mubr.bf16.gmra.mrb[0].mxu0 %v1635
    %v2383 = vpop.f32.mrb[0].mxu0
    %v2384 = vadd.f32 %v1722, %v2383
    %v2385 = vpop.f32.mrb[0].mxu0
    %v2386 = vadd.f32 %v1726, %v2385
    %v2387 = vpop.f32.mrb[0].mxu0
    %v2388 = vadd.f32 %v1722, %v2387
    %v2389 = vpop.f32.mrb[0].mxu0
    %v2390 = vadd.f32 %v1726, %v2389
    %2391 = vmatprep.mubr.bf16.mxu0 %v1638
    %2392 = vmatmul.mubr.bf16.gmra.mrb[0].mxu0 %v1637
    %v2393 = vpop.f32.mrb[0].mxu0
    %v2394 = vadd.f32 %v1722, %v2393
    %v2395 = vpop.f32.mrb[0].mxu0
    %v2396 = vadd.f32 %v1726, %v2395
    %v2397 = vpop.f32.mrb[0].mxu0
    %v2398 = vadd.f32 %v1722, %v2397
    %v2399 = vpop.f32.mrb[0].mxu0
    %v2400 = vadd.f32 %v1726, %v2399
    %2401 = vmatprep.mubr.bf16.mxu0 %v1640
    %2402 = vmatmul.mubr.bf16.gmra.mrb[0].mxu0 %v1639
    %v2403 = vpop.f32.mrb[0].mxu0
    %v2404 = vadd.f32 %v1722, %v2403
    %v2405 = vpop.f32.mrb[0].mxu0
    %v2406 = vadd.f32 %v1726, %v2405
    %v2407 = vpop.f32.mrb[0].mxu0
    %v2408 = vadd.f32 %v1722, %v2407
    %v2409 = vpop.f32.mrb[0].mxu0
    %v2410 = vadd.f32 %v1726, %v2409
    %2411 = vmatprep.mubr.bf16.mxu0 %v1642
    %2412 = vmatmul.mubr.bf16.gmra.mrb[0].mxu0 %v1641
    %v2413 = vpop.f32.mrb[0].mxu0
    %v2414 = vadd.f32 %v1722, %v2413
    %v2415 = vpop.f32.mrb[0].mxu0
    %v2416 = vadd.f32 %v1726, %v2415
    %v2417 = vpop.f32.mrb[0].mxu0
    %v2418 = vadd.f32 %v1722, %v2417
    %v2419 = vpop.f32.mrb[0].mxu0
    %v2420 = vadd.f32 %v1726, %v2419
    %2421 = vmatprep.mubr.bf16.mxu0 %v1644
    %2422 = vmatmul.mubr.bf16.gmra.mrb[0].mxu0 %v1643
    %v2423 = vpop.f32.mrb[0].mxu0
    %v2424 = vadd.f32 %v1722, %v2423
    %v2425 = vpop.f32.mrb[0].mxu0
    %v2426 = vadd.f32 %v1726, %v2425
    %v2427 = vpop.f32.mrb[0].mxu0
    %v2428 = vadd.f32 %v1722, %v2427
    %v2429 = vpop.f32.mrb[0].mxu0
    %v2430 = vadd.f32 %v1726, %v2429
    %2431 = vmatprep.mubr.bf16.mxu0 %v1646
    %2432 = vmatmul.mubr.bf16.gmra.mrb[0].mxu0 %v1645
    %v2433 = vpop.f32.mrb[0].mxu0
    %v2434 = vadd.f32 %v1722, %v2433
    %v2435 = vpop.f32.mrb[0].mxu0
    %v2436 = vadd.f32 %v1726, %v2435
    %v2437 = vpop.f32.mrb[0].mxu0
    %v2438 = vadd.f32 %v1722, %v2437
    %v2439 = vpop.f32.mrb[0].mxu0
    %v2440 = vadd.f32 %v1726, %v2439
    %2441 = vmatprep.mubr.bf16.mxu0 %v1648
    %2442 = vmatmul.mubr.bf16.gmra.mrb[0].mxu0 %v1647
    %v2443 = vpop.f32.mrb[0].mxu0
    %v2444 = vadd.f32 %v1722, %v2443
    %v2445 = vpop.f32.mrb[0].mxu0
    %v2446 = vadd.f32 %v1726, %v2445
    %v2447 = vpop.f32.mrb[0].mxu0
    %v2448 = vadd.f32 %v1722, %v2447
    %v2449 = vpop.f32.mrb[0].mxu0
    %v2450 = vadd.f32 %v1726, %v2449
    %2451 = vmatprep.mubr.bf16.mxu0 %v1650
    %2452 = vmatmul.mubr.bf16.gmra.mrb[0].mxu0 %v1649
    %v2453 = vpop.f32.mrb[0].mxu0
    %v2454 = vadd.f32 %v1722, %v2453
    %v2455 = vpop.f32.mrb[0].mxu0
    %v2456 = vadd.f32 %v1726, %v2455
    %v2457 = vpop.f32.mrb[0].mxu0
    %v2458 = vadd.f32 %v1722, %v2457
    %v2459 = vpop.f32.mrb[0].mxu0
    %v2460 = vadd.f32 %v1726, %v2459
    %2461 = vmatprep.mubr.bf16.mxu0 %v1652
    %2462 = vmatmul.mubr.bf16.gmra.mrb[0].mxu0 %v1651
    %v2463 = vpop.f32.mrb[0].mxu0
    %v2464 = vadd.f32 %v1722, %v2463
    %v2465 = vpop.f32.mrb[0].mxu0
    %v2466 = vadd.f32 %v1726, %v2465
    %v2467 = vpop.f32.mrb[0].mxu0
    %v2468 = vpop.f32.mrb[0].mxu0
    %2469 = vdwg.mxu0
    %2470 = vmatprep.subr.bf16.mxu0 %v1934
    %2471 = vmatpush1.bf16.msra.mxu0 %v1933
    %2472 = vmatprep.subr.bf16.mxu0 %v1938
    %2473 = vmatpush1.bf16.msra.mxu0 %v1937
    %2474 = vmatprep.subr.bf16.mxu0 %v1942
    %2475 = vmatpush1.bf16.msra.mxu0 %v1941
    %2476 = vmatprep.subr.bf16.mxu0 %v1946
    %2477 = vmatpush1.bf16.msra.mxu0 %v1945
    %2478 = vmatprep.subr.bf16.mxu0 %v1950
    %2479 = vmatpush1.bf16.msra.mxu0 %v1949
    %2480 = vmatprep.subr.bf16.mxu0 %v1954
    %2481 = vmatpush1.bf16.msra.mxu0 %v1953
    %2482 = vmatprep.subr.bf16.mxu0 %v1958
    %2483 = vmatpush1.bf16.msra.mxu0 %v1957
    %2484 = vmatprep.subr.bf16.mxu0 %v1962
    %2485 = vmatpush1.bf16.msra.mxu0 %v1961
    %2486 = vmatprep.subr.bf16.mxu0 %v1966
    %2487 = vmatpush1.bf16.msra.mxu0 %v1965
    %2488 = vmatprep.subr.bf16.mxu0 %v1970
    %2489 = vmatpush1.bf16.msra.mxu0 %v1969
    %2490 = vmatprep.subr.bf16.mxu0 %v1974
    %2491 = vmatpush1.bf16.msra.mxu0 %v1973
    %2492 = vmatprep.subr.bf16.mxu0 %v1978
    %2493 = vmatpush1.bf16.msra.mxu0 %v1977
    %2494 = vmatprep.subr.bf16.mxu0 %v1982
    %2495 = vmatpush1.bf16.msra.mxu0 %v1981
    %2496 = vmatprep.subr.bf16.mxu0 %v1986
    %2497 = vmatpush1.bf16.msra.mxu0 %v1985
    %2498 = vmatprep.subr.bf16.mxu0 %v1990
    %2499 = vmatpush1.bf16.msra.mxu0 %v1989
    %2500 = vmatprep.subr.bf16.mxu0 %v1994
    %2501 = vmatpush1.bf16.msra.mxu0 %v1993
    %2502 = vmatprep.mubr.bf16.mxu0 %v1578
    %2503 = vmatmul.mubr.bf16.gmra.mrb[0].mxu0 %v1577
    %v2504 = vpop.f32.mrb[0].mxu0
    %v2505 = vadd.f32 %v1730, %v2504
    %v2506 = vpop.f32.mrb[0].mxu0
    %v2507 = vadd.f32 %v1734, %v2506
    %v2508 = vpop.f32.mrb[0].mxu0
    %v2509 = vadd.f32 %v1730, %v2508
    %v2510 = vpop.f32.mrb[0].mxu0
    %v2511 = vadd.f32 %v1734, %v2510
    %2512 = vmatprep.mubr.bf16.mxu0 %v1580
    %2513 = vmatmul.mubr.bf16.gmra.mrb[0].mxu0 %v1579
    %v2514 = vpop.f32.mrb[0].mxu0
    %v2515 = vadd.f32 %v1730, %v2514
    %v2516 = vpop.f32.mrb[0].mxu0
    %v2517 = vadd.f32 %v1734, %v2516
    %v2518 = vpop.f32.mrb[0].mxu0
    %v2519 = vadd.f32 %v1730, %v2518
    %v2520 = vpop.f32.mrb[0].mxu0
    %v2521 = vadd.f32 %v1734, %v2520
    %2522 = vmatprep.mubr.bf16.mxu0 %v1582
    %2523 = vmatmul.mubr.bf16.gmra.mrb[0].mxu0 %v1581
    %v2524 = vpop.f32.mrb[0].mxu0
    %v2525 = vadd.f32 %v1730, %v2524
    %v2526 = vpop.f32.mrb[0].mxu0
    %v2527 = vadd.f32 %v1734, %v2526
    %v2528 = vpop.f32.mrb[0].mxu0
    %v2529 = vadd.f32 %v1730, %v2528
    %v2530 = vpop.f32.mrb[0].mxu0
    %v2531 = vadd.f32 %v1734, %v2530
    %2532 = vmatprep.mubr.bf16.mxu0 %v1584
    %2533 = vmatmul.mubr.bf16.gmra.mrb[0].mxu0 %v1583
    %v2534 = vpop.f32.mrb[0].mxu0
    %v2535 = vadd.f32 %v1730, %v2534
    %v2536 = vpop.f32.mrb[0].mxu0
    %v2537 = vadd.f32 %v1734, %v2536
    %v2538 = vpop.f32.mrb[0].mxu0
    %v2539 = vadd.f32 %v1730, %v2538
    %v2540 = vpop.f32.mrb[0].mxu0
    %v2541 = vadd.f32 %v1734, %v2540
    %2542 = vmatprep.mubr.bf16.mxu0 %v1586
    %2543 = vmatmul.mubr.bf16.gmra.mrb[0].mxu0 %v1585
    %v2544 = vpop.f32.mrb[0].mxu0
    %v2545 = vadd.f32 %v1730, %v2544
    %v2546 = vpop.f32.mrb[0].mxu0
    %v2547 = vadd.f32 %v1734, %v2546
    %v2548 = vpop.f32.mrb[0].mxu0
    %v2549 = vadd.f32 %v1730, %v2548
    %v2550 = vpop.f32.mrb[0].mxu0
    %v2551 = vadd.f32 %v1734, %v2550
    %2552 = vmatprep.mubr.bf16.mxu0 %v1588
    %2553 = vmatmul.mubr.bf16.gmra.mrb[0].mxu0 %v1587
    %v2554 = vpop.f32.mrb[0].mxu0
    %v2555 = vadd.f32 %v1730, %v2554
    %v2556 = vpop.f32.mrb[0].mxu0
    %v2557 = vadd.f32 %v1734, %v2556
    %v2558 = vpop.f32.mrb[0].mxu0
    %v2559 = vadd.f32 %v1730, %v2558
    %v2560 = vpop.f32.mrb[0].mxu0
    %v2561 = vadd.f32 %v1734, %v2560
    %2562 = vmatprep.mubr.bf16.mxu0 %v1590
    %2563 = vmatmul.mubr.bf16.gmra.mrb[0].mxu0 %v1589
    %v2564 = vpop.f32.mrb[0].mxu0
    %v2565 = vadd.f32 %v1730, %v2564
    %v2566 = vpop.f32.mrb[0].mxu0
    %v2567 = vadd.f32 %v1734, %v2566
    %v2568 = vpop.f32.mrb[0].mxu0
    %v2569 = vadd.f32 %v1730, %v2568
    %v2570 = vpop.f32.mrb[0].mxu0
    %v2571 = vadd.f32 %v1734, %v2570
    %2572 = vmatprep.mubr.bf16.mxu0 %v1592
    %2573 = vmatmul.mubr.bf16.gmra.mrb[0].mxu0 %v1591
    %v2574 = vpop.f32.mrb[0].mxu0
    %v2575 = vadd.f32 %v1730, %v2574
    %v2576 = vpop.f32.mrb[0].mxu0
    %v2577 = vadd.f32 %v1734, %v2576
    %v2578 = vpop.f32.mrb[0].mxu0
    %v2579 = vadd.f32 %v1730, %v2578
    %v2580 = vpop.f32.mrb[0].mxu0
    %v2581 = vadd.f32 %v1734, %v2580
    %2582 = vmatprep.mubr.bf16.mxu0 %v1594
    %2583 = vmatmul.mubr.bf16.gmra.mrb[0].mxu0 %v1593
    %v2584 = vpop.f32.mrb[0].mxu0
    %v2585 = vadd.f32 %v1730, %v2584
    %v2586 = vpop.f32.mrb[0].mxu0
    %v2587 = vadd.f32 %v1734, %v2586
    %v2588 = vpop.f32.mrb[0].mxu0
    %v2589 = vadd.f32 %v1730, %v2588
    %v2590 = vpop.f32.mrb[0].mxu0
    %v2591 = vadd.f32 %v1734, %v2590
    %2592 = vmatprep.mubr.bf16.mxu0 %v1596
    %2593 = vmatmul.mubr.bf16.gmra.mrb[0].mxu0 %v1595
    %v2594 = vpop.f32.mrb[0].mxu0
    %v2595 = vadd.f32 %v1730, %v2594
    %v2596 = vpop.f32.mrb[0].mxu0
    %v2597 = vadd.f32 %v1734, %v2596
    %v2598 = vpop.f32.mrb[0].mxu0
    %v2599 = vadd.f32 %v1730, %v2598
    %v2600 = vpop.f32.mrb[0].mxu0
    %v2601 = vadd.f32 %v1734, %v2600
    %2602 = vmatprep.mubr.bf16.mxu0 %v1598
    %2603 = vmatmul.mubr.bf16.gmra.mrb[0].mxu0 %v1597
    %v2604 = vpop.f32.mrb[0].mxu0
    %v2605 = vadd.f32 %v1730, %v2604
    %v2606 = vpop.f32.mrb[0].mxu0
    %v2607 = vadd.f32 %v1734, %v2606
    %v2608 = vpop.f32.mrb[0].mxu0
    %v2609 = vadd.f32 %v1730, %v2608
    %v2610 = vpop.f32.mrb[0].mxu0
    %v2611 = vadd.f32 %v1734, %v2610
    %2612 = vmatprep.mubr.bf16.mxu0 %v1600
    %2613 = vmatmul.mubr.bf16.gmra.mrb[0].mxu0 %v1599
    %v2614 = vpop.f32.mrb[0].mxu0
    %v2615 = vadd.f32 %v1730, %v2614
    %v2616 = vpop.f32.mrb[0].mxu0
    %v2617 = vadd.f32 %v1734, %v2616
    %v2618 = vpop.f32.mrb[0].mxu0
    %v2619 = vadd.f32 %v1730, %v2618
    %v2620 = vpop.f32.mrb[0].mxu0
    %v2621 = vadd.f32 %v1734, %v2620
    %2622 = vmatprep.mubr.bf16.mxu0 %v1602
    %2623 = vmatmul.mubr.bf16.gmra.mrb[0].mxu0 %v1601
    %v2624 = vpop.f32.mrb[0].mxu0
    %v2625 = vadd.f32 %v1730, %v2624
    %v2626 = vpop.f32.mrb[0].mxu0
    %v2627 = vadd.f32 %v1734, %v2626
    %v2628 = vpop.f32.mrb[0].mxu0
    %v2629 = vadd.f32 %v1730, %v2628
    %v2630 = vpop.f32.mrb[0].mxu0
    %v2631 = vadd.f32 %v1734, %v2630
    %2632 = vmatprep.mubr.bf16.mxu0 %v1604
    %2633 = vmatmul.mubr.bf16.gmra.mrb[0].mxu0 %v1603
    %v2634 = vpop.f32.mrb[0].mxu0
    %v2635 = vadd.f32 %v1730, %v2634
    %v2636 = vpop.f32.mrb[0].mxu0
    %v2637 = vadd.f32 %v1734, %v2636
    %v2638 = vpop.f32.mrb[0].mxu0
    %v2639 = vadd.f32 %v1730, %v2638
    %v2640 = vpop.f32.mrb[0].mxu0
    %v2641 = vadd.f32 %v1734, %v2640
    %2642 = vmatprep.mubr.bf16.mxu0 %v1606
    %2643 = vmatmul.mubr.bf16.gmra.mrb[0].mxu0 %v1605
    %v2644 = vpop.f32.mrb[0].mxu0
    %v2645 = vadd.f32 %v1730, %v2644
    %v2646 = vpop.f32.mrb[0].mxu0
    %v2647 = vadd.f32 %v1734, %v2646
    %v2648 = vpop.f32.mrb[0].mxu0
    %v2649 = vadd.f32 %v1730, %v2648
    %v2650 = vpop.f32.mrb[0].mxu0
    %v2651 = vadd.f32 %v1734, %v2650
    %2652 = vmatprep.mubr.bf16.mxu0 %v1608
    %2653 = vmatmul.mubr.bf16.gmra.mrb[0].mxu0 %v1607
    %v2654 = vpop.f32.mrb[0].mxu0
    %v2655 = vadd.f32 %v1730, %v2654
    %v2656 = vpop.f32.mrb[0].mxu0
    %v2657 = vadd.f32 %v1734, %v2656
    %v2658 = vpop.f32.mrb[0].mxu0
    %v2659 = vadd.f32 %v1730, %v2658
    %v2660 = vpop.f32.mrb[0].mxu0
    %v2661 = vadd.f32 %v1734, %v2660
    %2662 = vmatprep.mubr.bf16.mxu0 %v1610
    %2663 = vmatmul.mubr.bf16.gmra.mrb[0].mxu0 %v1609
    %v2664 = vpop.f32.mrb[0].mxu0
    %v2665 = vadd.f32 %v1730, %v2664
    %v2666 = vpop.f32.mrb[0].mxu0
    %v2667 = vadd.f32 %v1734, %v2666
    %v2668 = vpop.f32.mrb[0].mxu0
    %v2669 = vadd.f32 %v1730, %v2668
    %v2670 = vpop.f32.mrb[0].mxu0
    %v2671 = vadd.f32 %v1734, %v2670
    %2672 = vmatprep.mubr.bf16.mxu0 %v1612
    %2673 = vmatmul.mubr.bf16.gmra.mrb[0].mxu0 %v1611
    %v2674 = vpop.f32.mrb[0].mxu0
    %v2675 = vadd.f32 %v1730, %v2674
    %v2676 = vpop.f32.mrb[0].mxu0
    %v2677 = vadd.f32 %v1734, %v2676
    %v2678 = vpop.f32.mrb[0].mxu0
    %v2679 = vadd.f32 %v1730, %v2678
    %v2680 = vpop.f32.mrb[0].mxu0
    %v2681 = vadd.f32 %v1734, %v2680
    %2682 = vmatprep.mubr.bf16.mxu0 %v1614
    %2683 = vmatmul.mubr.bf16.gmra.mrb[0].mxu0 %v1613
    %v2684 = vpop.f32.mrb[0].mxu0
    %v2685 = vadd.f32 %v1730, %v2684
    %v2686 = vpop.f32.mrb[0].mxu0
    %v2687 = vadd.f32 %v1734, %v2686
    %v2688 = vpop.f32.mrb[0].mxu0
    %v2689 = vadd.f32 %v1730, %v2688
    %v2690 = vpop.f32.mrb[0].mxu0
    %v2691 = vadd.f32 %v1734, %v2690
    %2692 = vmatprep.mubr.bf16.mxu0 %v1616
    %2693 = vmatmul.mubr.bf16.gmra.mrb[0].mxu0 %v1615
    %v2694 = vpop.f32.mrb[0].mxu0
    %v2695 = vadd.f32 %v1730, %v2694
    %v2696 = vpop.f32.mrb[0].mxu0
    %v2697 = vadd.f32 %v1734, %v2696
    %v2698 = vpop.f32.mrb[0].mxu0
    %v2699 = vadd.f32 %v1730, %v2698
    %v2700 = vpop.f32.mrb[0].mxu0
    %v2701 = vadd.f32 %v1734, %v2700
    %2702 = vmatprep.mubr.bf16.mxu0 %v1618
    %2703 = vmatmul.mubr.bf16.gmra.mrb[0].mxu0 %v1617
    %v2704 = vpop.f32.mrb[0].mxu0
    %v2705 = vadd.f32 %v1730, %v2704
    %v2706 = vpop.f32.mrb[0].mxu0
    %v2707 = vadd.f32 %v1734, %v2706
    %v2708 = vpop.f32.mrb[0].mxu0
    %v2709 = vadd.f32 %v1730, %v2708
    %v2710 = vpop.f32.mrb[0].mxu0
    %v2711 = vadd.f32 %v1734, %v2710
    %2712 = vmatprep.mubr.bf16.mxu0 %v1620
    %2713 = vmatmul.mubr.bf16.gmra.mrb[0].mxu0 %v1619
    %v2714 = vpop.f32.mrb[0].mxu0
    %v2715 = vadd.f32 %v1730, %v2714
    %v2716 = vpop.f32.mrb[0].mxu0
    %v2717 = vadd.f32 %v1734, %v2716
    %v2718 = vpop.f32.mrb[0].mxu0
    %v2719 = vadd.f32 %v1730, %v2718
    %v2720 = vpop.f32.mrb[0].mxu0
    %v2721 = vadd.f32 %v1734, %v2720
    %2722 = vmatprep.mubr.bf16.mxu0 %v1622
    %2723 = vmatmul.mubr.bf16.gmra.mrb[0].mxu0 %v1621
    %v2724 = vpop.f32.mrb[0].mxu0
    %v2725 = vadd.f32 %v1730, %v2724
    %v2726 = vpop.f32.mrb[0].mxu0
    %v2727 = vadd.f32 %v1734, %v2726
    %v2728 = vpop.f32.mrb[0].mxu0
    %v2729 = vadd.f32 %v1730, %v2728
    %v2730 = vpop.f32.mrb[0].mxu0
    %v2731 = vadd.f32 %v1734, %v2730
    %2732 = vmatprep.mubr.bf16.mxu0 %v1624
    %2733 = vmatmul.mubr.bf16.gmra.mrb[0].mxu0 %v1623
    %v2734 = vpop.f32.mrb[0].mxu0
    %v2735 = vadd.f32 %v1730, %v2734
    %v2736 = vpop.f32.mrb[0].mxu0
    %v2737 = vadd.f32 %v1734, %v2736
    %v2738 = vpop.f32.mrb[0].mxu0
    %v2739 = vadd.f32 %v1730, %v2738
    %v2740 = vpop.f32.mrb[0].mxu0
    %v2741 = vadd.f32 %v1734, %v2740
    %2742 = vmatprep.mubr.bf16.mxu0 %v1626
    %2743 = vmatmul.mubr.bf16.gmra.mrb[0].mxu0 %v1625
    %v2744 = vpop.f32.mrb[0].mxu0
    %v2745 = vadd.f32 %v1730, %v2744
    %v2746 = vpop.f32.mrb[0].mxu0
    %v2747 = vadd.f32 %v1734, %v2746
    %v2748 = vpop.f32.mrb[0].mxu0
    %v2749 = vadd.f32 %v1730, %v2748
    %v2750 = vpop.f32.mrb[0].mxu0
    %v2751 = vadd.f32 %v1734, %v2750
    %2752 = vmatprep.mubr.bf16.mxu0 %v1628
    %2753 = vmatmul.mubr.bf16.gmra.mrb[0].mxu0 %v1627
    %v2754 = vpop.f32.mrb[0].mxu0
    %v2755 = vadd.f32 %v1730, %v2754
    %v2756 = vpop.f32.mrb[0].mxu0
    %v2757 = vadd.f32 %v1734, %v2756
    %v2758 = vpop.f32.mrb[0].mxu0
    %v2759 = vadd.f32 %v1730, %v2758
    %v2760 = vpop.f32.mrb[0].mxu0
    %v2761 = vadd.f32 %v1734, %v2760
    %2762 = vmatprep.mubr.bf16.mxu0 %v1630
    %2763 = vmatmul.mubr.bf16.gmra.mrb[0].mxu0 %v1629
    %v2764 = vpop.f32.mrb[0].mxu0
    %v2765 = vadd.f32 %v1730, %v2764
    %v2766 = vpop.f32.mrb[0].mxu0
    %v2767 = vadd.f32 %v1734, %v2766
    %v2768 = vpop.f32.mrb[0].mxu0
    %v2769 = vadd.f32 %v1730, %v2768
    %v2770 = vpop.f32.mrb[0].mxu0
    %v2771 = vadd.f32 %v1734, %v2770
    %2772 = vmatprep.mubr.bf16.mxu0 %v1632
    %2773 = vmatmul.mubr.bf16.gmra.mrb[0].mxu0 %v1631
    %v2774 = vpop.f32.mrb[0].mxu0
    %v2775 = vadd.f32 %v1730, %v2774
    %v2776 = vpop.f32.mrb[0].mxu0
    %v2777 = vadd.f32 %v1734, %v2776
    %v2778 = vpop.f32.mrb[0].mxu0
    %v2779 = vadd.f32 %v1730, %v2778
    %v2780 = vpop.f32.mrb[0].mxu0
    %v2781 = vadd.f32 %v1734, %v2780
    %2782 = vmatprep.mubr.bf16.mxu0 %v1634
    %2783 = vmatmul.mubr.bf16.gmra.mrb[0].mxu0 %v1633
    %v2784 = vpop.f32.mrb[0].mxu0
    %v2785 = vadd.f32 %v1730, %v2784
    %v2786 = vpop.f32.mrb[0].mxu0
    %v2787 = vadd.f32 %v1734, %v2786
    %v2788 = vpop.f32.mrb[0].mxu0
    %v2789 = vadd.f32 %v1730, %v2788
    %v2790 = vpop.f32.mrb[0].mxu0
    %v2791 = vadd.f32 %v1734, %v2790
    %2792 = vmatprep.mubr.bf16.mxu0 %v1636
    %2793 = vmatmul.mubr.bf16.gmra.mrb[0].mxu0 %v1635
    %v2794 = vpop.f32.mrb[0].mxu0
    %v2795 = vadd.f32 %v1730, %v2794
    %v2796 = vpop.f32.mrb[0].mxu0
    %v2797 = vadd.f32 %v1734, %v2796
    %v2798 = vpop.f32.mrb[0].mxu0
    %v2799 = vadd.f32 %v1730, %v2798
    %v2800 = vpop.f32.mrb[0].mxu0
    %v2801 = vadd.f32 %v1734, %v2800
    %2802 = vmatprep.mubr.bf16.mxu0 %v1638
    %2803 = vmatmul.mubr.bf16.gmra.mrb[0].mxu0 %v1637
    %v2804 = vpop.f32.mrb[0].mxu0
    %v2805 = vadd.f32 %v1730, %v2804
    %v2806 = vpop.f32.mrb[0].mxu0
    %v2807 = vadd.f32 %v1734, %v2806
    %v2808 = vpop.f32.mrb[0].mxu0
    %v2809 = vadd.f32 %v1730, %v2808
    %v2810 = vpop.f32.mrb[0].mxu0
    %v2811 = vadd.f32 %v1734, %v2810
    %2812 = vmatprep.mubr.bf16.mxu0 %v1640
    %2813 = vmatmul.mubr.bf16.gmra.mrb[0].mxu0 %v1639
    %v2814 = vpop.f32.mrb[0].mxu0
    %v2815 = vadd.f32 %v1730, %v2814
    %v2816 = vpop.f32.mrb[0].mxu0
    %v2817 = vadd.f32 %v1734, %v2816
    %v2818 = vpop.f32.mrb[0].mxu0
    %v2819 = vadd.f32 %v1730, %v2818
    %v2820 = vpop.f32.mrb[0].mxu0
    %v2821 = vadd.f32 %v1734, %v2820
    %2822 = vmatprep.mubr.bf16.mxu0 %v1642
    %2823 = vmatmul.mubr.bf16.gmra.mrb[0].mxu0 %v1641
    %v2824 = vpop.f32.mrb[0].mxu0
    %v2825 = vadd.f32 %v1730, %v2824
    %v2826 = vpop.f32.mrb[0].mxu0
    %v2827 = vadd.f32 %v1734, %v2826
    %v2828 = vpop.f32.mrb[0].mxu0
    %v2829 = vadd.f32 %v1730, %v2828
    %v2830 = vpop.f32.mrb[0].mxu0
    %v2831 = vadd.f32 %v1734, %v2830
    %2832 = vmatprep.mubr.bf16.mxu0 %v1644
    %2833 = vmatmul.mubr.bf16.gmra.mrb[0].mxu0 %v1643
    %v2834 = vpop.f32.mrb[0].mxu0
    %v2835 = vadd.f32 %v1730, %v2834
    %v2836 = vpop.f32.mrb[0].mxu0
    %v2837 = vadd.f32 %v1734, %v2836
    %v2838 = vpop.f32.mrb[0].mxu0
    %v2839 = vadd.f32 %v1730, %v2838
    %v2840 = vpop.f32.mrb[0].mxu0
    %v2841 = vadd.f32 %v1734, %v2840
    %2842 = vmatprep.mubr.bf16.mxu0 %v1646
    %2843 = vmatmul.mubr.bf16.gmra.mrb[0].mxu0 %v1645
    %v2844 = vpop.f32.mrb[0].mxu0
    %v2845 = vadd.f32 %v1730, %v2844
    %v2846 = vpop.f32.mrb[0].mxu0
    %v2847 = vadd.f32 %v1734, %v2846
    %v2848 = vpop.f32.mrb[0].mxu0
    %v2849 = vadd.f32 %v1730, %v2848
    %v2850 = vpop.f32.mrb[0].mxu0
    %v2851 = vadd.f32 %v1734, %v2850
    %2852 = vmatprep.mubr.bf16.mxu0 %v1648
    %2853 = vmatmul.mubr.bf16.gmra.mrb[0].mxu0 %v1647
    %v2854 = vpop.f32.mrb[0].mxu0
    %v2855 = vadd.f32 %v1730, %v2854
    %v2856 = vpop.f32.mrb[0].mxu0
    %v2857 = vadd.f32 %v1734, %v2856
    %v2858 = vpop.f32.mrb[0].mxu0
    %v2859 = vadd.f32 %v1730, %v2858
    %v2860 = vpop.f32.mrb[0].mxu0
    %v2861 = vadd.f32 %v1734, %v2860
    %2862 = vmatprep.mubr.bf16.mxu0 %v1650
    %2863 = vmatmul.mubr.bf16.gmra.mrb[0].mxu0 %v1649
    %v2864 = vpop.f32.mrb[0].mxu0
    %v2865 = vadd.f32 %v1730, %v2864
    %v2866 = vpop.f32.mrb[0].mxu0
    %v2867 = vadd.f32 %v1734, %v2866
    %v2868 = vpop.f32.mrb[0].mxu0
    %v2869 = vadd.f32 %v1730, %v2868
    %v2870 = vpop.f32.mrb[0].mxu0
    %v2871 = vadd.f32 %v1734, %v2870
    %2872 = vmatprep.mubr.bf16.mxu0 %v1652
    %2873 = vmatmul.mubr.bf16.gmra.mrb[0].mxu0 %v1651
    %v2874 = vpop.f32.mrb[0].mxu0
    %v2875 = vadd.f32 %v1730, %v2874
    %v2876 = vpop.f32.mrb[0].mxu0
    %v2877 = vadd.f32 %v1734, %v2876
    %v2878 = vpop.f32.mrb[0].mxu0
    %v2879 = vpop.f32.mrb[0].mxu0
    %2880 = vdwg.mxu0
    %v2881 = vmax.f32 %v2094, 0.0
    %v2882 = vmax.f32 %v2096, 0.0
    %v2883 = vmax.f32 %v2505, 0.0
    %v2884 = vmax.f32 %v2507, 0.0
    %v2885 = vmax.f32 %v2098, 0.0
    %v2886 = vmax.f32 %v2100, 0.0
    %v2887 = vmax.f32 %v2509, 0.0
    %v2888 = vmax.f32 %v2511, 0.0
    %v2889 = vmax.f32 %v2104, 0.0
    %v2890 = vmax.f32 %v2106, 0.0
    %v2891 = vmax.f32 %v2515, 0.0
    %v2892 = vmax.f32 %v2517, 0.0
    %v2893 = vmax.f32 %v2108, 0.0
    %v2894 = vmax.f32 %v2110, 0.0
    %v2895 = vmax.f32 %v2519, 0.0
    %v2896 = vmax.f32 %v2521, 0.0
    %v2897 = vmax.f32 %v2114, 0.0
    %v2898 = vmax.f32 %v2116, 0.0
    %v2899 = vmax.f32 %v2525, 0.0
    %v2900 = vmax.f32 %v2527, 0.0
    %v2901 = vmax.f32 %v2118, 0.0
    %v2902 = vmax.f32 %v2120, 0.0
    %v2903 = vmax.f32 %v2529, 0.0
    %v2904 = vmax.f32 %v2531, 0.0
    %v2905 = vmax.f32 %v2124, 0.0
    %v2906 = vmax.f32 %v2126, 0.0
    %v2907 = vmax.f32 %v2535, 0.0
    %v2908 = vmax.f32 %v2537, 0.0
    %v2909 = vmax.f32 %v2128, 0.0
    %v2910 = vmax.f32 %v2130, 0.0
    %v2911 = vmax.f32 %v2539, 0.0
    %v2912 = vmax.f32 %v2541, 0.0
    %v2913 = vmax.f32 %v2134, 0.0
    %v2914 = vmax.f32 %v2136, 0.0
    %v2915 = vmax.f32 %v2545, 0.0
    %v2916 = vmax.f32 %v2547, 0.0
    %v2917 = vmax.f32 %v2138, 0.0
    %v2918 = vmax.f32 %v2140, 0.0
    %v2919 = vmax.f32 %v2549, 0.0
    %v2920 = vmax.f32 %v2551, 0.0
    %v2921 = vmax.f32 %v2144, 0.0
    %v2922 = vmax.f32 %v2146, 0.0
    %v2923 = vmax.f32 %v2555, 0.0
    %v2924 = vmax.f32 %v2557, 0.0
    %v2925 = vmax.f32 %v2148, 0.0
    %v2926 = vmax.f32 %v2150, 0.0
    %v2927 = vmax.f32 %v2559, 0.0
    %v2928 = vmax.f32 %v2561, 0.0
    %v2929 = vmax.f32 %v2154, 0.0
    %v2930 = vmax.f32 %v2156, 0.0
    %v2931 = vmax.f32 %v2565, 0.0
    %v2932 = vmax.f32 %v2567, 0.0
    %v2933 = vmax.f32 %v2158, 0.0
    %v2934 = vmax.f32 %v2160, 0.0
    %v2935 = vmax.f32 %v2569, 0.0
    %v2936 = vmax.f32 %v2571, 0.0
    %v2937 = vmax.f32 %v2164, 0.0
    %v2938 = vmax.f32 %v2166, 0.0
    %v2939 = vmax.f32 %v2575, 0.0
    %v2940 = vmax.f32 %v2577, 0.0
    %v2941 = vmax.f32 %v2168, 0.0
    %v2942 = vmax.f32 %v2170, 0.0
    %v2943 = vmax.f32 %v2579, 0.0
    %v2944 = vmax.f32 %v2581, 0.0
    %v2945 = vmax.f32 %v2174, 0.0
    %v2946 = vmax.f32 %v2176, 0.0
    %v2947 = vmax.f32 %v2585, 0.0
    %v2948 = vmax.f32 %v2587, 0.0
    %v2949 = vmax.f32 %v2178, 0.0
    %v2950 = vmax.f32 %v2180, 0.0
    %v2951 = vmax.f32 %v2589, 0.0
    %v2952 = vmax.f32 %v2591, 0.0
    %v2953 = vmax.f32 %v2184, 0.0
    %v2954 = vmax.f32 %v2186, 0.0
    %v2955 = vmax.f32 %v2595, 0.0
    %v2956 = vmax.f32 %v2597, 0.0
    %v2957 = vmax.f32 %v2188, 0.0
    %v2958 = vmax.f32 %v2190, 0.0
    %v2959 = vmax.f32 %v2599, 0.0
    %v2960 = vmax.f32 %v2601, 0.0
    %v2961 = vmax.f32 %v2194, 0.0
    %v2962 = vmax.f32 %v2196, 0.0
    %v2963 = vmax.f32 %v2605, 0.0
    %v2964 = vmax.f32 %v2607, 0.0
    %v2965 = vmax.f32 %v2198, 0.0
    %v2966 = vmax.f32 %v2200, 0.0
    %v2967 = vmax.f32 %v2609, 0.0
    %v2968 = vmax.f32 %v2611, 0.0
    %v2969 = vmax.f32 %v2204, 0.0
    %v2970 = vmax.f32 %v2206, 0.0
    %v2971 = vmax.f32 %v2615, 0.0
    %v2972 = vmax.f32 %v2617, 0.0
    %v2973 = vmax.f32 %v2208, 0.0
    %v2974 = vmax.f32 %v2210, 0.0
    %v2975 = vmax.f32 %v2619, 0.0
    %v2976 = vmax.f32 %v2621, 0.0
    %v2977 = vmax.f32 %v2214, 0.0
    %v2978 = vmax.f32 %v2216, 0.0
    %v2979 = vmax.f32 %v2625, 0.0
    %v2980 = vmax.f32 %v2627, 0.0
    %v2981 = vmax.f32 %v2218, 0.0
    %v2982 = vmax.f32 %v2220, 0.0
    %v2983 = vmax.f32 %v2629, 0.0
    %v2984 = vmax.f32 %v2631, 0.0
    %v2985 = vmax.f32 %v2224, 0.0
    %v2986 = vmax.f32 %v2226, 0.0
    %v2987 = vmax.f32 %v2635, 0.0
    %v2988 = vmax.f32 %v2637, 0.0
    %v2989 = vmax.f32 %v2228, 0.0
    %v2990 = vmax.f32 %v2230, 0.0
    %v2991 = vmax.f32 %v2639, 0.0
    %v2992 = vmax.f32 %v2641, 0.0
    %v2993 = vmax.f32 %v2234, 0.0
    %v2994 = vmax.f32 %v2236, 0.0
    %v2995 = vmax.f32 %v2645, 0.0
    %v2996 = vmax.f32 %v2647, 0.0
    %v2997 = vmax.f32 %v2238, 0.0
    %v2998 = vmax.f32 %v2240, 0.0
    %v2999 = vmax.f32 %v2649, 0.0
    %v3000 = vmax.f32 %v2651, 0.0
    %v3001 = vmax.f32 %v2244, 0.0
    %v3002 = vmax.f32 %v2246, 0.0
    %v3003 = vmax.f32 %v2655, 0.0
    %v3004 = vmax.f32 %v2657, 0.0
    %v3005 = vmax.f32 %v2248, 0.0
    %v3006 = vmax.f32 %v2250, 0.0
    %v3007 = vmax.f32 %v2659, 0.0
    %v3008 = vmax.f32 %v2661, 0.0
    %v3009 = vmax.f32 %v2254, 0.0
    %v3010 = vmax.f32 %v2256, 0.0
    %v3011 = vmax.f32 %v2665, 0.0
    %v3012 = vmax.f32 %v2667, 0.0
    %v3013 = vmax.f32 %v2258, 0.0
    %v3014 = vmax.f32 %v2260, 0.0
    %v3015 = vmax.f32 %v2669, 0.0
    %v3016 = vmax.f32 %v2671, 0.0
    %v3017 = vmax.f32 %v2264, 0.0
    %v3018 = vmax.f32 %v2266, 0.0
    %v3019 = vmax.f32 %v2675, 0.0
    %v3020 = vmax.f32 %v2677, 0.0
    %v3021 = vmax.f32 %v2268, 0.0
    %v3022 = vmax.f32 %v2270, 0.0
    %v3023 = vmax.f32 %v2679, 0.0
    %v3024 = vmax.f32 %v2681, 0.0
    %v3025 = vmax.f32 %v2274, 0.0
    %v3026 = vmax.f32 %v2276, 0.0
    %v3027 = vmax.f32 %v2685, 0.0
    %v3028 = vmax.f32 %v2687, 0.0
    %v3029 = vmax.f32 %v2278, 0.0
    %v3030 = vmax.f32 %v2280, 0.0
    %v3031 = vmax.f32 %v2689, 0.0
    %v3032 = vmax.f32 %v2691, 0.0
    %v3033 = vmax.f32 %v2284, 0.0
    %v3034 = vmax.f32 %v2286, 0.0
    %v3035 = vmax.f32 %v2695, 0.0
    %v3036 = vmax.f32 %v2697, 0.0
    %v3037 = vmax.f32 %v2288, 0.0
    %v3038 = vmax.f32 %v2290, 0.0
    %v3039 = vmax.f32 %v2699, 0.0
    %v3040 = vmax.f32 %v2701, 0.0
    %v3041 = vmax.f32 %v2294, 0.0
    %v3042 = vmax.f32 %v2296, 0.0
    %v3043 = vmax.f32 %v2705, 0.0
    %v3044 = vmax.f32 %v2707, 0.0
    %v3045 = vmax.f32 %v2298, 0.0
    %v3046 = vmax.f32 %v2300, 0.0
    %v3047 = vmax.f32 %v2709, 0.0
    %v3048 = vmax.f32 %v2711, 0.0
    %v3049 = vmax.f32 %v2304, 0.0
    %v3050 = vmax.f32 %v2306, 0.0
    %v3051 = vmax.f32 %v2715, 0.0
    %v3052 = vmax.f32 %v2717, 0.0
    %v3053 = vmax.f32 %v2308, 0.0
    %v3054 = vmax.f32 %v2310, 0.0
    %v3055 = vmax.f32 %v2719, 0.0
    %v3056 = vmax.f32 %v2721, 0.0
    %v3057 = vmax.f32 %v2314, 0.0
    %v3058 = vmax.f32 %v2316, 0.0
    %v3059 = vmax.f32 %v2725, 0.0
    %v3060 = vmax.f32 %v2727, 0.0
    %v3061 = vmax.f32 %v2318, 0.0
    %v3062 = vmax.f32 %v2320, 0.0
    %v3063 = vmax.f32 %v2729, 0.0
    %v3064 = vmax.f32 %v2731, 0.0
    %v3065 = vmax.f32 %v2324, 0.0
    %v3066 = vmax.f32 %v2326, 0.0
    %v3067 = vmax.f32 %v2735, 0.0
    %v3068 = vmax.f32 %v2737, 0.0
    %v3069 = vmax.f32 %v2328, 0.0
    %v3070 = vmax.f32 %v2330, 0.0
    %v3071 = vmax.f32 %v2739, 0.0
    %v3072 = vmax.f32 %v2741, 0.0
    %v3073 = vmax.f32 %v2334, 0.0
    %v3074 = vmax.f32 %v2336, 0.0
    %v3075 = vmax.f32 %v2745, 0.0
    %v3076 = vmax.f32 %v2747, 0.0
    %v3077 = vmax.f32 %v2338, 0.0
    %v3078 = vmax.f32 %v2340, 0.0
    %v3079 = vmax.f32 %v2749, 0.0
    %v3080 = vmax.f32 %v2751, 0.0
    %v3081 = vmax.f32 %v2344, 0.0
    %v3082 = vmax.f32 %v2346, 0.0
    %v3083 = vmax.f32 %v2755, 0.0
    %v3084 = vmax.f32 %v2757, 0.0
    %v3085 = vmax.f32 %v2348, 0.0
    %v3086 = vmax.f32 %v2350, 0.0
    %v3087 = vmax.f32 %v2759, 0.0
    %v3088 = vmax.f32 %v2761, 0.0
    %v3089 = vmax.f32 %v2354, 0.0
    %v3090 = vmax.f32 %v2356, 0.0
    %v3091 = vmax.f32 %v2765, 0.0
    %v3092 = vmax.f32 %v2767, 0.0
    %v3093 = vmax.f32 %v2358, 0.0
    %v3094 = vmax.f32 %v2360, 0.0
    %v3095 = vmax.f32 %v2769, 0.0
    %v3096 = vmax.f32 %v2771, 0.0
    %v3097 = vmax.f32 %v2364, 0.0
    %v3098 = vmax.f32 %v2366, 0.0
    %v3099 = vmax.f32 %v2775, 0.0
    %v3100 = vmax.f32 %v2777, 0.0
    %v3101 = vmax.f32 %v2368, 0.0
    %v3102 = vmax.f32 %v2370, 0.0
    %v3103 = vmax.f32 %v2779, 0.0
    %v3104 = vmax.f32 %v2781, 0.0
    %v3105 = vmax.f32 %v2374, 0.0
    %v3106 = vmax.f32 %v2376, 0.0
    %v3107 = vmax.f32 %v2785, 0.0
    %v3108 = vmax.f32 %v2787, 0.0
    %v3109 = vmax.f32 %v2378, 0.0
    %v3110 = vmax.f32 %v2380, 0.0
    %v3111 = vmax.f32 %v2789, 0.0
    %v3112 = vmax.f32 %v2791, 0.0
    %v3113 = vmax.f32 %v2384, 0.0
    %v3114 = vmax.f32 %v2386, 0.0
    %v3115 = vmax.f32 %v2795, 0.0
    %v3116 = vmax.f32 %v2797, 0.0
    %v3117 = vmax.f32 %v2388, 0.0
    %v3118 = vmax.f32 %v2390, 0.0
    %v3119 = vmax.f32 %v2799, 0.0
    %v3120 = vmax.f32 %v2801, 0.0
    %v3121 = vmax.f32 %v2394, 0.0
    %v3122 = vmax.f32 %v2396, 0.0
    %v3123 = vmax.f32 %v2805, 0.0
    %v3124 = vmax.f32 %v2807, 0.0
    %v3125 = vmax.f32 %v2398, 0.0
    %v3126 = vmax.f32 %v2400, 0.0
    %v3127 = vmax.f32 %v2809, 0.0
    %v3128 = vmax.f32 %v2811, 0.0
    %v3129 = vmax.f32 %v2404, 0.0
    %v3130 = vmax.f32 %v2406, 0.0
    %v3131 = vmax.f32 %v2815, 0.0
    %v3132 = vmax.f32 %v2817, 0.0
    %v3133 = vmax.f32 %v2408, 0.0
    %v3134 = vmax.f32 %v2410, 0.0
    %v3135 = vmax.f32 %v2819, 0.0
    %v3136 = vmax.f32 %v2821, 0.0
    %v3137 = vmax.f32 %v2414, 0.0
    %v3138 = vmax.f32 %v2416, 0.0
    %v3139 = vmax.f32 %v2825, 0.0
    %v3140 = vmax.f32 %v2827, 0.0
    %v3141 = vmax.f32 %v2418, 0.0
    %v3142 = vmax.f32 %v2420, 0.0
    %v3143 = vmax.f32 %v2829, 0.0
    %v3144 = vmax.f32 %v2831, 0.0
    %v3145 = vmax.f32 %v2424, 0.0
    %v3146 = vmax.f32 %v2426, 0.0
    %v3147 = vmax.f32 %v2835, 0.0
    %v3148 = vmax.f32 %v2837, 0.0
    %v3149 = vmax.f32 %v2428, 0.0
    %v3150 = vmax.f32 %v2430, 0.0
    %v3151 = vmax.f32 %v2839, 0.0
    %v3152 = vmax.f32 %v2841, 0.0
    %v3153 = vmax.f32 %v2434, 0.0
    %v3154 = vmax.f32 %v2436, 0.0
    %v3155 = vmax.f32 %v2845, 0.0
    %v3156 = vmax.f32 %v2847, 0.0
    %v3157 = vmax.f32 %v2438, 0.0
    %v3158 = vmax.f32 %v2440, 0.0
    %v3159 = vmax.f32 %v2849, 0.0
    %v3160 = vmax.f32 %v2851, 0.0
    %v3161 = vmax.f32 %v2444, 0.0
    %v3162 = vmax.f32 %v2446, 0.0
    %v3163 = vmax.f32 %v2855, 0.0
    %v3164 = vmax.f32 %v2857, 0.0
    %v3165 = vmax.f32 %v2448, 0.0
    %v3166 = vmax.f32 %v2450, 0.0
    %v3167 = vmax.f32 %v2859, 0.0
    %v3168 = vmax.f32 %v2861, 0.0
    %v3169 = vmax.f32 %v2454, 0.0
    %v3170 = vmax.f32 %v2456, 0.0
    %v3171 = vmax.f32 %v2865, 0.0
    %v3172 = vmax.f32 %v2867, 0.0
    %v3173 = vmax.f32 %v2458, 0.0
    %v3174 = vmax.f32 %v2460, 0.0
    %v3175 = vmax.f32 %v2869, 0.0
    %v3176 = vmax.f32 %v2871, 0.0
    %v3177 = vmax.f32 %v2464, 0.0
    %v3178 = vmax.f32 %v2466, 0.0
    %v3179 = vmax.f32 %v2875, 0.0
    %v3180 = vmax.f32 %v2877, 0.0
    %v3181 = vpack.c.bf16 %v2885, %v2881
    %v3182 = vpack.c.bf16 %v2886, %v2882
    %v3183 = vpack.c.bf16 %v2887, %v2883
    %v3184 = vpack.c.bf16 %v2888, %v2884
    %v3185 = vpack.c.bf16 %v2893, %v2889
    %v3186 = vpack.c.bf16 %v2894, %v2890
    %v3187 = vpack.c.bf16 %v2895, %v2891
    %v3188 = vpack.c.bf16 %v2896, %v2892
    %v3189 = vpack.c.bf16 %v2901, %v2897
    %v3190 = vpack.c.bf16 %v2902, %v2898
    %v3191 = vpack.c.bf16 %v2903, %v2899
    %v3192 = vpack.c.bf16 %v2904, %v2900
    %v3193 = vpack.c.bf16 %v2909, %v2905
    %v3194 = vpack.c.bf16 %v2910, %v2906
    %v3195 = vpack.c.bf16 %v2911, %v2907
    %v3196 = vpack.c.bf16 %v2912, %v2908
    %v3197 = vpack.c.bf16 %v2917, %v2913
    %v3198 = vpack.c.bf16 %v2918, %v2914
    %v3199 = vpack.c.bf16 %v2919, %v2915
    %v3200 = vpack.c.bf16 %v2920, %v2916
    %v3201 = vpack.c.bf16 %v2925, %v2921
    %v3202 = vpack.c.bf16 %v2926, %v2922
    %v3203 = vpack.c.bf16 %v2927, %v2923
    %v3204 = vpack.c.bf16 %v2928, %v2924
    %v3205 = vpack.c.bf16 %v2933, %v2929
    %v3206 = vpack.c.bf16 %v2934, %v2930
    %v3207 = vpack.c.bf16 %v2935, %v2931
    %v3208 = vpack.c.bf16 %v2936, %v2932
    %v3209 = vpack.c.bf16 %v2941, %v2937
    %v3210 = vpack.c.bf16 %v2942, %v2938
    %v3211 = vpack.c.bf16 %v2943, %v2939
    %v3212 = vpack.c.bf16 %v2944, %v2940
    %v3213 = vpack.c.bf16 %v2949, %v2945
    %v3214 = vpack.c.bf16 %v2950, %v2946
    %v3215 = vpack.c.bf16 %v2951, %v2947
    %v3216 = vpack.c.bf16 %v2952, %v2948
    %v3217 = vpack.c.bf16 %v2957, %v2953
    %v3218 = vpack.c.bf16 %v2958, %v2954
    %v3219 = vpack.c.bf16 %v2959, %v2955
    %v3220 = vpack.c.bf16 %v2960, %v2956
    %v3221 = vpack.c.bf16 %v2965, %v2961
    %v3222 = vpack.c.bf16 %v2966, %v2962
    %v3223 = vpack.c.bf16 %v2967, %v2963
    %v3224 = vpack.c.bf16 %v2968, %v2964
    %v3225 = vpack.c.bf16 %v2973, %v2969
    %v3226 = vpack.c.bf16 %v2974, %v2970
    %v3227 = vpack.c.bf16 %v2975, %v2971
    %v3228 = vpack.c.bf16 %v2976, %v2972
    %v3229 = vpack.c.bf16 %v2981, %v2977
    %v3230 = vpack.c.bf16 %v2982, %v2978
    %v3231 = vpack.c.bf16 %v2983, %v2979
    %v3232 = vpack.c.bf16 %v2984, %v2980
    %v3233 = vpack.c.bf16 %v2989, %v2985
    %v3234 = vpack.c.bf16 %v2990, %v2986
    %v3235 = vpack.c.bf16 %v2991, %v2987
    %v3236 = vpack.c.bf16 %v2992, %v2988
    %v3237 = vpack.c.bf16 %v2997, %v2993
    %v3238 = vpack.c.bf16 %v2998, %v2994
    %v3239 = vpack.c.bf16 %v2999, %v2995
    %v3240 = vpack.c.bf16 %v3000, %v2996
    %v3241 = vpack.c.bf16 %v3005, %v3001
    %v3242 = vpack.c.bf16 %v3006, %v3002
    %v3243 = vpack.c.bf16 %v3007, %v3003
    %v3244 = vpack.c.bf16 %v3008, %v3004
    %v3245 = vpack.c.bf16 %v3013, %v3009
    %v3246 = vpack.c.bf16 %v3014, %v3010
    %v3247 = vpack.c.bf16 %v3015, %v3011
    %v3248 = vpack.c.bf16 %v3016, %v3012
    %v3249 = vpack.c.bf16 %v3021, %v3017
    %v3250 = vpack.c.bf16 %v3022, %v3018
    %v3251 = vpack.c.bf16 %v3023, %v3019
    %v3252 = vpack.c.bf16 %v3024, %v3020
    %v3253 = vpack.c.bf16 %v3029, %v3025
    %v3254 = vpack.c.bf16 %v3030, %v3026
    %v3255 = vpack.c.bf16 %v3031, %v3027
    %v3256 = vpack.c.bf16 %v3032, %v3028
    %v3257 = vpack.c.bf16 %v3037, %v3033
    %v3258 = vpack.c.bf16 %v3038, %v3034
    %v3259 = vpack.c.bf16 %v3039, %v3035
    %v3260 = vpack.c.bf16 %v3040, %v3036
    %v3261 = vpack.c.bf16 %v3045, %v3041
    %v3262 = vpack.c.bf16 %v3046, %v3042
    %v3263 = vpack.c.bf16 %v3047, %v3043
    %v3264 = vpack.c.bf16 %v3048, %v3044
    %v3265 = vpack.c.bf16 %v3053, %v3049
    %v3266 = vpack.c.bf16 %v3054, %v3050
    %v3267 = vpack.c.bf16 %v3055, %v3051
    %v3268 = vpack.c.bf16 %v3056, %v3052
    %v3269 = vpack.c.bf16 %v3061, %v3057
    %v3270 = vpack.c.bf16 %v3062, %v3058
    %v3271 = vpack.c.bf16 %v3063, %v3059
    %v3272 = vpack.c.bf16 %v3064, %v3060
    %v3273 = vpack.c.bf16 %v3069, %v3065
    %v3274 = vpack.c.bf16 %v3070, %v3066
    %v3275 = vpack.c.bf16 %v3071, %v3067
    %v3276 = vpack.c.bf16 %v3072, %v3068
    %v3277 = vpack.c.bf16 %v3077, %v3073
    %v3278 = vpack.c.bf16 %v3078, %v3074
    %v3279 = vpack.c.bf16 %v3079, %v3075
    %v3280 = vpack.c.bf16 %v3080, %v3076
    %v3281 = vpack.c.bf16 %v3085, %v3081
    %v3282 = vpack.c.bf16 %v3086, %v3082
    %v3283 = vpack.c.bf16 %v3087, %v3083
    %v3284 = vpack.c.bf16 %v3088, %v3084
    %v3285 = vpack.c.bf16 %v3093, %v3089
    %v3286 = vpack.c.bf16 %v3094, %v3090
    %v3287 = vpack.c.bf16 %v3095, %v3091
    %v3288 = vpack.c.bf16 %v3096, %v3092
    %v3289 = vpack.c.bf16 %v3101, %v3097
    %v3290 = vpack.c.bf16 %v3102, %v3098
    %v3291 = vpack.c.bf16 %v3103, %v3099
    %v3292 = vpack.c.bf16 %v3104, %v3100
    %v3293 = vpack.c.bf16 %v3109, %v3105
    %v3294 = vpack.c.bf16 %v3110, %v3106
    %v3295 = vpack.c.bf16 %v3111, %v3107
    %v3296 = vpack.c.bf16 %v3112, %v3108
    %v3297 = vpack.c.bf16 %v3117, %v3113
    %v3298 = vpack.c.bf16 %v3118, %v3114
    %v3299 = vpack.c.bf16 %v3119, %v3115
    %v3300 = vpack.c.bf16 %v3120, %v3116
    %v3301 = vpack.c.bf16 %v3125, %v3121
    %v3302 = vpack.c.bf16 %v3126, %v3122
    %v3303 = vpack.c.bf16 %v3127, %v3123
    %v3304 = vpack.c.bf16 %v3128, %v3124
    %v3305 = vpack.c.bf16 %v3133, %v3129
    %v3306 = vpack.c.bf16 %v3134, %v3130
    %v3307 = vpack.c.bf16 %v3135, %v3131
    %v3308 = vpack.c.bf16 %v3136, %v3132
    %v3309 = vpack.c.bf16 %v3141, %v3137
    %v3310 = vpack.c.bf16 %v3142, %v3138
    %v3311 = vpack.c.bf16 %v3143, %v3139
    %v3312 = vpack.c.bf16 %v3144, %v3140
    %v3313 = vpack.c.bf16 %v3149, %v3145
    %v3314 = vpack.c.bf16 %v3150, %v3146
    %v3315 = vpack.c.bf16 %v3151, %v3147
    %v3316 = vpack.c.bf16 %v3152, %v3148
    %v3317 = vpack.c.bf16 %v3157, %v3153
    %v3318 = vpack.c.bf16 %v3158, %v3154
    %v3319 = vpack.c.bf16 %v3159, %v3155
    %v3320 = vpack.c.bf16 %v3160, %v3156
    %v3321 = vpack.c.bf16 %v3165, %v3161
    %v3322 = vpack.c.bf16 %v3166, %v3162
    %v3323 = vpack.c.bf16 %v3167, %v3163
    %v3324 = vpack.c.bf16 %v3168, %v3164
    %v3325 = vpack.c.bf16 %v3173, %v3169
    %v3326 = vpack.c.bf16 %v3174, %v3170
    %v3327 = vpack.c.bf16 %v3175, %v3171
    %v3328 = vpack.c.bf16 %v3176, %v3172
    %v3329 = vpack.c.bf16 %v3177, %v3177
    %v3330 = vpack.c.bf16 %v3178, %v3178
    %v3331 = vpack.c.bf16 %v3179, %v3179
    %v3332 = vpack.c.bf16 %v3180, %v3180
    %v3333 = vld [vmem:[%s5] sm:$0xff]
    %v3334 = vld [vmem:[%s5 + $0x8] sm:$0xff]
    %v3335 = vld [vmem:[%s5 + $0x10] sm:$0xff]
    %v3336 = vld [vmem:[%s5 + $0x18] sm:$0xff]
    %v3337 = vld [vmem:[%s5 + $0x20] sm:$0xff]
    %v3338 = vld [vmem:[%s5 + $0x28] sm:$0xff]
    %v3339 = vld [vmem:[%s5 + $0x30] sm:$0xff]
    %v3340 = vld [vmem:[%s5 + $0x38] sm:$0xff]
    %v3341 = vld [vmem:[%s5 + $0x40] sm:$0xff]
    %v3342 = vld [vmem:[%s5 + $0x48] sm:$0xff]
    %v3343 = vld [vmem:[%s5 + $0x50] sm:$0xff]
    %v3344 = vld [vmem:[%s5 + $0x58] sm:$0xff]
    %v3345 = vld [vmem:[%s5 + $0x60] sm:$0xff]
    %v3346 = vld [vmem:[%s5 + $0x68] sm:$0xff]
    %v3347 = vld [vmem:[%s5 + $0x70] sm:$0xff]
    %v3348 = vld [vmem:[%s5 + $0x78] sm:$0xff]
    %v3349 = vld [vmem:[%s5 + $0x80] sm:$0xff]
    %v3350 = vld [vmem:[%s5 + $0x88] sm:$0xff]
    %v3351 = vld [vmem:[%s5 + $0x90] sm:$0xff]
    %v3352 = vld [vmem:[%s5 + $0x98] sm:$0xff]
    %v3353 = vld [vmem:[%s5 + $0xa0] sm:$0xff]
    %v3354 = vld [vmem:[%s5 + $0xa8] sm:$0xff]
    %v3355 = vld [vmem:[%s5 + $0xb0] sm:$0xff]
    %v3356 = vld [vmem:[%s5 + $0xb8] sm:$0xff]
    %v3357 = vld [vmem:[%s5 + $0xc0] sm:$0xff]
    %v3358 = vld [vmem:[%s5 + $0xc8] sm:$0xff]
    %v3359 = vld [vmem:[%s5 + $0xd0] sm:$0xff]
    %v3360 = vld [vmem:[%s5 + $0xd8] sm:$0xff]
    %v3361 = vld [vmem:[%s5 + $0xe0] sm:$0xff]
    %v3362 = vld [vmem:[%s5 + $0xe8] sm:$0xff]
    %v3363 = vld [vmem:[%s5 + $0xf0] sm:$0xff]
    %v3364 = vld [vmem:[%s5 + $0xf8] sm:$0xff]
    %v3365 = vld [vmem:[%s5 + $0x100] sm:$0xff]
    %v3366 = vld [vmem:[%s5 + $0x108] sm:$0xff]
    %v3367 = vld [vmem:[%s5 + $0x110] sm:$0xff]
    %v3368 = vld [vmem:[%s5 + $0x118] sm:$0xff]
    %v3369 = vld [vmem:[%s5 + $0x120] sm:$0xff]
    %v3370 = vld [vmem:[%s5 + $0x128] sm:$0xff]
    %v3371 = vld [vmem:[%s5 + $0x130] sm:$0xff]
    %v3372 = vld [vmem:[%s5 + $0x138] sm:$0xff]
    %v3373 = vld [vmem:[%s5 + $0x140] sm:$0xff]
    %v3374 = vld [vmem:[%s5 + $0x148] sm:$0xff]
    %v3375 = vld [vmem:[%s5 + $0x150] sm:$0xff]
    %v3376 = vld [vmem:[%s5 + $0x158] sm:$0xff]
    %v3377 = vld [vmem:[%s5 + $0x160] sm:$0xff]
    %v3378 = vld [vmem:[%s5 + $0x168] sm:$0xff]
    %v3379 = vld [vmem:[%s5 + $0x170] sm:$0xff]
    %v3380 = vld [vmem:[%s5 + $0x178] sm:$0xff]
    %v3381 = vld [vmem:[%s5 + $0x180] sm:$0xff]
    %v3382 = vld [vmem:[%s5 + $0x188] sm:$0xff]
    %v3383 = vld [vmem:[%s5 + $0x190] sm:$0xff]
    %v3384 = vld [vmem:[%s5 + $0x198] sm:$0xff]
    %v3385 = vld [vmem:[%s5 + $0x1a0] sm:$0xff]
    %v3386 = vld [vmem:[%s5 + $0x1a8] sm:$0xff]
    %v3387 = vld [vmem:[%s5 + $0x1b0] sm:$0xff]
    %v3388 = vld [vmem:[%s5 + $0x1b8] sm:$0xff]
    %v3389 = vld [vmem:[%s5 + $0x1c0] sm:$0xff]
    %v3390 = vld [vmem:[%s5 + $0x1c8] sm:$0xff]
    %v3391 = vld [vmem:[%s5 + $0x1d0] sm:$0xff]
    %v3392 = vld [vmem:[%s5 + $0x1d8] sm:$0xff]
    %v3393 = vld [vmem:[%s5 + $0x1e0] sm:$0xff]
    %v3394 = vld [vmem:[%s5 + $0x1e8] sm:$0xff]
    %v3395 = vld [vmem:[%s5 + $0x1f0] sm:$0xff]
    %v3396 = vld [vmem:[%s5 + $0x1f8] sm:$0xff]
    %v3397 = vld [vmem:[%s6] sm:$0x3]
    %v3399 = vlaneseq
    %v3400 = vshrl.u32 %v3399, 7
    %v3401 = vsub.s32 0, %v3400
    %v3402 = vrot.slane %v3397, %v3401
    %v3403 = vlaneseq
    %v3404 = vshrl.u32 %v3403, 7
    %v3405 = vsub.s32 1, %v3404
    %v3406 = vrot.slane %v3397, %v3405
    %v3473 = vunpack.c.l.b16 %v3333
    %v3474 = vunpack.c.h.b16 %v3333
    %v3475 = vunpack.c.l.b16 %v3334
    %v3476 = vunpack.c.h.b16 %v3334
    %v3477 = vunpack.c.l.b16 %v3335
    %v3478 = vunpack.c.h.b16 %v3335
    %v3479 = vunpack.c.l.b16 %v3336
    %v3480 = vunpack.c.h.b16 %v3336
    %v3481 = vunpack.c.l.b16 %v3337
    %v3482 = vunpack.c.h.b16 %v3337
    %v3483 = vunpack.c.l.b16 %v3338
    %v3484 = vunpack.c.h.b16 %v3338
    %v3485 = vunpack.c.l.b16 %v3339
    %v3486 = vunpack.c.h.b16 %v3339
    %v3487 = vunpack.c.l.b16 %v3340
    %v3488 = vunpack.c.h.b16 %v3340
    %v3489 = vunpack.c.l.b16 %v3341
    %v3490 = vunpack.c.h.b16 %v3341
    %v3491 = vunpack.c.l.b16 %v3342
    %v3492 = vunpack.c.h.b16 %v3342
    %v3493 = vunpack.c.l.b16 %v3343
    %v3494 = vunpack.c.h.b16 %v3343
    %v3495 = vunpack.c.l.b16 %v3344
    %v3496 = vunpack.c.h.b16 %v3344
    %v3497 = vunpack.c.l.b16 %v3345
    %v3498 = vunpack.c.h.b16 %v3345
    %v3499 = vunpack.c.l.b16 %v3346
    %v3500 = vunpack.c.h.b16 %v3346
    %v3501 = vunpack.c.l.b16 %v3347
    %v3502 = vunpack.c.h.b16 %v3347
    %v3503 = vunpack.c.l.b16 %v3348
    %v3504 = vunpack.c.h.b16 %v3348
    %v3505 = vunpack.c.l.b16 %v3349
    %v3506 = vunpack.c.h.b16 %v3349
    %v3507 = vunpack.c.l.b16 %v3350
    %v3508 = vunpack.c.h.b16 %v3350
    %v3509 = vunpack.c.l.b16 %v3351
    %v3510 = vunpack.c.h.b16 %v3351
    %v3511 = vunpack.c.l.b16 %v3352
    %v3512 = vunpack.c.h.b16 %v3352
    %v3513 = vunpack.c.l.b16 %v3353
    %v3514 = vunpack.c.h.b16 %v3353
    %v3515 = vunpack.c.l.b16 %v3354
    %v3516 = vunpack.c.h.b16 %v3354
    %v3517 = vunpack.c.l.b16 %v3355
    %v3518 = vunpack.c.h.b16 %v3355
    %v3519 = vunpack.c.l.b16 %v3356
    %v3520 = vunpack.c.h.b16 %v3356
    %v3521 = vunpack.c.l.b16 %v3357
    %v3522 = vunpack.c.h.b16 %v3357
    %v3523 = vunpack.c.l.b16 %v3358
    %v3524 = vunpack.c.h.b16 %v3358
    %v3525 = vunpack.c.l.b16 %v3359
    %v3526 = vunpack.c.h.b16 %v3359
    %v3527 = vunpack.c.l.b16 %v3360
    %v3528 = vunpack.c.h.b16 %v3360
    %v3529 = vunpack.c.l.b16 %v3361
    %v3530 = vunpack.c.h.b16 %v3361
    %v3531 = vunpack.c.l.b16 %v3362
    %v3532 = vunpack.c.h.b16 %v3362
    %v3533 = vunpack.c.l.b16 %v3363
    %v3534 = vunpack.c.h.b16 %v3363
    %v3535 = vunpack.c.l.b16 %v3364
    %v3536 = vunpack.c.h.b16 %v3364
    %v3537 = vunpack.c.l.b16 %v3365
    %v3538 = vunpack.c.h.b16 %v3365
    %v3539 = vunpack.c.l.b16 %v3366
    %v3540 = vunpack.c.h.b16 %v3366
    %v3541 = vunpack.c.l.b16 %v3367
    %v3542 = vunpack.c.h.b16 %v3367
    %v3543 = vunpack.c.l.b16 %v3368
    %v3544 = vunpack.c.h.b16 %v3368
    %v3545 = vunpack.c.l.b16 %v3369
    %v3546 = vunpack.c.h.b16 %v3369
    %v3547 = vunpack.c.l.b16 %v3370
    %v3548 = vunpack.c.h.b16 %v3370
    %v3549 = vunpack.c.l.b16 %v3371
    %v3550 = vunpack.c.h.b16 %v3371
    %v3551 = vunpack.c.l.b16 %v3372
    %v3552 = vunpack.c.h.b16 %v3372
    %v3553 = vunpack.c.l.b16 %v3373
    %v3554 = vunpack.c.h.b16 %v3373
    %v3555 = vunpack.c.l.b16 %v3374
    %v3556 = vunpack.c.h.b16 %v3374
    %v3557 = vunpack.c.l.b16 %v3375
    %v3558 = vunpack.c.h.b16 %v3375
    %v3559 = vunpack.c.l.b16 %v3376
    %v3560 = vunpack.c.h.b16 %v3376
    %v3561 = vunpack.c.l.b16 %v3377
    %v3562 = vunpack.c.h.b16 %v3377
    %v3563 = vunpack.c.l.b16 %v3378
    %v3564 = vunpack.c.h.b16 %v3378
    %v3565 = vunpack.c.l.b16 %v3379
    %v3566 = vunpack.c.h.b16 %v3379
    %v3567 = vunpack.c.l.b16 %v3380
    %v3568 = vunpack.c.h.b16 %v3380
    %v3569 = vunpack.c.l.b16 %v3381
    %v3570 = vunpack.c.h.b16 %v3381
    %v3571 = vunpack.c.l.b16 %v3382
    %v3572 = vunpack.c.h.b16 %v3382
    %v3573 = vunpack.c.l.b16 %v3383
    %v3574 = vunpack.c.h.b16 %v3383
    %v3575 = vunpack.c.l.b16 %v3384
    %v3576 = vunpack.c.h.b16 %v3384
    %v3577 = vunpack.c.l.b16 %v3385
    %v3578 = vunpack.c.h.b16 %v3385
    %v3579 = vunpack.c.l.b16 %v3386
    %v3580 = vunpack.c.h.b16 %v3386
    %v3581 = vunpack.c.l.b16 %v3387
    %v3582 = vunpack.c.h.b16 %v3387
    %v3583 = vunpack.c.l.b16 %v3388
    %v3584 = vunpack.c.h.b16 %v3388
    %v3585 = vunpack.c.l.b16 %v3389
    %v3586 = vunpack.c.h.b16 %v3389
    %v3587 = vunpack.c.l.b16 %v3390
    %v3588 = vunpack.c.h.b16 %v3390
    %v3589 = vunpack.c.l.b16 %v3391
    %v3590 = vunpack.c.h.b16 %v3391
    %v3591 = vunpack.c.l.b16 %v3392
    %v3592 = vunpack.c.h.b16 %v3392
    %v3593 = vunpack.c.l.b16 %v3393
    %v3594 = vunpack.c.h.b16 %v3393
    %v3595 = vunpack.c.l.b16 %v3394
    %v3596 = vunpack.c.h.b16 %v3394
    %v3597 = vunpack.c.l.b16 %v3395
    %v3598 = vunpack.c.h.b16 %v3395
    %v3599 = vunpack.c.l.b16 %v3396
    %v3600 = vunpack.c.h.b16 %v3396
    %v3601 = vpack.c.b16 %v3475, %v3473
    %v3602 = vpack.c.b16 %v3476, %v3474
    %v3603 = vpack.c.b16 %v3479, %v3477
    %v3604 = vpack.c.b16 %v3480, %v3478
    %v3605 = vpack.c.b16 %v3483, %v3481
    %v3606 = vpack.c.b16 %v3484, %v3482
    %v3607 = vpack.c.b16 %v3487, %v3485
    %v3608 = vpack.c.b16 %v3488, %v3486
    %v3609 = vpack.c.b16 %v3491, %v3489
    %v3610 = vpack.c.b16 %v3492, %v3490
    %v3611 = vpack.c.b16 %v3495, %v3493
    %v3612 = vpack.c.b16 %v3496, %v3494
    %v3613 = vpack.c.b16 %v3499, %v3497
    %v3614 = vpack.c.b16 %v3500, %v3498
    %v3615 = vpack.c.b16 %v3503, %v3501
    %v3616 = vpack.c.b16 %v3504, %v3502
    %v3617 = vpack.c.b16 %v3507, %v3505
    %v3618 = vpack.c.b16 %v3508, %v3506
    %v3619 = vpack.c.b16 %v3511, %v3509
    %v3620 = vpack.c.b16 %v3512, %v3510
    %v3621 = vpack.c.b16 %v3515, %v3513
    %v3622 = vpack.c.b16 %v3516, %v3514
    %v3623 = vpack.c.b16 %v3519, %v3517
    %v3624 = vpack.c.b16 %v3520, %v3518
    %v3625 = vpack.c.b16 %v3523, %v3521
    %v3626 = vpack.c.b16 %v3524, %v3522
    %v3627 = vpack.c.b16 %v3527, %v3525
    %v3628 = vpack.c.b16 %v3528, %v3526
    %v3629 = vpack.c.b16 %v3531, %v3529
    %v3630 = vpack.c.b16 %v3532, %v3530
    %v3631 = vpack.c.b16 %v3535, %v3533
    %v3632 = vpack.c.b16 %v3536, %v3534
    %v3633 = vpack.c.b16 %v3539, %v3537
    %v3634 = vpack.c.b16 %v3540, %v3538
    %v3635 = vpack.c.b16 %v3543, %v3541
    %v3636 = vpack.c.b16 %v3544, %v3542
    %v3637 = vpack.c.b16 %v3547, %v3545
    %v3638 = vpack.c.b16 %v3548, %v3546
    %v3639 = vpack.c.b16 %v3551, %v3549
    %v3640 = vpack.c.b16 %v3552, %v3550
    %v3641 = vpack.c.b16 %v3555, %v3553
    %v3642 = vpack.c.b16 %v3556, %v3554
    %v3643 = vpack.c.b16 %v3559, %v3557
    %v3644 = vpack.c.b16 %v3560, %v3558
    %v3645 = vpack.c.b16 %v3563, %v3561
    %v3646 = vpack.c.b16 %v3564, %v3562
    %v3647 = vpack.c.b16 %v3567, %v3565
    %v3648 = vpack.c.b16 %v3568, %v3566
    %v3649 = vpack.c.b16 %v3571, %v3569
    %v3650 = vpack.c.b16 %v3572, %v3570
    %v3651 = vpack.c.b16 %v3575, %v3573
    %v3652 = vpack.c.b16 %v3576, %v3574
    %v3653 = vpack.c.b16 %v3579, %v3577
    %v3654 = vpack.c.b16 %v3580, %v3578
    %v3655 = vpack.c.b16 %v3583, %v3581
    %v3656 = vpack.c.b16 %v3584, %v3582
    %v3657 = vpack.c.b16 %v3587, %v3585
    %v3658 = vpack.c.b16 %v3588, %v3586
    %v3659 = vpack.c.b16 %v3591, %v3589
    %v3660 = vpack.c.b16 %v3592, %v3590
    %v3661 = vpack.c.b16 %v3595, %v3593
    %v3662 = vpack.c.b16 %v3596, %v3594
    %v3663 = vpack.c.b16 %v3599, %v3597
    %v3664 = vpack.c.b16 %v3600, %v3598
    %3729 = vmatprep.subr.bf16.mxu0 %v3602
    %3730 = vmatpush1.bf16.msra.mxu0 %v3601
    %3731 = vmatprep.subr.bf16.mxu0 %v3604
    %3732 = vmatpush1.bf16.msra.mxu0 %v3603
    %3733 = vmatprep.subr.bf16.mxu0 %v3606
    %3734 = vmatpush1.bf16.msra.mxu0 %v3605
    %3735 = vmatprep.subr.bf16.mxu0 %v3608
    %3736 = vmatpush1.bf16.msra.mxu0 %v3607
    %3737 = vmatprep.subr.bf16.mxu0 %v3610
    %3738 = vmatpush1.bf16.msra.mxu0 %v3609
    %3739 = vmatprep.subr.bf16.mxu0 %v3612
    %3740 = vmatpush1.bf16.msra.mxu0 %v3611
    %3741 = vmatprep.subr.bf16.mxu0 %v3614
    %3742 = vmatpush1.bf16.msra.mxu0 %v3613
    %3743 = vmatprep.subr.bf16.mxu0 %v3616
    %3744 = vmatpush1.bf16.msra.mxu0 %v3615
    %3745 = vmatprep.subr.bf16.mxu0 %v3618
    %3746 = vmatpush1.bf16.msra.mxu0 %v3617
    %3747 = vmatprep.subr.bf16.mxu0 %v3620
    %3748 = vmatpush1.bf16.msra.mxu0 %v3619
    %3749 = vmatprep.subr.bf16.mxu0 %v3622
    %3750 = vmatpush1.bf16.msra.mxu0 %v3621
    %3751 = vmatprep.subr.bf16.mxu0 %v3624
    %3752 = vmatpush1.bf16.msra.mxu0 %v3623
    %3753 = vmatprep.subr.bf16.mxu0 %v3626
    %3754 = vmatpush1.bf16.msra.mxu0 %v3625
    %3755 = vmatprep.subr.bf16.mxu0 %v3628
    %3756 = vmatpush1.bf16.msra.mxu0 %v3627
    %3757 = vmatprep.subr.bf16.mxu0 %v3630
    %3758 = vmatpush1.bf16.msra.mxu0 %v3629
    %3759 = vmatprep.subr.bf16.mxu0 %v3632
    %3760 = vmatpush1.bf16.msra.mxu0 %v3631
    %3761 = vmatprep.mubr.bf16.mxu0 %v3182
    %3762 = vmatmul.mubr.bf16.gmra.mrb[0].mxu0 %v3181
    %v3763 = vpop.f32.mrb[0].mxu0
    %v3764 = vadd.f32 %v3402, %v3763
    %v3765 = vpop.f32.mrb[0].mxu0
    %v3766 = vadd.f32 %v3406, %v3765
    %v3767 = vpop.f32.mrb[0].mxu0
    %v3768 = vadd.f32 %v3402, %v3767
    %v3769 = vpop.f32.mrb[0].mxu0
    %v3770 = vadd.f32 %v3406, %v3769
    %3771 = vmatprep.mubr.bf16.mxu0 %v3186
    %3772 = vmatmul.mubr.bf16.gmra.mrb[0].mxu0 %v3185
    %v3773 = vpop.f32.mrb[0].mxu0
    %v3774 = vadd.f32 %v3402, %v3773
    %v3775 = vpop.f32.mrb[0].mxu0
    %v3776 = vadd.f32 %v3406, %v3775
    %v3777 = vpop.f32.mrb[0].mxu0
    %v3778 = vadd.f32 %v3402, %v3777
    %v3779 = vpop.f32.mrb[0].mxu0
    %v3780 = vadd.f32 %v3406, %v3779
    %3781 = vmatprep.mubr.bf16.mxu0 %v3190
    %3782 = vmatmul.mubr.bf16.gmra.mrb[0].mxu0 %v3189
    %v3783 = vpop.f32.mrb[0].mxu0
    %v3784 = vadd.f32 %v3402, %v3783
    %v3785 = vpop.f32.mrb[0].mxu0
    %v3786 = vadd.f32 %v3406, %v3785
    %v3787 = vpop.f32.mrb[0].mxu0
    %v3788 = vadd.f32 %v3402, %v3787
    %v3789 = vpop.f32.mrb[0].mxu0
    %v3790 = vadd.f32 %v3406, %v3789
    %3791 = vmatprep.mubr.bf16.mxu0 %v3194
    %3792 = vmatmul.mubr.bf16.gmra.mrb[0].mxu0 %v3193
    %v3793 = vpop.f32.mrb[0].mxu0
    %v3794 = vadd.f32 %v3402, %v3793
    %v3795 = vpop.f32.mrb[0].mxu0
    %v3796 = vadd.f32 %v3406, %v3795
    %v3797 = vpop.f32.mrb[0].mxu0
    %v3798 = vadd.f32 %v3402, %v3797
    %v3799 = vpop.f32.mrb[0].mxu0
    %v3800 = vadd.f32 %v3406, %v3799
    %3801 = vmatprep.mubr.bf16.mxu0 %v3198
    %3802 = vmatmul.mubr.bf16.gmra.mrb[0].mxu0 %v3197
    %v3803 = vpop.f32.mrb[0].mxu0
    %v3804 = vadd.f32 %v3402, %v3803
    %v3805 = vpop.f32.mrb[0].mxu0
    %v3806 = vadd.f32 %v3406, %v3805
    %v3807 = vpop.f32.mrb[0].mxu0
    %v3808 = vadd.f32 %v3402, %v3807
    %v3809 = vpop.f32.mrb[0].mxu0
    %v3810 = vadd.f32 %v3406, %v3809
    %3811 = vmatprep.mubr.bf16.mxu0 %v3202
    %3812 = vmatmul.mubr.bf16.gmra.mrb[0].mxu0 %v3201
    %v3813 = vpop.f32.mrb[0].mxu0
    %v3814 = vadd.f32 %v3402, %v3813
    %v3815 = vpop.f32.mrb[0].mxu0
    %v3816 = vadd.f32 %v3406, %v3815
    %v3817 = vpop.f32.mrb[0].mxu0
    %v3818 = vadd.f32 %v3402, %v3817
    %v3819 = vpop.f32.mrb[0].mxu0
    %v3820 = vadd.f32 %v3406, %v3819
    %3821 = vmatprep.mubr.bf16.mxu0 %v3206
    %3822 = vmatmul.mubr.bf16.gmra.mrb[0].mxu0 %v3205
    %v3823 = vpop.f32.mrb[0].mxu0
    %v3824 = vadd.f32 %v3402, %v3823
    %v3825 = vpop.f32.mrb[0].mxu0
    %v3826 = vadd.f32 %v3406, %v3825
    %v3827 = vpop.f32.mrb[0].mxu0
    %v3828 = vadd.f32 %v3402, %v3827
    %v3829 = vpop.f32.mrb[0].mxu0
    %v3830 = vadd.f32 %v3406, %v3829
    %3831 = vmatprep.mubr.bf16.mxu0 %v3210
    %3832 = vmatmul.mubr.bf16.gmra.mrb[0].mxu0 %v3209
    %v3833 = vpop.f32.mrb[0].mxu0
    %v3834 = vadd.f32 %v3402, %v3833
    %v3835 = vpop.f32.mrb[0].mxu0
    %v3836 = vadd.f32 %v3406, %v3835
    %v3837 = vpop.f32.mrb[0].mxu0
    %v3838 = vadd.f32 %v3402, %v3837
    %v3839 = vpop.f32.mrb[0].mxu0
    %v3840 = vadd.f32 %v3406, %v3839
    %3841 = vmatprep.mubr.bf16.mxu0 %v3214
    %3842 = vmatmul.mubr.bf16.gmra.mrb[0].mxu0 %v3213
    %v3843 = vpop.f32.mrb[0].mxu0
    %v3844 = vadd.f32 %v3402, %v3843
    %v3845 = vpop.f32.mrb[0].mxu0
    %v3846 = vadd.f32 %v3406, %v3845
    %v3847 = vpop.f32.mrb[0].mxu0
    %v3848 = vadd.f32 %v3402, %v3847
    %v3849 = vpop.f32.mrb[0].mxu0
    %v3850 = vadd.f32 %v3406, %v3849
    %3851 = vmatprep.mubr.bf16.mxu0 %v3218
    %3852 = vmatmul.mubr.bf16.gmra.mrb[0].mxu0 %v3217
    %v3853 = vpop.f32.mrb[0].mxu0
    %v3854 = vadd.f32 %v3402, %v3853
    %v3855 = vpop.f32.mrb[0].mxu0
    %v3856 = vadd.f32 %v3406, %v3855
    %v3857 = vpop.f32.mrb[0].mxu0
    %v3858 = vadd.f32 %v3402, %v3857
    %v3859 = vpop.f32.mrb[0].mxu0
    %v3860 = vadd.f32 %v3406, %v3859
    %3861 = vmatprep.mubr.bf16.mxu0 %v3222
    %3862 = vmatmul.mubr.bf16.gmra.mrb[0].mxu0 %v3221
    %v3863 = vpop.f32.mrb[0].mxu0
    %v3864 = vadd.f32 %v3402, %v3863
    %v3865 = vpop.f32.mrb[0].mxu0
    %v3866 = vadd.f32 %v3406, %v3865
    %v3867 = vpop.f32.mrb[0].mxu0
    %v3868 = vadd.f32 %v3402, %v3867
    %v3869 = vpop.f32.mrb[0].mxu0
    %v3870 = vadd.f32 %v3406, %v3869
    %3871 = vmatprep.mubr.bf16.mxu0 %v3226
    %3872 = vmatmul.mubr.bf16.gmra.mrb[0].mxu0 %v3225
    %v3873 = vpop.f32.mrb[0].mxu0
    %v3874 = vadd.f32 %v3402, %v3873
    %v3875 = vpop.f32.mrb[0].mxu0
    %v3876 = vadd.f32 %v3406, %v3875
    %v3877 = vpop.f32.mrb[0].mxu0
    %v3878 = vadd.f32 %v3402, %v3877
    %v3879 = vpop.f32.mrb[0].mxu0
    %v3880 = vadd.f32 %v3406, %v3879
    %3881 = vmatprep.mubr.bf16.mxu0 %v3230
    %3882 = vmatmul.mubr.bf16.gmra.mrb[0].mxu0 %v3229
    %v3883 = vpop.f32.mrb[0].mxu0
    %v3884 = vadd.f32 %v3402, %v3883
    %v3885 = vpop.f32.mrb[0].mxu0
    %v3886 = vadd.f32 %v3406, %v3885
    %v3887 = vpop.f32.mrb[0].mxu0
    %v3888 = vadd.f32 %v3402, %v3887
    %v3889 = vpop.f32.mrb[0].mxu0
    %v3890 = vadd.f32 %v3406, %v3889
    %3891 = vmatprep.mubr.bf16.mxu0 %v3234
    %3892 = vmatmul.mubr.bf16.gmra.mrb[0].mxu0 %v3233
    %v3893 = vpop.f32.mrb[0].mxu0
    %v3894 = vadd.f32 %v3402, %v3893
    %v3895 = vpop.f32.mrb[0].mxu0
    %v3896 = vadd.f32 %v3406, %v3895
    %v3897 = vpop.f32.mrb[0].mxu0
    %v3898 = vadd.f32 %v3402, %v3897
    %v3899 = vpop.f32.mrb[0].mxu0
    %v3900 = vadd.f32 %v3406, %v3899
    %3901 = vmatprep.mubr.bf16.mxu0 %v3238
    %3902 = vmatmul.mubr.bf16.gmra.mrb[0].mxu0 %v3237
    %v3903 = vpop.f32.mrb[0].mxu0
    %v3904 = vadd.f32 %v3402, %v3903
    %v3905 = vpop.f32.mrb[0].mxu0
    %v3906 = vadd.f32 %v3406, %v3905
    %v3907 = vpop.f32.mrb[0].mxu0
    %v3908 = vadd.f32 %v3402, %v3907
    %v3909 = vpop.f32.mrb[0].mxu0
    %v3910 = vadd.f32 %v3406, %v3909
    %3911 = vmatprep.mubr.bf16.mxu0 %v3242
    %3912 = vmatmul.mubr.bf16.gmra.mrb[0].mxu0 %v3241
    %v3913 = vpop.f32.mrb[0].mxu0
    %v3914 = vadd.f32 %v3402, %v3913
    %v3915 = vpop.f32.mrb[0].mxu0
    %v3916 = vadd.f32 %v3406, %v3915
    %v3917 = vpop.f32.mrb[0].mxu0
    %v3918 = vadd.f32 %v3402, %v3917
    %v3919 = vpop.f32.mrb[0].mxu0
    %v3920 = vadd.f32 %v3406, %v3919
    %3921 = vmatprep.mubr.bf16.mxu0 %v3246
    %3922 = vmatmul.mubr.bf16.gmra.mrb[0].mxu0 %v3245
    %v3923 = vpop.f32.mrb[0].mxu0
    %v3924 = vadd.f32 %v3402, %v3923
    %v3925 = vpop.f32.mrb[0].mxu0
    %v3926 = vadd.f32 %v3406, %v3925
    %v3927 = vpop.f32.mrb[0].mxu0
    %v3928 = vadd.f32 %v3402, %v3927
    %v3929 = vpop.f32.mrb[0].mxu0
    %v3930 = vadd.f32 %v3406, %v3929
    %3931 = vmatprep.mubr.bf16.mxu0 %v3250
    %3932 = vmatmul.mubr.bf16.gmra.mrb[0].mxu0 %v3249
    %v3933 = vpop.f32.mrb[0].mxu0
    %v3934 = vadd.f32 %v3402, %v3933
    %v3935 = vpop.f32.mrb[0].mxu0
    %v3936 = vadd.f32 %v3406, %v3935
    %v3937 = vpop.f32.mrb[0].mxu0
    %v3938 = vadd.f32 %v3402, %v3937
    %v3939 = vpop.f32.mrb[0].mxu0
    %v3940 = vadd.f32 %v3406, %v3939
    %3941 = vmatprep.mubr.bf16.mxu0 %v3254
    %3942 = vmatmul.mubr.bf16.gmra.mrb[0].mxu0 %v3253
    %v3943 = vpop.f32.mrb[0].mxu0
    %v3944 = vadd.f32 %v3402, %v3943
    %v3945 = vpop.f32.mrb[0].mxu0
    %v3946 = vadd.f32 %v3406, %v3945
    %v3947 = vpop.f32.mrb[0].mxu0
    %v3948 = vadd.f32 %v3402, %v3947
    %v3949 = vpop.f32.mrb[0].mxu0
    %v3950 = vadd.f32 %v3406, %v3949
    %3951 = vmatprep.mubr.bf16.mxu0 %v3258
    %3952 = vmatmul.mubr.bf16.gmra.mrb[0].mxu0 %v3257
    %v3953 = vpop.f32.mrb[0].mxu0
    %v3954 = vadd.f32 %v3402, %v3953
    %v3955 = vpop.f32.mrb[0].mxu0
    %v3956 = vadd.f32 %v3406, %v3955
    %v3957 = vpop.f32.mrb[0].mxu0
    %v3958 = vadd.f32 %v3402, %v3957
    %v3959 = vpop.f32.mrb[0].mxu0
    %v3960 = vadd.f32 %v3406, %v3959
    %3961 = vmatprep.mubr.bf16.mxu0 %v3262
    %3962 = vmatmul.mubr.bf16.gmra.mrb[0].mxu0 %v3261
    %v3963 = vpop.f32.mrb[0].mxu0
    %v3964 = vadd.f32 %v3402, %v3963
    %v3965 = vpop.f32.mrb[0].mxu0
    %v3966 = vadd.f32 %v3406, %v3965
    %v3967 = vpop.f32.mrb[0].mxu0
    %v3968 = vadd.f32 %v3402, %v3967
    %v3969 = vpop.f32.mrb[0].mxu0
    %v3970 = vadd.f32 %v3406, %v3969
    %3971 = vmatprep.mubr.bf16.mxu0 %v3266
    %3972 = vmatmul.mubr.bf16.gmra.mrb[0].mxu0 %v3265
    %v3973 = vpop.f32.mrb[0].mxu0
    %v3974 = vadd.f32 %v3402, %v3973
    %v3975 = vpop.f32.mrb[0].mxu0
    %v3976 = vadd.f32 %v3406, %v3975
    %v3977 = vpop.f32.mrb[0].mxu0
    %v3978 = vadd.f32 %v3402, %v3977
    %v3979 = vpop.f32.mrb[0].mxu0
    %v3980 = vadd.f32 %v3406, %v3979
    %3981 = vmatprep.mubr.bf16.mxu0 %v3270
    %3982 = vmatmul.mubr.bf16.gmra.mrb[0].mxu0 %v3269
    %v3983 = vpop.f32.mrb[0].mxu0
    %v3984 = vadd.f32 %v3402, %v3983
    %v3985 = vpop.f32.mrb[0].mxu0
    %v3986 = vadd.f32 %v3406, %v3985
    %v3987 = vpop.f32.mrb[0].mxu0
    %v3988 = vadd.f32 %v3402, %v3987
    %v3989 = vpop.f32.mrb[0].mxu0
    %v3990 = vadd.f32 %v3406, %v3989
    %3991 = vmatprep.mubr.bf16.mxu0 %v3274
    %3992 = vmatmul.mubr.bf16.gmra.mrb[0].mxu0 %v3273
    %v3993 = vpop.f32.mrb[0].mxu0
    %v3994 = vadd.f32 %v3402, %v3993
    %v3995 = vpop.f32.mrb[0].mxu0
    %v3996 = vadd.f32 %v3406, %v3995
    %v3997 = vpop.f32.mrb[0].mxu0
    %v3998 = vadd.f32 %v3402, %v3997
    %v3999 = vpop.f32.mrb[0].mxu0
    %v4000 = vadd.f32 %v3406, %v3999
    %4001 = vmatprep.mubr.bf16.mxu0 %v3278
    %4002 = vmatmul.mubr.bf16.gmra.mrb[0].mxu0 %v3277
    %v4003 = vpop.f32.mrb[0].mxu0
    %v4004 = vadd.f32 %v3402, %v4003
    %v4005 = vpop.f32.mrb[0].mxu0
    %v4006 = vadd.f32 %v3406, %v4005
    %v4007 = vpop.f32.mrb[0].mxu0
    %v4008 = vadd.f32 %v3402, %v4007
    %v4009 = vpop.f32.mrb[0].mxu0
    %v4010 = vadd.f32 %v3406, %v4009
    %4011 = vmatprep.mubr.bf16.mxu0 %v3282
    %4012 = vmatmul.mubr.bf16.gmra.mrb[0].mxu0 %v3281
    %v4013 = vpop.f32.mrb[0].mxu0
    %v4014 = vadd.f32 %v3402, %v4013
    %v4015 = vpop.f32.mrb[0].mxu0
    %v4016 = vadd.f32 %v3406, %v4015
    %v4017 = vpop.f32.mrb[0].mxu0
    %v4018 = vadd.f32 %v3402, %v4017
    %v4019 = vpop.f32.mrb[0].mxu0
    %v4020 = vadd.f32 %v3406, %v4019
    %4021 = vmatprep.mubr.bf16.mxu0 %v3286
    %4022 = vmatmul.mubr.bf16.gmra.mrb[0].mxu0 %v3285
    %v4023 = vpop.f32.mrb[0].mxu0
    %v4024 = vadd.f32 %v3402, %v4023
    %v4025 = vpop.f32.mrb[0].mxu0
    %v4026 = vadd.f32 %v3406, %v4025
    %v4027 = vpop.f32.mrb[0].mxu0
    %v4028 = vadd.f32 %v3402, %v4027
    %v4029 = vpop.f32.mrb[0].mxu0
    %v4030 = vadd.f32 %v3406, %v4029
    %4031 = vmatprep.mubr.bf16.mxu0 %v3290
    %4032 = vmatmul.mubr.bf16.gmra.mrb[0].mxu0 %v3289
    %v4033 = vpop.f32.mrb[0].mxu0
    %v4034 = vadd.f32 %v3402, %v4033
    %v4035 = vpop.f32.mrb[0].mxu0
    %v4036 = vadd.f32 %v3406, %v4035
    %v4037 = vpop.f32.mrb[0].mxu0
    %v4038 = vadd.f32 %v3402, %v4037
    %v4039 = vpop.f32.mrb[0].mxu0
    %v4040 = vadd.f32 %v3406, %v4039
    %4041 = vmatprep.mubr.bf16.mxu0 %v3294
    %4042 = vmatmul.mubr.bf16.gmra.mrb[0].mxu0 %v3293
    %v4043 = vpop.f32.mrb[0].mxu0
    %v4044 = vadd.f32 %v3402, %v4043
    %v4045 = vpop.f32.mrb[0].mxu0
    %v4046 = vadd.f32 %v3406, %v4045
    %v4047 = vpop.f32.mrb[0].mxu0
    %v4048 = vadd.f32 %v3402, %v4047
    %v4049 = vpop.f32.mrb[0].mxu0
    %v4050 = vadd.f32 %v3406, %v4049
    %4051 = vmatprep.mubr.bf16.mxu0 %v3298
    %4052 = vmatmul.mubr.bf16.gmra.mrb[0].mxu0 %v3297
    %v4053 = vpop.f32.mrb[0].mxu0
    %v4054 = vadd.f32 %v3402, %v4053
    %v4055 = vpop.f32.mrb[0].mxu0
    %v4056 = vadd.f32 %v3406, %v4055
    %v4057 = vpop.f32.mrb[0].mxu0
    %v4058 = vadd.f32 %v3402, %v4057
    %v4059 = vpop.f32.mrb[0].mxu0
    %v4060 = vadd.f32 %v3406, %v4059
    %4061 = vmatprep.mubr.bf16.mxu0 %v3302
    %4062 = vmatmul.mubr.bf16.gmra.mrb[0].mxu0 %v3301
    %v4063 = vpop.f32.mrb[0].mxu0
    %v4064 = vadd.f32 %v3402, %v4063
    %v4065 = vpop.f32.mrb[0].mxu0
    %v4066 = vadd.f32 %v3406, %v4065
    %v4067 = vpop.f32.mrb[0].mxu0
    %v4068 = vadd.f32 %v3402, %v4067
    %v4069 = vpop.f32.mrb[0].mxu0
    %v4070 = vadd.f32 %v3406, %v4069
    %4071 = vmatprep.mubr.bf16.mxu0 %v3306
    %4072 = vmatmul.mubr.bf16.gmra.mrb[0].mxu0 %v3305
    %v4073 = vpop.f32.mrb[0].mxu0
    %v4074 = vadd.f32 %v3402, %v4073
    %v4075 = vpop.f32.mrb[0].mxu0
    %v4076 = vadd.f32 %v3406, %v4075
    %v4077 = vpop.f32.mrb[0].mxu0
    %v4078 = vadd.f32 %v3402, %v4077
    %v4079 = vpop.f32.mrb[0].mxu0
    %v4080 = vadd.f32 %v3406, %v4079
    %4081 = vmatprep.mubr.bf16.mxu0 %v3310
    %4082 = vmatmul.mubr.bf16.gmra.mrb[0].mxu0 %v3309
    %v4083 = vpop.f32.mrb[0].mxu0
    %v4084 = vadd.f32 %v3402, %v4083
    %v4085 = vpop.f32.mrb[0].mxu0
    %v4086 = vadd.f32 %v3406, %v4085
    %v4087 = vpop.f32.mrb[0].mxu0
    %v4088 = vadd.f32 %v3402, %v4087
    %v4089 = vpop.f32.mrb[0].mxu0
    %v4090 = vadd.f32 %v3406, %v4089
    %4091 = vmatprep.mubr.bf16.mxu0 %v3314
    %4092 = vmatmul.mubr.bf16.gmra.mrb[0].mxu0 %v3313
    %v4093 = vpop.f32.mrb[0].mxu0
    %v4094 = vadd.f32 %v3402, %v4093
    %v4095 = vpop.f32.mrb[0].mxu0
    %v4096 = vadd.f32 %v3406, %v4095
    %v4097 = vpop.f32.mrb[0].mxu0
    %v4098 = vadd.f32 %v3402, %v4097
    %v4099 = vpop.f32.mrb[0].mxu0
    %v4100 = vadd.f32 %v3406, %v4099
    %4101 = vmatprep.mubr.bf16.mxu0 %v3318
    %4102 = vmatmul.mubr.bf16.gmra.mrb[0].mxu0 %v3317
    %v4103 = vpop.f32.mrb[0].mxu0
    %v4104 = vadd.f32 %v3402, %v4103
    %v4105 = vpop.f32.mrb[0].mxu0
    %v4106 = vadd.f32 %v3406, %v4105
    %v4107 = vpop.f32.mrb[0].mxu0
    %v4108 = vadd.f32 %v3402, %v4107
    %v4109 = vpop.f32.mrb[0].mxu0
    %v4110 = vadd.f32 %v3406, %v4109
    %4111 = vmatprep.mubr.bf16.mxu0 %v3322
    %4112 = vmatmul.mubr.bf16.gmra.mrb[0].mxu0 %v3321
    %v4113 = vpop.f32.mrb[0].mxu0
    %v4114 = vadd.f32 %v3402, %v4113
    %v4115 = vpop.f32.mrb[0].mxu0
    %v4116 = vadd.f32 %v3406, %v4115
    %v4117 = vpop.f32.mrb[0].mxu0
    %v4118 = vadd.f32 %v3402, %v4117
    %v4119 = vpop.f32.mrb[0].mxu0
    %v4120 = vadd.f32 %v3406, %v4119
    %4121 = vmatprep.mubr.bf16.mxu0 %v3326
    %4122 = vmatmul.mubr.bf16.gmra.mrb[0].mxu0 %v3325
    %v4123 = vpop.f32.mrb[0].mxu0
    %v4124 = vadd.f32 %v3402, %v4123
    %v4125 = vpop.f32.mrb[0].mxu0
    %v4126 = vadd.f32 %v3406, %v4125
    %v4127 = vpop.f32.mrb[0].mxu0
    %v4128 = vadd.f32 %v3402, %v4127
    %v4129 = vpop.f32.mrb[0].mxu0
    %v4130 = vadd.f32 %v3406, %v4129
    %4131 = vmatprep.mubr.bf16.mxu0 %v3330
    %4132 = vmatmul.mubr.bf16.gmra.mrb[0].mxu0 %v3329
    %v4133 = vpop.f32.mrb[0].mxu0
    %v4134 = vadd.f32 %v3402, %v4133
    %v4135 = vpop.f32.mrb[0].mxu0
    %v4136 = vadd.f32 %v3406, %v4135
    %v4137 = vpop.f32.mrb[0].mxu0
    %v4138 = vpop.f32.mrb[0].mxu0
    %4139 = vdwg.mxu0
    %4140 = vmatprep.subr.bf16.mxu0 %v3634
    %4141 = vmatpush1.bf16.msra.mxu0 %v3633
    %4142 = vmatprep.subr.bf16.mxu0 %v3636
    %4143 = vmatpush1.bf16.msra.mxu0 %v3635
    %4144 = vmatprep.subr.bf16.mxu0 %v3638
    %4145 = vmatpush1.bf16.msra.mxu0 %v3637
    %4146 = vmatprep.subr.bf16.mxu0 %v3640
    %4147 = vmatpush1.bf16.msra.mxu0 %v3639
    %4148 = vmatprep.subr.bf16.mxu0 %v3642
    %4149 = vmatpush1.bf16.msra.mxu0 %v3641
    %4150 = vmatprep.subr.bf16.mxu0 %v3644
    %4151 = vmatpush1.bf16.msra.mxu0 %v3643
    %4152 = vmatprep.subr.bf16.mxu0 %v3646
    %4153 = vmatpush1.bf16.msra.mxu0 %v3645
    %4154 = vmatprep.subr.bf16.mxu0 %v3648
    %4155 = vmatpush1.bf16.msra.mxu0 %v3647
    %4156 = vmatprep.subr.bf16.mxu0 %v3650
    %4157 = vmatpush1.bf16.msra.mxu0 %v3649
    %4158 = vmatprep.subr.bf16.mxu0 %v3652
    %4159 = vmatpush1.bf16.msra.mxu0 %v3651
    %4160 = vmatprep.subr.bf16.mxu0 %v3654
    %4161 = vmatpush1.bf16.msra.mxu0 %v3653
    %4162 = vmatprep.subr.bf16.mxu0 %v3656
    %4163 = vmatpush1.bf16.msra.mxu0 %v3655
    %4164 = vmatprep.subr.bf16.mxu0 %v3658
    %4165 = vmatpush1.bf16.msra.mxu0 %v3657
    %4166 = vmatprep.subr.bf16.mxu0 %v3660
    %4167 = vmatpush1.bf16.msra.mxu0 %v3659
    %4168 = vmatprep.subr.bf16.mxu0 %v3662
    %4169 = vmatpush1.bf16.msra.mxu0 %v3661
    %4170 = vmatprep.subr.bf16.mxu0 %v3664
    %4171 = vmatpush1.bf16.msra.mxu0 %v3663
    %4172 = vmatprep.mubr.bf16.mxu0 %v3184
    %4173 = vmatmul.mubr.bf16.gmra.mrb[0].mxu0 %v3183
    %v4174 = vpop.f32.mrb[0].mxu0
    %v4175 = vadd.f32 %v3764, %v4174
    %v4176 = vpop.f32.mrb[0].mxu0
    %v4177 = vadd.f32 %v3766, %v4176
    %v4178 = vpop.f32.mrb[0].mxu0
    %v4179 = vadd.f32 %v3768, %v4178
    %v4180 = vpop.f32.mrb[0].mxu0
    %v4181 = vadd.f32 %v3770, %v4180
    %4182 = vmatprep.mubr.bf16.mxu0 %v3188
    %4183 = vmatmul.mubr.bf16.gmra.mrb[0].mxu0 %v3187
    %v4184 = vpop.f32.mrb[0].mxu0
    %v4185 = vadd.f32 %v3774, %v4184
    %v4186 = vpop.f32.mrb[0].mxu0
    %v4187 = vadd.f32 %v3776, %v4186
    %v4188 = vpop.f32.mrb[0].mxu0
    %v4189 = vadd.f32 %v3778, %v4188
    %v4190 = vpop.f32.mrb[0].mxu0
    %v4191 = vadd.f32 %v3780, %v4190
    %4192 = vmatprep.mubr.bf16.mxu0 %v3192
    %4193 = vmatmul.mubr.bf16.gmra.mrb[0].mxu0 %v3191
    %v4194 = vpop.f32.mrb[0].mxu0
    %v4195 = vadd.f32 %v3784, %v4194
    %v4196 = vpop.f32.mrb[0].mxu0
    %v4197 = vadd.f32 %v3786, %v4196
    %v4198 = vpop.f32.mrb[0].mxu0
    %v4199 = vadd.f32 %v3788, %v4198
    %v4200 = vpop.f32.mrb[0].mxu0
    %v4201 = vadd.f32 %v3790, %v4200
    %4202 = vmatprep.mubr.bf16.mxu0 %v3196
    %4203 = vmatmul.mubr.bf16.gmra.mrb[0].mxu0 %v3195
    %v4204 = vpop.f32.mrb[0].mxu0
    %v4205 = vadd.f32 %v3794, %v4204
    %v4206 = vpop.f32.mrb[0].mxu0
    %v4207 = vadd.f32 %v3796, %v4206
    %v4208 = vpop.f32.mrb[0].mxu0
    %v4209 = vadd.f32 %v3798, %v4208
    %v4210 = vpop.f32.mrb[0].mxu0
    %v4211 = vadd.f32 %v3800, %v4210
    %4212 = vmatprep.mubr.bf16.mxu0 %v3200
    %4213 = vmatmul.mubr.bf16.gmra.mrb[0].mxu0 %v3199
    %v4214 = vpop.f32.mrb[0].mxu0
    %v4215 = vadd.f32 %v3804, %v4214
    %v4216 = vpop.f32.mrb[0].mxu0
    %v4217 = vadd.f32 %v3806, %v4216
    %v4218 = vpop.f32.mrb[0].mxu0
    %v4219 = vadd.f32 %v3808, %v4218
    %v4220 = vpop.f32.mrb[0].mxu0
    %v4221 = vadd.f32 %v3810, %v4220
    %4222 = vmatprep.mubr.bf16.mxu0 %v3204
    %4223 = vmatmul.mubr.bf16.gmra.mrb[0].mxu0 %v3203
    %v4224 = vpop.f32.mrb[0].mxu0
    %v4225 = vadd.f32 %v3814, %v4224
    %v4226 = vpop.f32.mrb[0].mxu0
    %v4227 = vadd.f32 %v3816, %v4226
    %v4228 = vpop.f32.mrb[0].mxu0
    %v4229 = vadd.f32 %v3818, %v4228
    %v4230 = vpop.f32.mrb[0].mxu0
    %v4231 = vadd.f32 %v3820, %v4230
    %4232 = vmatprep.mubr.bf16.mxu0 %v3208
    %4233 = vmatmul.mubr.bf16.gmra.mrb[0].mxu0 %v3207
    %v4234 = vpop.f32.mrb[0].mxu0
    %v4235 = vadd.f32 %v3824, %v4234
    %v4236 = vpop.f32.mrb[0].mxu0
    %v4237 = vadd.f32 %v3826, %v4236
    %v4238 = vpop.f32.mrb[0].mxu0
    %v4239 = vadd.f32 %v3828, %v4238
    %v4240 = vpop.f32.mrb[0].mxu0
    %v4241 = vadd.f32 %v3830, %v4240
    %4242 = vmatprep.mubr.bf16.mxu0 %v3212
    %4243 = vmatmul.mubr.bf16.gmra.mrb[0].mxu0 %v3211
    %v4244 = vpop.f32.mrb[0].mxu0
    %v4245 = vadd.f32 %v3834, %v4244
    %v4246 = vpop.f32.mrb[0].mxu0
    %v4247 = vadd.f32 %v3836, %v4246
    %v4248 = vpop.f32.mrb[0].mxu0
    %v4249 = vadd.f32 %v3838, %v4248
    %v4250 = vpop.f32.mrb[0].mxu0
    %v4251 = vadd.f32 %v3840, %v4250
    %4252 = vmatprep.mubr.bf16.mxu0 %v3216
    %4253 = vmatmul.mubr.bf16.gmra.mrb[0].mxu0 %v3215
    %v4254 = vpop.f32.mrb[0].mxu0
    %v4255 = vadd.f32 %v3844, %v4254
    %v4256 = vpop.f32.mrb[0].mxu0
    %v4257 = vadd.f32 %v3846, %v4256
    %v4258 = vpop.f32.mrb[0].mxu0
    %v4259 = vadd.f32 %v3848, %v4258
    %v4260 = vpop.f32.mrb[0].mxu0
    %v4261 = vadd.f32 %v3850, %v4260
    %4262 = vmatprep.mubr.bf16.mxu0 %v3220
    %4263 = vmatmul.mubr.bf16.gmra.mrb[0].mxu0 %v3219
    %v4264 = vpop.f32.mrb[0].mxu0
    %v4265 = vadd.f32 %v3854, %v4264
    %v4266 = vpop.f32.mrb[0].mxu0
    %v4267 = vadd.f32 %v3856, %v4266
    %v4268 = vpop.f32.mrb[0].mxu0
    %v4269 = vadd.f32 %v3858, %v4268
    %v4270 = vpop.f32.mrb[0].mxu0
    %v4271 = vadd.f32 %v3860, %v4270
    %4272 = vmatprep.mubr.bf16.mxu0 %v3224
    %4273 = vmatmul.mubr.bf16.gmra.mrb[0].mxu0 %v3223
    %v4274 = vpop.f32.mrb[0].mxu0
    %v4275 = vadd.f32 %v3864, %v4274
    %v4276 = vpop.f32.mrb[0].mxu0
    %v4277 = vadd.f32 %v3866, %v4276
    %v4278 = vpop.f32.mrb[0].mxu0
    %v4279 = vadd.f32 %v3868, %v4278
    %v4280 = vpop.f32.mrb[0].mxu0
    %v4281 = vadd.f32 %v3870, %v4280
    %4282 = vmatprep.mubr.bf16.mxu0 %v3228
    %4283 = vmatmul.mubr.bf16.gmra.mrb[0].mxu0 %v3227
    %v4284 = vpop.f32.mrb[0].mxu0
    %v4285 = vadd.f32 %v3874, %v4284
    %v4286 = vpop.f32.mrb[0].mxu0
    %v4287 = vadd.f32 %v3876, %v4286
    %v4288 = vpop.f32.mrb[0].mxu0
    %v4289 = vadd.f32 %v3878, %v4288
    %v4290 = vpop.f32.mrb[0].mxu0
    %v4291 = vadd.f32 %v3880, %v4290
    %4292 = vmatprep.mubr.bf16.mxu0 %v3232
    %4293 = vmatmul.mubr.bf16.gmra.mrb[0].mxu0 %v3231
    %v4294 = vpop.f32.mrb[0].mxu0
    %v4295 = vadd.f32 %v3884, %v4294
    %v4296 = vpop.f32.mrb[0].mxu0
    %v4297 = vadd.f32 %v3886, %v4296
    %v4298 = vpop.f32.mrb[0].mxu0
    %v4299 = vadd.f32 %v3888, %v4298
    %v4300 = vpop.f32.mrb[0].mxu0
    %v4301 = vadd.f32 %v3890, %v4300
    %4302 = vmatprep.mubr.bf16.mxu0 %v3236
    %4303 = vmatmul.mubr.bf16.gmra.mrb[0].mxu0 %v3235
    %v4304 = vpop.f32.mrb[0].mxu0
    %v4305 = vadd.f32 %v3894, %v4304
    %v4306 = vpop.f32.mrb[0].mxu0
    %v4307 = vadd.f32 %v3896, %v4306
    %v4308 = vpop.f32.mrb[0].mxu0
    %v4309 = vadd.f32 %v3898, %v4308
    %v4310 = vpop.f32.mrb[0].mxu0
    %v4311 = vadd.f32 %v3900, %v4310
    %4312 = vmatprep.mubr.bf16.mxu0 %v3240
    %4313 = vmatmul.mubr.bf16.gmra.mrb[0].mxu0 %v3239
    %v4314 = vpop.f32.mrb[0].mxu0
    %v4315 = vadd.f32 %v3904, %v4314
    %v4316 = vpop.f32.mrb[0].mxu0
    %v4317 = vadd.f32 %v3906, %v4316
    %v4318 = vpop.f32.mrb[0].mxu0
    %v4319 = vadd.f32 %v3908, %v4318
    %v4320 = vpop.f32.mrb[0].mxu0
    %v4321 = vadd.f32 %v3910, %v4320
    %4322 = vmatprep.mubr.bf16.mxu0 %v3244
    %4323 = vmatmul.mubr.bf16.gmra.mrb[0].mxu0 %v3243
    %v4324 = vpop.f32.mrb[0].mxu0
    %v4325 = vadd.f32 %v3914, %v4324
    %v4326 = vpop.f32.mrb[0].mxu0
    %v4327 = vadd.f32 %v3916, %v4326
    %v4328 = vpop.f32.mrb[0].mxu0
    %v4329 = vadd.f32 %v3918, %v4328
    %v4330 = vpop.f32.mrb[0].mxu0
    %v4331 = vadd.f32 %v3920, %v4330
    %4332 = vmatprep.mubr.bf16.mxu0 %v3248
    %4333 = vmatmul.mubr.bf16.gmra.mrb[0].mxu0 %v3247
    %v4334 = vpop.f32.mrb[0].mxu0
    %v4335 = vadd.f32 %v3924, %v4334
    %v4336 = vpop.f32.mrb[0].mxu0
    %v4337 = vadd.f32 %v3926, %v4336
    %v4338 = vpop.f32.mrb[0].mxu0
    %v4339 = vadd.f32 %v3928, %v4338
    %v4340 = vpop.f32.mrb[0].mxu0
    %v4341 = vadd.f32 %v3930, %v4340
    %4342 = vmatprep.mubr.bf16.mxu0 %v3252
    %4343 = vmatmul.mubr.bf16.gmra.mrb[0].mxu0 %v3251
    %v4344 = vpop.f32.mrb[0].mxu0
    %v4345 = vadd.f32 %v3934, %v4344
    %v4346 = vpop.f32.mrb[0].mxu0
    %v4347 = vadd.f32 %v3936, %v4346
    %v4348 = vpop.f32.mrb[0].mxu0
    %v4349 = vadd.f32 %v3938, %v4348
    %v4350 = vpop.f32.mrb[0].mxu0
    %v4351 = vadd.f32 %v3940, %v4350
    %4352 = vmatprep.mubr.bf16.mxu0 %v3256
    %4353 = vmatmul.mubr.bf16.gmra.mrb[0].mxu0 %v3255
    %v4354 = vpop.f32.mrb[0].mxu0
    %v4355 = vadd.f32 %v3944, %v4354
    %v4356 = vpop.f32.mrb[0].mxu0
    %v4357 = vadd.f32 %v3946, %v4356
    %v4358 = vpop.f32.mrb[0].mxu0
    %v4359 = vadd.f32 %v3948, %v4358
    %v4360 = vpop.f32.mrb[0].mxu0
    %v4361 = vadd.f32 %v3950, %v4360
    %4362 = vmatprep.mubr.bf16.mxu0 %v3260
    %4363 = vmatmul.mubr.bf16.gmra.mrb[0].mxu0 %v3259
    %v4364 = vpop.f32.mrb[0].mxu0
    %v4365 = vadd.f32 %v3954, %v4364
    %v4366 = vpop.f32.mrb[0].mxu0
    %v4367 = vadd.f32 %v3956, %v4366
    %v4368 = vpop.f32.mrb[0].mxu0
    %v4369 = vadd.f32 %v3958, %v4368
    %v4370 = vpop.f32.mrb[0].mxu0
    %v4371 = vadd.f32 %v3960, %v4370
    %4372 = vmatprep.mubr.bf16.mxu0 %v3264
    %4373 = vmatmul.mubr.bf16.gmra.mrb[0].mxu0 %v3263
    %v4374 = vpop.f32.mrb[0].mxu0
    %v4375 = vadd.f32 %v3964, %v4374
    %v4376 = vpop.f32.mrb[0].mxu0
    %v4377 = vadd.f32 %v3966, %v4376
    %v4378 = vpop.f32.mrb[0].mxu0
    %v4379 = vadd.f32 %v3968, %v4378
    %v4380 = vpop.f32.mrb[0].mxu0
    %v4381 = vadd.f32 %v3970, %v4380
    %4382 = vmatprep.mubr.bf16.mxu0 %v3268
    %4383 = vmatmul.mubr.bf16.gmra.mrb[0].mxu0 %v3267
    %v4384 = vpop.f32.mrb[0].mxu0
    %v4385 = vadd.f32 %v3974, %v4384
    %v4386 = vpop.f32.mrb[0].mxu0
    %v4387 = vadd.f32 %v3976, %v4386
    %v4388 = vpop.f32.mrb[0].mxu0
    %v4389 = vadd.f32 %v3978, %v4388
    %v4390 = vpop.f32.mrb[0].mxu0
    %v4391 = vadd.f32 %v3980, %v4390
    %4392 = vmatprep.mubr.bf16.mxu0 %v3272
    %4393 = vmatmul.mubr.bf16.gmra.mrb[0].mxu0 %v3271
    %v4394 = vpop.f32.mrb[0].mxu0
    %v4395 = vadd.f32 %v3984, %v4394
    %v4396 = vpop.f32.mrb[0].mxu0
    %v4397 = vadd.f32 %v3986, %v4396
    %v4398 = vpop.f32.mrb[0].mxu0
    %v4399 = vadd.f32 %v3988, %v4398
    %v4400 = vpop.f32.mrb[0].mxu0
    %v4401 = vadd.f32 %v3990, %v4400
    %4402 = vmatprep.mubr.bf16.mxu0 %v3276
    %4403 = vmatmul.mubr.bf16.gmra.mrb[0].mxu0 %v3275
    %v4404 = vpop.f32.mrb[0].mxu0
    %v4405 = vadd.f32 %v3994, %v4404
    %v4406 = vpop.f32.mrb[0].mxu0
    %v4407 = vadd.f32 %v3996, %v4406
    %v4408 = vpop.f32.mrb[0].mxu0
    %v4409 = vadd.f32 %v3998, %v4408
    %v4410 = vpop.f32.mrb[0].mxu0
    %v4411 = vadd.f32 %v4000, %v4410
    %4412 = vmatprep.mubr.bf16.mxu0 %v3280
    %4413 = vmatmul.mubr.bf16.gmra.mrb[0].mxu0 %v3279
    %v4414 = vpop.f32.mrb[0].mxu0
    %v4415 = vadd.f32 %v4004, %v4414
    %v4416 = vpop.f32.mrb[0].mxu0
    %v4417 = vadd.f32 %v4006, %v4416
    %v4418 = vpop.f32.mrb[0].mxu0
    %v4419 = vadd.f32 %v4008, %v4418
    %v4420 = vpop.f32.mrb[0].mxu0
    %v4421 = vadd.f32 %v4010, %v4420
    %4422 = vmatprep.mubr.bf16.mxu0 %v3284
    %4423 = vmatmul.mubr.bf16.gmra.mrb[0].mxu0 %v3283
    %v4424 = vpop.f32.mrb[0].mxu0
    %v4425 = vadd.f32 %v4014, %v4424
    %v4426 = vpop.f32.mrb[0].mxu0
    %v4427 = vadd.f32 %v4016, %v4426
    %v4428 = vpop.f32.mrb[0].mxu0
    %v4429 = vadd.f32 %v4018, %v4428
    %v4430 = vpop.f32.mrb[0].mxu0
    %v4431 = vadd.f32 %v4020, %v4430
    %4432 = vmatprep.mubr.bf16.mxu0 %v3288
    %4433 = vmatmul.mubr.bf16.gmra.mrb[0].mxu0 %v3287
    %v4434 = vpop.f32.mrb[0].mxu0
    %v4435 = vadd.f32 %v4024, %v4434
    %v4436 = vpop.f32.mrb[0].mxu0
    %v4437 = vadd.f32 %v4026, %v4436
    %v4438 = vpop.f32.mrb[0].mxu0
    %v4439 = vadd.f32 %v4028, %v4438
    %v4440 = vpop.f32.mrb[0].mxu0
    %v4441 = vadd.f32 %v4030, %v4440
    %4442 = vmatprep.mubr.bf16.mxu0 %v3292
    %4443 = vmatmul.mubr.bf16.gmra.mrb[0].mxu0 %v3291
    %v4444 = vpop.f32.mrb[0].mxu0
    %v4445 = vadd.f32 %v4034, %v4444
    %v4446 = vpop.f32.mrb[0].mxu0
    %v4447 = vadd.f32 %v4036, %v4446
    %v4448 = vpop.f32.mrb[0].mxu0
    %v4449 = vadd.f32 %v4038, %v4448
    %v4450 = vpop.f32.mrb[0].mxu0
    %v4451 = vadd.f32 %v4040, %v4450
    %4452 = vmatprep.mubr.bf16.mxu0 %v3296
    %4453 = vmatmul.mubr.bf16.gmra.mrb[0].mxu0 %v3295
    %v4454 = vpop.f32.mrb[0].mxu0
    %v4455 = vadd.f32 %v4044, %v4454
    %v4456 = vpop.f32.mrb[0].mxu0
    %v4457 = vadd.f32 %v4046, %v4456
    %v4458 = vpop.f32.mrb[0].mxu0
    %v4459 = vadd.f32 %v4048, %v4458
    %v4460 = vpop.f32.mrb[0].mxu0
    %v4461 = vadd.f32 %v4050, %v4460
    %4462 = vmatprep.mubr.bf16.mxu0 %v3300
    %4463 = vmatmul.mubr.bf16.gmra.mrb[0].mxu0 %v3299
    %v4464 = vpop.f32.mrb[0].mxu0
    %v4465 = vadd.f32 %v4054, %v4464
    %v4466 = vpop.f32.mrb[0].mxu0
    %v4467 = vadd.f32 %v4056, %v4466
    %v4468 = vpop.f32.mrb[0].mxu0
    %v4469 = vadd.f32 %v4058, %v4468
    %v4470 = vpop.f32.mrb[0].mxu0
    %v4471 = vadd.f32 %v4060, %v4470
    %4472 = vmatprep.mubr.bf16.mxu0 %v3304
    %4473 = vmatmul.mubr.bf16.gmra.mrb[0].mxu0 %v3303
    %v4474 = vpop.f32.mrb[0].mxu0
    %v4475 = vadd.f32 %v4064, %v4474
    %v4476 = vpop.f32.mrb[0].mxu0
    %v4477 = vadd.f32 %v4066, %v4476
    %v4478 = vpop.f32.mrb[0].mxu0
    %v4479 = vadd.f32 %v4068, %v4478
    %v4480 = vpop.f32.mrb[0].mxu0
    %v4481 = vadd.f32 %v4070, %v4480
    %4482 = vmatprep.mubr.bf16.mxu0 %v3308
    %4483 = vmatmul.mubr.bf16.gmra.mrb[0].mxu0 %v3307
    %v4484 = vpop.f32.mrb[0].mxu0
    %v4485 = vadd.f32 %v4074, %v4484
    %v4486 = vpop.f32.mrb[0].mxu0
    %v4487 = vadd.f32 %v4076, %v4486
    %v4488 = vpop.f32.mrb[0].mxu0
    %v4489 = vadd.f32 %v4078, %v4488
    %v4490 = vpop.f32.mrb[0].mxu0
    %v4491 = vadd.f32 %v4080, %v4490
    %4492 = vmatprep.mubr.bf16.mxu0 %v3312
    %4493 = vmatmul.mubr.bf16.gmra.mrb[0].mxu0 %v3311
    %v4494 = vpop.f32.mrb[0].mxu0
    %v4495 = vadd.f32 %v4084, %v4494
    %v4496 = vpop.f32.mrb[0].mxu0
    %v4497 = vadd.f32 %v4086, %v4496
    %v4498 = vpop.f32.mrb[0].mxu0
    %v4499 = vadd.f32 %v4088, %v4498
    %v4500 = vpop.f32.mrb[0].mxu0
    %v4501 = vadd.f32 %v4090, %v4500
    %4502 = vmatprep.mubr.bf16.mxu0 %v3316
    %4503 = vmatmul.mubr.bf16.gmra.mrb[0].mxu0 %v3315
    %v4504 = vpop.f32.mrb[0].mxu0
    %v4505 = vadd.f32 %v4094, %v4504
    %v4506 = vpop.f32.mrb[0].mxu0
    %v4507 = vadd.f32 %v4096, %v4506
    %v4508 = vpop.f32.mrb[0].mxu0
    %v4509 = vadd.f32 %v4098, %v4508
    %v4510 = vpop.f32.mrb[0].mxu0
    %v4511 = vadd.f32 %v4100, %v4510
    %4512 = vmatprep.mubr.bf16.mxu0 %v3320
    %4513 = vmatmul.mubr.bf16.gmra.mrb[0].mxu0 %v3319
    %v4514 = vpop.f32.mrb[0].mxu0
    %v4515 = vadd.f32 %v4104, %v4514
    %v4516 = vpop.f32.mrb[0].mxu0
    %v4517 = vadd.f32 %v4106, %v4516
    %v4518 = vpop.f32.mrb[0].mxu0
    %v4519 = vadd.f32 %v4108, %v4518
    %v4520 = vpop.f32.mrb[0].mxu0
    %v4521 = vadd.f32 %v4110, %v4520
    %4522 = vmatprep.mubr.bf16.mxu0 %v3324
    %4523 = vmatmul.mubr.bf16.gmra.mrb[0].mxu0 %v3323
    %v4524 = vpop.f32.mrb[0].mxu0
    %v4525 = vadd.f32 %v4114, %v4524
    %v4526 = vpop.f32.mrb[0].mxu0
    %v4527 = vadd.f32 %v4116, %v4526
    %v4528 = vpop.f32.mrb[0].mxu0
    %v4529 = vadd.f32 %v4118, %v4528
    %v4530 = vpop.f32.mrb[0].mxu0
    %v4531 = vadd.f32 %v4120, %v4530
    %4532 = vmatprep.mubr.bf16.mxu0 %v3328
    %4533 = vmatmul.mubr.bf16.gmra.mrb[0].mxu0 %v3327
    %v4534 = vpop.f32.mrb[0].mxu0
    %v4535 = vadd.f32 %v4124, %v4534
    %v4536 = vpop.f32.mrb[0].mxu0
    %v4537 = vadd.f32 %v4126, %v4536
    %v4538 = vpop.f32.mrb[0].mxu0
    %v4539 = vadd.f32 %v4128, %v4538
    %v4540 = vpop.f32.mrb[0].mxu0
    %v4541 = vadd.f32 %v4130, %v4540
    %4542 = vmatprep.mubr.bf16.mxu0 %v3332
    %4543 = vmatmul.mubr.bf16.gmra.mrb[0].mxu0 %v3331
    %v4544 = vpop.f32.mrb[0].mxu0
    %v4545 = vadd.f32 %v4134, %v4544
    %v4546 = vpop.f32.mrb[0].mxu0
    %v4547 = vadd.f32 %v4136, %v4546
    %v4548 = vpop.f32.mrb[0].mxu0
    %v4549 = vpop.f32.mrb[0].mxu0
    %4550 = vdwg.mxu0
    %4551 = vst [vmem:[#allocation2] sm:$0xff] %v4175
    %4552 = vst [vmem:[#allocation2 + $0x8] sm:$0xff] %v4177
    %4553 = vst [vmem:[#allocation2 + $0x10] sm:$0xff] %v4179
    %4554 = vst [vmem:[#allocation2 + $0x18] sm:$0xff] %v4181
    %4555 = vst [vmem:[#allocation2 + $0x20] sm:$0xff] %v4185
    %4556 = vst [vmem:[#allocation2 + $0x28] sm:$0xff] %v4187
    %4557 = vst [vmem:[#allocation2 + $0x30] sm:$0xff] %v4189
    %4558 = vst [vmem:[#allocation2 + $0x38] sm:$0xff] %v4191
    %4559 = vst [vmem:[#allocation2 + $0x40] sm:$0xff] %v4195
    %4560 = vst [vmem:[#allocation2 + $0x48] sm:$0xff] %v4197
    %4561 = vst [vmem:[#allocation2 + $0x50] sm:$0xff] %v4199
    %4562 = vst [vmem:[#allocation2 + $0x58] sm:$0xff] %v4201
    %4563 = vst [vmem:[#allocation2 + $0x60] sm:$0xff] %v4205
    %4564 = vst [vmem:[#allocation2 + $0x68] sm:$0xff] %v4207
    %4565 = vst [vmem:[#allocation2 + $0x70] sm:$0xff] %v4209
    %4566 = vst [vmem:[#allocation2 + $0x78] sm:$0xff] %v4211
    %4567 = vst [vmem:[#allocation2 + $0x80] sm:$0xff] %v4215
    %4568 = vst [vmem:[#allocation2 + $0x88] sm:$0xff] %v4217
    %4569 = vst [vmem:[#allocation2 + $0x90] sm:$0xff] %v4219
    %4570 = vst [vmem:[#allocation2 + $0x98] sm:$0xff] %v4221
    %4571 = vst [vmem:[#allocation2 + $0xa0] sm:$0xff] %v4225
    %4572 = vst [vmem:[#allocation2 + $0xa8] sm:$0xff] %v4227
    %4573 = vst [vmem:[#allocation2 + $0xb0] sm:$0xff] %v4229
    %4574 = vst [vmem:[#allocation2 + $0xb8] sm:$0xff] %v4231
    %4575 = vst [vmem:[#allocation2 + $0xc0] sm:$0xff] %v4235
    %4576 = vst [vmem:[#allocation2 + $0xc8] sm:$0xff] %v4237
    %4577 = vst [vmem:[#allocation2 + $0xd0] sm:$0xff] %v4239
    %4578 = vst [vmem:[#allocation2 + $0xd8] sm:$0xff] %v4241
    %4579 = vst [vmem:[#allocation2 + $0xe0] sm:$0xff] %v4245
    %4580 = vst [vmem:[#allocation2 + $0xe8] sm:$0xff] %v4247
    %4581 = vst [vmem:[#allocation2 + $0xf0] sm:$0xff] %v4249
    %4582 = vst [vmem:[#allocation2 + $0xf8] sm:$0xff] %v4251
    %4583 = vst [vmem:[#allocation2 + $0x100] sm:$0xff] %v4255
    %4584 = vst [vmem:[#allocation2 + $0x108] sm:$0xff] %v4257
    %4585 = vst [vmem:[#allocation2 + $0x110] sm:$0xff] %v4259
    %4586 = vst [vmem:[#allocation2 + $0x118] sm:$0xff] %v4261
    %4587 = vst [vmem:[#allocation2 + $0x120] sm:$0xff] %v4265
    %4588 = vst [vmem:[#allocation2 + $0x128] sm:$0xff] %v4267
    %4589 = vst [vmem:[#allocation2 + $0x130] sm:$0xff] %v4269
    %4590 = vst [vmem:[#allocation2 + $0x138] sm:$0xff] %v4271
    %4591 = vst [vmem:[#allocation2 + $0x140] sm:$0xff] %v4275
    %4592 = vst [vmem:[#allocation2 + $0x148] sm:$0xff] %v4277
    %4593 = vst [vmem:[#allocation2 + $0x150] sm:$0xff] %v4279
    %4594 = vst [vmem:[#allocation2 + $0x158] sm:$0xff] %v4281
    %4595 = vst [vmem:[#allocation2 + $0x160] sm:$0xff] %v4285
    %4596 = vst [vmem:[#allocation2 + $0x168] sm:$0xff] %v4287
    %4597 = vst [vmem:[#allocation2 + $0x170] sm:$0xff] %v4289
    %4598 = vst [vmem:[#allocation2 + $0x178] sm:$0xff] %v4291
    %4599 = vst [vmem:[#allocation2 + $0x180] sm:$0xff] %v4295
    %4600 = vst [vmem:[#allocation2 + $0x188] sm:$0xff] %v4297
    %4601 = vst [vmem:[#allocation2 + $0x190] sm:$0xff] %v4299
    %4602 = vst [vmem:[#allocation2 + $0x198] sm:$0xff] %v4301
    %4603 = vst [vmem:[#allocation2 + $0x1a0] sm:$0xff] %v4305
    %4604 = vst [vmem:[#allocation2 + $0x1a8] sm:$0xff] %v4307
    %4605 = vst [vmem:[#allocation2 + $0x1b0] sm:$0xff] %v4309
    %4606 = vst [vmem:[#allocation2 + $0x1b8] sm:$0xff] %v4311
    %4607 = vst [vmem:[#allocation2 + $0x1c0] sm:$0xff] %v4315
    %4608 = vst [vmem:[#allocation2 + $0x1c8] sm:$0xff] %v4317
    %4609 = vst [vmem:[#allocation2 + $0x1d0] sm:$0xff] %v4319
    %4610 = vst [vmem:[#allocation2 + $0x1d8] sm:$0xff] %v4321
    %4611 = vst [vmem:[#allocation2 + $0x1e0] sm:$0xff] %v4325
    %4612 = vst [vmem:[#allocation2 + $0x1e8] sm:$0xff] %v4327
    %4613 = vst [vmem:[#allocation2 + $0x1f0] sm:$0xff] %v4329
    %4614 = vst [vmem:[#allocation2 + $0x1f8] sm:$0xff] %v4331
    %4615 = vst [vmem:[#allocation2 + $0x200] sm:$0xff] %v4335
    %4616 = vst [vmem:[#allocation2 + $0x208] sm:$0xff] %v4337
    %4617 = vst [vmem:[#allocation2 + $0x210] sm:$0xff] %v4339
    %4618 = vst [vmem:[#allocation2 + $0x218] sm:$0xff] %v4341
    %4619 = vst [vmem:[#allocation2 + $0x220] sm:$0xff] %v4345
    %4620 = vst [vmem:[#allocation2 + $0x228] sm:$0xff] %v4347
    %4621 = vst [vmem:[#allocation2 + $0x230] sm:$0xff] %v4349
    %4622 = vst [vmem:[#allocation2 + $0x238] sm:$0xff] %v4351
    %4623 = vst [vmem:[#allocation2 + $0x240] sm:$0xff] %v4355
    %4624 = vst [vmem:[#allocation2 + $0x248] sm:$0xff] %v4357
    %4625 = vst [vmem:[#allocation2 + $0x250] sm:$0xff] %v4359
    %4626 = vst [vmem:[#allocation2 + $0x258] sm:$0xff] %v4361
    %4627 = vst [vmem:[#allocation2 + $0x260] sm:$0xff] %v4365
    %4628 = vst [vmem:[#allocation2 + $0x268] sm:$0xff] %v4367
    %4629 = vst [vmem:[#allocation2 + $0x270] sm:$0xff] %v4369
    %4630 = vst [vmem:[#allocation2 + $0x278] sm:$0xff] %v4371
    %4631 = vst [vmem:[#allocation2 + $0x280] sm:$0xff] %v4375
    %4632 = vst [vmem:[#allocation2 + $0x288] sm:$0xff] %v4377
    %4633 = vst [vmem:[#allocation2 + $0x290] sm:$0xff] %v4379
    %4634 = vst [vmem:[#allocation2 + $0x298] sm:$0xff] %v4381
    %4635 = vst [vmem:[#allocation2 + $0x2a0] sm:$0xff] %v4385
    %4636 = vst [vmem:[#allocation2 + $0x2a8] sm:$0xff] %v4387
    %4637 = vst [vmem:[#allocation2 + $0x2b0] sm:$0xff] %v4389
    %4638 = vst [vmem:[#allocation2 + $0x2b8] sm:$0xff] %v4391
    %4639 = vst [vmem:[#allocation2 + $0x2c0] sm:$0xff] %v4395
    %4640 = vst [vmem:[#allocation2 + $0x2c8] sm:$0xff] %v4397
    %4641 = vst [vmem:[#allocation2 + $0x2d0] sm:$0xff] %v4399
    %4642 = vst [vmem:[#allocation2 + $0x2d8] sm:$0xff] %v4401
    %4643 = vst [vmem:[#allocation2 + $0x2e0] sm:$0xff] %v4405
    %4644 = vst [vmem:[#allocation2 + $0x2e8] sm:$0xff] %v4407
    %4645 = vst [vmem:[#allocation2 + $0x2f0] sm:$0xff] %v4409
    %4646 = vst [vmem:[#allocation2 + $0x2f8] sm:$0xff] %v4411
    %4647 = vst [vmem:[#allocation2 + $0x300] sm:$0xff] %v4415
    %4648 = vst [vmem:[#allocation2 + $0x308] sm:$0xff] %v4417
    %4649 = vst [vmem:[#allocation2 + $0x310] sm:$0xff] %v4419
    %4650 = vst [vmem:[#allocation2 + $0x318] sm:$0xff] %v4421
    %4651 = vst [vmem:[#allocation2 + $0x320] sm:$0xff] %v4425
    %4652 = vst [vmem:[#allocation2 + $0x328] sm:$0xff] %v4427
    %4653 = vst [vmem:[#allocation2 + $0x330] sm:$0xff] %v4429
    %4654 = vst [vmem:[#allocation2 + $0x338] sm:$0xff] %v4431
    %4655 = vst [vmem:[#allocation2 + $0x340] sm:$0xff] %v4435
    %4656 = vst [vmem:[#allocation2 + $0x348] sm:$0xff] %v4437
    %4657 = vst [vmem:[#allocation2 + $0x350] sm:$0xff] %v4439
    %4658 = vst [vmem:[#allocation2 + $0x358] sm:$0xff] %v4441
    %4659 = vst [vmem:[#allocation2 + $0x360] sm:$0xff] %v4445
    %4660 = vst [vmem:[#allocation2 + $0x368] sm:$0xff] %v4447
    %4661 = vst [vmem:[#allocation2 + $0x370] sm:$0xff] %v4449
    %4662 = vst [vmem:[#allocation2 + $0x378] sm:$0xff] %v4451
    %4663 = vst [vmem:[#allocation2 + $0x380] sm:$0xff] %v4455
    %4664 = vst [vmem:[#allocation2 + $0x388] sm:$0xff] %v4457
    %4665 = vst [vmem:[#allocation2 + $0x390] sm:$0xff] %v4459
    %4666 = vst [vmem:[#allocation2 + $0x398] sm:$0xff] %v4461
    %4667 = vst [vmem:[#allocation2 + $0x3a0] sm:$0xff] %v4465
    %4668 = vst [vmem:[#allocation2 + $0x3a8] sm:$0xff] %v4467
    %4669 = vst [vmem:[#allocation2 + $0x3b0] sm:$0xff] %v4469
    %4670 = vst [vmem:[#allocation2 + $0x3b8] sm:$0xff] %v4471
    %4671 = vst [vmem:[#allocation2 + $0x3c0] sm:$0xff] %v4475
    %4672 = vst [vmem:[#allocation2 + $0x3c8] sm:$0xff] %v4477
    %4673 = vst [vmem:[#allocation2 + $0x3d0] sm:$0xff] %v4479
    %4674 = vst [vmem:[#allocation2 + $0x3d8] sm:$0xff] %v4481
    %4675 = vst [vmem:[#allocation2 + $0x3e0] sm:$0xff] %v4485
    %4676 = vst [vmem:[#allocation2 + $0x3e8] sm:$0xff] %v4487
    %4677 = vst [vmem:[#allocation2 + $0x3f0] sm:$0xff] %v4489
    %4678 = vst [vmem:[#allocation2 + $0x3f8] sm:$0xff] %v4491
    %4679 = vst [vmem:[#allocation2 + $0x400] sm:$0xff] %v4495
    %4680 = vst [vmem:[#allocation2 + $0x408] sm:$0xff] %v4497
    %4681 = vst [vmem:[#allocation2 + $0x410] sm:$0xff] %v4499
    %4682 = vst [vmem:[#allocation2 + $0x418] sm:$0xff] %v4501
    %4683 = vst [vmem:[#allocation2 + $0x420] sm:$0xff] %v4505
    %4684 = vst [vmem:[#allocation2 + $0x428] sm:$0xff] %v4507
    %4685 = vst [vmem:[#allocation2 + $0x430] sm:$0xff] %v4509
    %4686 = vst [vmem:[#allocation2 + $0x438] sm:$0xff] %v4511
    %4687 = vst [vmem:[#allocation2 + $0x440] sm:$0xff] %v4515
    %4688 = vst [vmem:[#allocation2 + $0x448] sm:$0xff] %v4517
    %4689 = vst [vmem:[#allocation2 + $0x450] sm:$0xff] %v4519
    %4690 = vst [vmem:[#allocation2 + $0x458] sm:$0xff] %v4521
    %4691 = vst [vmem:[#allocation2 + $0x460] sm:$0xff] %v4525
    %4692 = vst [vmem:[#allocation2 + $0x468] sm:$0xff] %v4527
    %4693 = vst [vmem:[#allocation2 + $0x470] sm:$0xff] %v4529
    %4694 = vst [vmem:[#allocation2 + $0x478] sm:$0xff] %v4531
    %4695 = vst [vmem:[#allocation2 + $0x480] sm:$0xff] %v4535
    %4696 = vst [vmem:[#allocation2 + $0x488] sm:$0xff] %v4537
    %4697 = vst [vmem:[#allocation2 + $0x490] sm:$0xff] %v4539
    %4698 = vst [vmem:[#allocation2 + $0x498] sm:$0xff] %v4541
    %4699 = vst [vmem:[#allocation2 + $0x4a0] sm:$0xff] %v4545
    %4700 = vst [vmem:[#allocation2 + $0x4a8] sm:$0xff] %v4547
    // Predicated region
    $region30: #{trunk_net.1} parent=1 // pred_check
      _
    $region31: #{trunk_net.1} parent=1 // pred_check_branch
      %4702 = sbr.rel (0) target = $region33
    $region32: #{trunk_net.1} parent=1 // pred_region
      %s4704 = ssub.s32 19200, 19200
      %4705 = vsyncadd [#allocation3], %s4704
      %s4706 = sshll.u32 [#allocation2], 4
      %s4707 = int_to_ptr.vmem [resolvable:$true] %s4706
      %4712 = dma.vmem_to_hbm [thread:$0]  %s4707, 19200, %s7, [#allocation3], 256, 256, 16
    $region33: #{trunk_net.1} parent=1 // pred_fallthru
      _
    // Predicated region
    $region34: #{trunk_net.1} parent=1 // pred_check
      _
    $region35: #{trunk_net.1} parent=1 // pred_check_branch
      %4714 = sbr.rel (0) target = $region37
    $region36: #{trunk_net.1} parent=1 // pred_region
      %4715 = dma.done [#allocation3], 19200
    $region37: #{trunk_net.1} parent=1 // pred_fallthru
      _
    %4716 = vsyncpa [#allocation3], 1

</llo_original>
